<compile_context>
chip_gen: v7x
topology: tpu7x:2x2x1
jax: 0.10.0
libtpu: 0.0.40
codegen_flags: <defaults>
</compile_context>

<pallas_src>
import numpy as np
import jax
import jax.numpy as jnp
from jax import lax
from jax.experimental import pallas as pl
from jax.experimental.pallas import tpu as pltpu


# ----------------------------------------------------------------------------
# Pallas kernels — one invocation per (chunked) sequence, time loop inside.
# ----------------------------------------------------------------------------
def _vmem_spec():
    return pl.BlockSpec(memory_space=pltpu.MemorySpace.VMEM)


def _lstm_cell(x_t, h, c, wih, whh, b):
    """One LSTM step on the MXU/VPU.  Gate order [i, f, g, o] (PyTorch)."""
    gates = (jnp.dot(x_t, wih, preferred_element_type=jnp.float32)
             + jnp.dot(h, whh, preferred_element_type=jnp.float32)
             + b)
    H = h.shape[-1]
    i_g = jax.nn.sigmoid(gates[:, 0 * H:1 * H])
    f_g = jax.nn.sigmoid(gates[:, 1 * H:2 * H])
    g_g = jnp.tanh(gates[:, 2 * H:3 * H])
    o_g = jax.nn.sigmoid(gates[:, 3 * H:4 * H])
    c_new = f_g * c + i_g * g_g
    h_new = o_g * jnp.tanh(c_new)
    return h_new, c_new


def _lstm_encoder_kernel(x_ref, wih_ref, whh_ref, b_ref, hout_ref):
    """Whole sub-sequence in one invocation.  Emits only the final hidden state."""
    T, N, _ = x_ref.shape
    H = hout_ref.shape[-1]
    wih = wih_ref[...]
    whh = whh_ref[...]
    b = b_ref[...]
    h = jnp.zeros((N, H), jnp.float32)
    c = jnp.zeros((N, H), jnp.float32)
    # T is a small static trip count (<= a few); fully unroll so (h, c) stay in
    # vregs and the scheduler sees the whole dependency chain.
    for t in range(T):
        h, c = _lstm_cell(x_ref[t], h, c, wih, whh, b)
    hout_ref[...] = h


def _lstm_decoder_tf_kernel(x_ref, h0_ref, wih_ref, whh_ref, b_ref,
                            wfc_ref, bfc_ref, y_ref):
    """Teacher-forced decoder: x_t comes from the (shifted) targets."""
    T = y_ref.shape[0]
    wih = wih_ref[...]
    whh = whh_ref[...]
    b = b_ref[...]
    wfc = wfc_ref[...]
    bfc = bfc_ref[...]
    h = h0_ref[...]
    c = jnp.zeros_like(h)
    for t in range(T):
        h, c = _lstm_cell(x_ref[t], h, c, wih, whh, b)
        y_ref[t] = (jnp.dot(h, wfc, preferred_element_type=jnp.float32) + bfc)


def _lstm_decoder_ar_kernel(h0_ref, wih_ref, whh_ref, b_ref,
                            wfc_ref, bfc_ref, y_ref):
    """Autoregressive decoder: start input = 0, feeds back previous output.
    No x input at all (no DMA of zeros)."""
    T, N, Dout = y_ref.shape
    wih = wih_ref[...]
    whh = whh_ref[...]
    b = b_ref[...]
    wfc = wfc_ref[...]
    bfc = bfc_ref[...]
    h = h0_ref[...]
    c = jnp.zeros_like(h)
    y = jnp.zeros((N, Dout), jnp.float32)
    for t in range(T):
        h, c = _lstm_cell(y, h, c, wih, whh, b)
        y = jnp.dot(h, wfc, preferred_element_type=jnp.float32) + bfc
        y_ref[t] = y


# ----------------------------------------------------------------------------
# pallas_call wrappers (no grid: single invocation, single output writeback)
# ----------------------------------------------------------------------------
def lstm_encode_last_h_pallas(x_tnd, wih, whh, b):
    """x_tnd: (T, N, Din) -> final hidden (N, H)."""
    T, N, Din = x_tnd.shape
    H = whh.shape[0]
    return pl.pallas_call(
        _lstm_encoder_kernel,
        out_shape=jax.ShapeDtypeStruct((N, H), jnp.float32),
        in_specs=[_vmem_spec() for _ in range(4)],
        out_specs=_vmem_spec(),
    )(x_tnd, wih, whh, b.reshape(1, 4 * H))


def lstm_decode_tf_pallas(x_tnd, h0, wih, whh, b, wfc, bfc):
    """Teacher forced.  x_tnd: (T, N, Din), h0: (N, H) -> (T, N, Dout)."""
    T, N, Din = x_tnd.shape
    H = whh.shape[0]
    Dout = wfc.shape[1]
    return pl.pallas_call(
        _lstm_decoder_tf_kernel,
        out_shape=jax.ShapeDtypeStruct((T, N, Dout), jnp.float32),
        in_specs=[_vmem_spec() for _ in range(7)],
        out_specs=_vmem_spec(),
    )(x_tnd, h0, wih, whh, b.reshape(1, 4 * H), wfc, bfc.reshape(1, Dout))


def lstm_decode_ar_pallas(T, h0, wih, whh, b, wfc, bfc):
    """Autoregressive.  h0: (N, H) -> (T, N, Dout).  No x input."""
    N, H = h0.shape
    Dout = wfc.shape[1]
    return pl.pallas_call(
        _lstm_decoder_ar_kernel,
        out_shape=jax.ShapeDtypeStruct((T, N, Dout), jnp.float32),
        in_specs=[_vmem_spec() for _ in range(6)],
        out_specs=_vmem_spec(),
    )(h0, wih, whh, b.reshape(1, 4 * H), wfc, bfc.reshape(1, Dout))


# ----------------------------------------------------------------------------
# Pure-JAX (lax.scan) references for the same math — used for cross-checking.
# ----------------------------------------------------------------------------
def _ref_cell(x_t, h, c, wih, whh, b):
    gates = x_t @ wih + h @ whh + b
    H = h.shape[-1]
    i_g = jax.nn.sigmoid(gates[:, :H])
    f_g = jax.nn.sigmoid(gates[:, H:2 * H])
    g_g = jnp.tanh(gates[:, 2 * H:3 * H])
    o_g = jax.nn.sigmoid(gates[:, 3 * H:])
    c = f_g * c + i_g * g_g
    h = o_g * jnp.tanh(c)
    return h, c


def lstm_encode_last_h_ref(x_tnd, wih, whh, b):
    N = x_tnd.shape[1]
    H = whh.shape[0]

    def step(carry, x_t):
        h, c = _ref_cell(x_t, carry[0], carry[1], wih, whh, b)
        return (h, c), None

    (h, _), _ = lax.scan(step, (jnp.zeros((N, H), jnp.float32),
                                jnp.zeros((N, H), jnp.float32)), x_tnd)
    return h


def lstm_decode_tf_ref(x_tnd, h0, wih, whh, b, wfc, bfc):
    N = x_tnd.shape[1]
    H = whh.shape[0]

    def step(carry, x_t):
        h, c = _ref_cell(x_t, carry[0], carry[1], wih, whh, b)
        y = h @ wfc + bfc
        return (h, c), y

    _, ys = lax.scan(step, (h0, jnp.zeros((N, H), jnp.float32)), x_tnd)
    return ys


def lstm_decode_ar_ref(T, h0, wih, whh, b, wfc, bfc):
    N, H = h0.shape
    Dout = wfc.shape[1]

    def step(carry, _):
        h, c, y_prev = carry
        h, c = _ref_cell(y_prev, h, c, wih, whh, b)
        y = h @ wfc + bfc
        return (h, c, y), y

    init = (h0, jnp.zeros((N, H), jnp.float32), jnp.zeros((N, Dout), jnp.float32))
    _, ys = lax.scan(step, init, xs=None, length=T)
    return ys


# ----------------------------------------------------------------------------
# enc_dec model (glue in plain JAX, recurrences in Pallas)
# ----------------------------------------------------------------------------
class EncDecPallas:
    def __init__(self, config, key):
        self.input_dim = config['input_dim']
        self.n_levels = config['n_levels']
        self.hidden_dims = config['hidden_dims']
        self.n_splits = config['n_splits']
        self.reverse = config['reverse']
        # TODO(synk): nn.Dropout is applied as identity (inference mode).
        self.params = []
        for i in range(self.n_levels):
            din = self.input_dim if i == 0 else self.hidden_dims[i - 1]
            dout = din  # dec_output_dim == curr_input_dim
            H = self.hidden_dims[i]
            ks = jax.random.split(jax.random.fold_in(key, i), 8)
            s = 1.0 / np.sqrt(H)
            u = lambda k, shape: jax.random.uniform(k, shape, jnp.float32, -s, s)
            self.params.append(dict(
                enc_wih=u(ks[0], (din, 4 * H)),
                enc_whh=u(ks[1], (H, 4 * H)),
                enc_b=u(ks[2], (4 * H,)),
                dec_wih=u(ks[3], (dout, 4 * H)),
                dec_whh=u(ks[4], (H, 4 * H)),
                dec_b=u(ks[5], (4 * H,)),
                dec_wfc=u(ks[6], (H, dout)),
                dec_bfc=u(ks[7], (dout,)),
            ))

    # ---- encoderLayer: split sequence into n_split chunks, keep final h ----
    def _encoder_layer(self, i, rep, use_pallas):
        B, L, Din = rep.shape
        n_split = self.n_splits[i]
        H = self.hidden_dims[i]
        sub = L // n_split
        x = rep.reshape(B * n_split, sub, Din).transpose(1, 0, 2)  # (T, N, D)
        p = self.params[i]
        fn = lstm_encode_last_h_pallas if use_pallas else lstm_encode_last_h_ref
        h = fn(x, p['enc_wih'], p['enc_whh'], p['enc_b'])          # (N, H)
        return h.reshape(B, n_split, H)

    # ---- decoderLayer: per-chunk LSTM init from `hidden`, Linear head ----
    def _decoder_layer(self, j, inputs, hidden, teacher_forcing, sub, use_pallas):
        B, n_split, H = hidden.shape
        p = self.params[j]
        dout = p['dec_wfc'].shape[1]
        h0 = hidden.reshape(B * n_split, H)
        if teacher_forcing:
            x = inputs.reshape(B * n_split, sub, dout).transpose(1, 0, 2)
            fn = lstm_decode_tf_pallas if use_pallas else lstm_decode_tf_ref
            ys = fn(x, h0, p['dec_wih'], p['dec_whh'], p['dec_b'],
                    p['dec_wfc'], p['dec_bfc'])                     # (T, N, Dout)
        else:
            fn = lstm_decode_ar_pallas if use_pallas else lstm_decode_ar_ref
            ys = fn(sub, h0, p['dec_wih'], p['dec_whh'], p['dec_b'],
                    p['dec_wfc'], p['dec_bfc'])                     # (T, N, Dout)
        return ys.transpose(1, 0, 2).reshape(B, n_split * sub, dout)

    def encode(self, x, end_level, use_pallas):
        enc_reps = [x]
        rep = x
        if self.reverse:
            rep = jnp.flip(rep, axis=1)
        for i in range(end_level):
            rep = self._encoder_layer(i, rep, use_pallas)
            enc_reps.append(jnp.flip(rep, axis=1) if self.reverse else rep)
        return enc_reps

    def decode(self, states, start_level, teacher_forcing, total_time_steps,
               enc_reps, use_pallas):
        assert start_level <= self.n_levels
        B = states.shape[0]
        dec_reps_i = []
        for j in range(start_level - 1, -1, -1):
            n_split = self.n_splits[j]
            target_dim = self.hidden_dims[j - 1] if j > 0 else self.input_dim
            next_time_steps = self.n_splits[j - 1] if j > 0 else total_time_steps
            sub = next_time_steps // n_split
            if teacher_forcing:
                target = enc_reps[j].reshape(B * n_split, sub, target_dim)
                start = jnp.zeros((B * n_split, 1, target_dim), jnp.float32)
                target = jnp.concatenate([start, target[:, :-1, :]], axis=1)
                inputs = target.reshape(B, next_time_steps, target_dim)
            else:
                inputs = None   # autoregressive: kernel has no x input at all
            states = self._decoder_layer(j, inputs, states, teacher_forcing,
                                         sub, use_pallas)
            dec_reps_i.append(states)
        dec_reps_i.reverse()
        return dec_reps_i

    def forward(self, x, teacher_forcing, use_pallas=True):
        B, T, _ = x.shape
        enc_reps = self.encode(x, self.n_levels, use_pallas)
        dec_reps = []
        for i in range(self.n_levels, 0, -1):
            states = enc_reps[i]
            dec_reps.append(self.decode(states, i, teacher_forcing, T,
                                        enc_reps, use_pallas))
        dec_reps.reverse()
        return enc_reps, dec_reps


# ----------------------------------------------------------------------------
if __name__ == "__main__":
    config = {'input_dim': 8, 'n_levels': 2, 'hidden_dims': [16, 32],
              'n_splits': [4, 2], 'reverse': False, 'dropout': 0.0}
    B, T = 2, 16

    key = jax.random.PRNGKey(0)
    model = EncDecPallas(config, key)
    x = jax.random.normal(jax.random.fold_in(key, 999),
                          (B, T, config['input_dim']), jnp.float32)

    # jit the whole forward so the many tiny pallas_calls are dispatched from
    # one compiled program (teacher_forcing / use_pallas are static closures).
    fwd_tf_p = jax.jit(lambda v: model.forward(v, True, True))
    fwd_ar_p = jax.jit(lambda v: model.forward(v, False, True))
    fwd_tf_r = jax.jit(lambda v: model.forward(v, True, False))
    fwd_ar_r = jax.jit(lambda v: model.forward(v, False, False))

    # Pallas forward (teacher-forced and autoregressive)
    enc_p, dec_p = fwd_tf_p(x)
    jax.block_until_ready((enc_p, dec_p))
    enc_p2, dec_p2 = fwd_ar_p(x)
    jax.block_until_ready((enc_p2, dec_p2))

    # Cross-check against a pure-JAX lax.scan reference of the same math.
    enc_r, dec_r = fwd_tf_r(x)
    enc_r2, dec_r2 = fwd_ar_r(x)
    jax.block_until_ready((enc_r, dec_r, enc_r2, dec_r2))

    def max_diff(a, b):
        la = jax.tree_util.tree_leaves(a)
        lb = jax.tree_util.tree_leaves(b)
        return max(float(jnp.max(jnp.abs(u - v))) for u, v in zip(la, lb))

    d1 = max_diff((enc_p, dec_p), (enc_r, dec_r))
    d2 = max_diff((enc_p2, dec_p2), (enc_r2, dec_r2))
    # loose tolerance: MXU f32 matmul may use reduced-precision passes
    assert d1 < 5e-2 and d2 < 5e-2, (d1, d2)

    print("KERNEL_OK")
</pallas_src>

<mosaic_0001>
module attributes {stable_mosaic.version = 11 : i64} {
  func.func @_lstm_encoder_kernel(%arg0: memref<4x8x8xf32, #tpu.memory_space<vmem>>, %arg1: memref<8x64xf32, #tpu.memory_space<vmem>>, %arg2: memref<16x64xf32, #tpu.memory_space<vmem>>, %arg3: memref<1x64xf32, #tpu.memory_space<vmem>>, %arg4: memref<8x16xf32, #tpu.memory_space<vmem>>) attributes {dimension_semantics = [], scalar_prefetch = 0 : i64, scratch_operands = 0 : i64, tpu.core_type = #tpu.core_type<tc>} {
    %c0 = arith.constant 0 : index
    %c0_0 = arith.constant 0 : index
    %0 = vector.load %arg1[%c0, %c0_0] : memref<8x64xf32, #tpu.memory_space<vmem>>, vector<8x64xf32>
    %c0_1 = arith.constant 0 : index
    %c0_2 = arith.constant 0 : index
    %1 = vector.load %arg2[%c0_1, %c0_2] : memref<16x64xf32, #tpu.memory_space<vmem>>, vector<16x64xf32>
    %c0_3 = arith.constant 0 : index
    %c0_4 = arith.constant 0 : index
    %2 = vector.load %arg3[%c0_3, %c0_4] : memref<1x64xf32, #tpu.memory_space<vmem>>, vector<1x64xf32>
    %cst = arith.constant 0.000000e+00 : f32
    %3 = vector.broadcast %cst : f32 to vector<8x16xf32>
    %cst_5 = arith.constant 0.000000e+00 : f32
    %4 = vector.broadcast %cst_5 : f32 to vector<8x16xf32>
    %c0_6 = arith.constant 0 : index
    %c0_7 = arith.constant 0 : index
    %c0_8 = arith.constant 0 : index
    %5 = vector.load %arg0[%c0_6, %c0_7, %c0_8] : memref<4x8x8xf32, #tpu.memory_space<vmem>>, vector<1x8x8xf32>
    %6 = vector.shape_cast %5 : vector<1x8x8xf32> to vector<8x8xf32>
    %cst_9 = arith.constant dense<0.000000e+00> : vector<8x64xf32>
    %7 = tpu.matmul %6, %0, %cst_9 {dimension_numbers = #tpu.dot_dimension_numbers<[1], [0], [0], [1], [0, 0, 1, 1], [], []>} : vector<8x8xf32>, vector<8x64xf32>, vector<8x64xf32> -> vector<8x64xf32>
    %cst_10 = arith.constant dense<0.000000e+00> : vector<8x64xf32>
    %8 = tpu.matmul %3, %1, %cst_10 {dimension_numbers = #tpu.dot_dimension_numbers<[1], [0], [0], [1], [0, 0, 1, 1], [], []>} : vector<8x16xf32>, vector<16x64xf32>, vector<8x64xf32> -> vector<8x64xf32>
    %9 = arith.addf %7, %8 : vector<8x64xf32>
    %10 = vector.broadcast %2 : vector<1x64xf32> to vector<8x64xf32>
    %11 = arith.addf %9, %10 : vector<8x64xf32>
    %12 = vector.extract_strided_slice %11 {offsets = [0, 0], sizes = [8, 16], strides = [1, 1]} : vector<8x64xf32> to vector<8x16xf32>
    %13 = arith.negf %12 : vector<8x16xf32>
    %14 = math.exp %13 : vector<8x16xf32>
    %cst_11 = arith.constant 1.000000e+00 : f32
    %15 = vector.broadcast %cst_11 : f32 to vector<8x16xf32>
    %16 = arith.addf %15, %14 : vector<8x16xf32>
    %17 = arith.divf %15, %16 : vector<8x16xf32>
    %18 = vector.extract_strided_slice %11 {offsets = [0, 16], sizes = [8, 16], strides = [1, 1]} : vector<8x64xf32> to vector<8x16xf32>
    %19 = arith.negf %18 : vector<8x16xf32>
    %20 = math.exp %19 : vector<8x16xf32>
    %cst_12 = arith.constant 1.000000e+00 : f32
    %21 = vector.broadcast %cst_12 : f32 to vector<8x16xf32>
    %22 = arith.addf %21, %20 : vector<8x16xf32>
    %23 = arith.divf %21, %22 : vector<8x16xf32>
    %24 = vector.extract_strided_slice %11 {offsets = [0, 32], sizes = [8, 16], strides = [1, 1]} : vector<8x64xf32> to vector<8x16xf32>
    %25 = math.tanh %24 : vector<8x16xf32>
    %26 = vector.extract_strided_slice %11 {offsets = [0, 48], sizes = [8, 16], strides = [1, 1]} : vector<8x64xf32> to vector<8x16xf32>
    %27 = arith.negf %26 : vector<8x16xf32>
    %28 = math.exp %27 : vector<8x16xf32>
    %cst_13 = arith.constant 1.000000e+00 : f32
    %29 = vector.broadcast %cst_13 : f32 to vector<8x16xf32>
    %30 = arith.addf %29, %28 : vector<8x16xf32>
    %31 = arith.divf %29, %30 : vector<8x16xf32>
    %32 = arith.mulf %23, %4 : vector<8x16xf32>
    %33 = arith.mulf %17, %25 : vector<8x16xf32>
    %34 = arith.addf %32, %33 : vector<8x16xf32>
    %35 = math.tanh %34 : vector<8x16xf32>
    %36 = arith.mulf %31, %35 : vector<8x16xf32>
    %c1 = arith.constant 1 : index
    %c0_14 = arith.constant 0 : index
    %c0_15 = arith.constant 0 : index
    %37 = vector.load %arg0[%c1, %c0_14, %c0_15] : memref<4x8x8xf32, #tpu.memory_space<vmem>>, vector<1x8x8xf32>
    %38 = vector.shape_cast %37 : vector<1x8x8xf32> to vector<8x8xf32>
    %cst_16 = arith.constant dense<0.000000e+00> : vector<8x64xf32>
    %39 = tpu.matmul %38, %0, %cst_16 {dimension_numbers = #tpu.dot_dimension_numbers<[1], [0], [0], [1], [0, 0, 1, 1], [], []>} : vector<8x8xf32>, vector<8x64xf32>, vector<8x64xf32> -> vector<8x64xf32>
    %cst_17 = arith.constant dense<0.000000e+00> : vector<8x64xf32>
    %40 = tpu.matmul %36, %1, %cst_17 {dimension_numbers = #tpu.dot_dimension_numbers<[1], [0], [0], [1], [0, 0, 1, 1], [], []>} : vector<8x16xf32>, vector<16x64xf32>, vector<8x64xf32> -> vector<8x64xf32>
    %41 = arith.addf %39, %40 : vector<8x64xf32>
    %42 = vector.broadcast %2 : vector<1x64xf32> to vector<8x64xf32>
    %43 = arith.addf %41, %42 : vector<8x64xf32>
    %44 = vector.extract_strided_slice %43 {offsets = [0, 0], sizes = [8, 16], strides = [1, 1]} : vector<8x64xf32> to vector<8x16xf32>
    %45 = arith.negf %44 : vector<8x16xf32>
    %46 = math.exp %45 : vector<8x16xf32>
    %cst_18 = arith.constant 1.000000e+00 : f32
    %47 = vector.broadcast %cst_18 : f32 to vector<8x16xf32>
    %48 = arith.addf %47, %46 : vector<8x16xf32>
    %49 = arith.divf %47, %48 : vector<8x16xf32>
    %50 = vector.extract_strided_slice %43 {offsets = [0, 16], sizes = [8, 16], strides = [1, 1]} : vector<8x64xf32> to vector<8x16xf32>
    %51 = arith.negf %50 : vector<8x16xf32>
    %52 = math.exp %51 : vector<8x16xf32>
    %cst_19 = arith.constant 1.000000e+00 : f32
    %53 = vector.broadcast %cst_19 : f32 to vector<8x16xf32>
    %54 = arith.addf %53, %52 : vector<8x16xf32>
    %55 = arith.divf %53, %54 : vector<8x16xf32>
    %56 = vector.extract_strided_slice %43 {offsets = [0, 32], sizes = [8, 16], strides = [1, 1]} : vector<8x64xf32> to vector<8x16xf32>
    %57 = math.tanh %56 : vector<8x16xf32>
    %58 = vector.extract_strided_slice %43 {offsets = [0, 48], sizes = [8, 16], strides = [1, 1]} : vector<8x64xf32> to vector<8x16xf32>
    %59 = arith.negf %58 : vector<8x16xf32>
    %60 = math.exp %59 : vector<8x16xf32>
    %cst_20 = arith.constant 1.000000e+00 : f32
    %61 = vector.broadcast %cst_20 : f32 to vector<8x16xf32>
    %62 = arith.addf %61, %60 : vector<8x16xf32>
    %63 = arith.divf %61, %62 : vector<8x16xf32>
    %64 = arith.mulf %55, %34 : vector<8x16xf32>
    %65 = arith.mulf %49, %57 : vector<8x16xf32>
    %66 = arith.addf %64, %65 : vector<8x16xf32>
    %67 = math.tanh %66 : vector<8x16xf32>
    %68 = arith.mulf %63, %67 : vector<8x16xf32>
    %c2 = arith.constant 2 : index
    %c0_21 = arith.constant 0 : index
    %c0_22 = arith.constant 0 : index
    %69 = vector.load %arg0[%c2, %c0_21, %c0_22] : memref<4x8x8xf32, #tpu.memory_space<vmem>>, vector<1x8x8xf32>
    %70 = vector.shape_cast %69 : vector<1x8x8xf32> to vector<8x8xf32>
    %cst_23 = arith.constant dense<0.000000e+00> : vector<8x64xf32>
    %71 = tpu.matmul %70, %0, %cst_23 {dimension_numbers = #tpu.dot_dimension_numbers<[1], [0], [0], [1], [0, 0, 1, 1], [], []>} : vector<8x8xf32>, vector<8x64xf32>, vector<8x64xf32> -> vector<8x64xf32>
    %cst_24 = arith.constant dense<0.000000e+00> : vector<8x64xf32>
    %72 = tpu.matmul %68, %1, %cst_24 {dimension_numbers = #tpu.dot_dimension_numbers<[1], [0], [0], [1], [0, 0, 1, 1], [], []>} : vector<8x16xf32>, vector<16x64xf32>, vector<8x64xf32> -> vector<8x64xf32>
    %73 = arith.addf %71, %72 : vector<8x64xf32>
    %74 = vector.broadcast %2 : vector<1x64xf32> to vector<8x64xf32>
    %75 = arith.addf %73, %74 : vector<8x64xf32>
    %76 = vector.extract_strided_slice %75 {offsets = [0, 0], sizes = [8, 16], strides = [1, 1]} : vector<8x64xf32> to vector<8x16xf32>
    %77 = arith.negf %76 : vector<8x16xf32>
    %78 = math.exp %77 : vector<8x16xf32>
    %cst_25 = arith.constant 1.000000e+00 : f32
    %79 = vector.broadcast %cst_25 : f32 to vector<8x16xf32>
    %80 = arith.addf %79, %78 : vector<8x16xf32>
    %81 = arith.divf %79, %80 : vector<8x16xf32>
    %82 = vector.extract_strided_slice %75 {offsets = [0, 16], sizes = [8, 16], strides = [1, 1]} : vector<8x64xf32> to vector<8x16xf32>
    %83 = arith.negf %82 : vector<8x16xf32>
    %84 = math.exp %83 : vector<8x16xf32>
    %cst_26 = arith.constant 1.000000e+00 : f32
    %85 = vector.broadcast %cst_26 : f32 to vector<8x16xf32>
    %86 = arith.addf %85, %84 : vector<8x16xf32>
    %87 = arith.divf %85, %86 : vector<8x16xf32>
    %88 = vector.extract_strided_slice %75 {offsets = [0, 32], sizes = [8, 16], strides = [1, 1]} : vector<8x64xf32> to vector<8x16xf32>
    %89 = math.tanh %88 : vector<8x16xf32>
    %90 = vector.extract_strided_slice %75 {offsets = [0, 48], sizes = [8, 16], strides = [1, 1]} : vector<8x64xf32> to vector<8x16xf32>
    %91 = arith.negf %90 : vector<8x16xf32>
    %92 = math.exp %91 : vector<8x16xf32>
    %cst_27 = arith.constant 1.000000e+00 : f32
    %93 = vector.broadcast %cst_27 : f32 to vector<8x16xf32>
    %94 = arith.addf %93, %92 : vector<8x16xf32>
    %95 = arith.divf %93, %94 : vector<8x16xf32>
    %96 = arith.mulf %87, %66 : vector<8x16xf32>
    %97 = arith.mulf %81, %89 : vector<8x16xf32>
    %98 = arith.addf %96, %97 : vector<8x16xf32>
    %99 = math.tanh %98 : vector<8x16xf32>
    %100 = arith.mulf %95, %99 : vector<8x16xf32>
    %c3 = arith.constant 3 : index
    %c0_28 = arith.constant 0 : index
    %c0_29 = arith.constant 0 : index
    %101 = vector.load %arg0[%c3, %c0_28, %c0_29] : memref<4x8x8xf32, #tpu.memory_space<vmem>>, vector<1x8x8xf32>
    %102 = vector.shape_cast %101 : vector<1x8x8xf32> to vector<8x8xf32>
    %cst_30 = arith.constant dense<0.000000e+00> : vector<8x64xf32>
    %103 = tpu.matmul %102, %0, %cst_30 {dimension_numbers = #tpu.dot_dimension_numbers<[1], [0], [0], [1], [0, 0, 1, 1], [], []>} : vector<8x8xf32>, vector<8x64xf32>, vector<8x64xf32> -> vector<8x64xf32>
    %cst_31 = arith.constant dense<0.000000e+00> : vector<8x64xf32>
    %104 = tpu.matmul %100, %1, %cst_31 {dimension_numbers = #tpu.dot_dimension_numbers<[1], [0], [0], [1], [0, 0, 1, 1], [], []>} : vector<8x16xf32>, vector<16x64xf32>, vector<8x64xf32> -> vector<8x64xf32>
    %105 = arith.addf %103, %104 : vector<8x64xf32>
    %106 = vector.broadcast %2 : vector<1x64xf32> to vector<8x64xf32>
    %107 = arith.addf %105, %106 : vector<8x64xf32>
    %108 = vector.extract_strided_slice %107 {offsets = [0, 0], sizes = [8, 16], strides = [1, 1]} : vector<8x64xf32> to vector<8x16xf32>
    %109 = arith.negf %108 : vector<8x16xf32>
    %110 = math.exp %109 : vector<8x16xf32>
    %cst_32 = arith.constant 1.000000e+00 : f32
    %111 = vector.broadcast %cst_32 : f32 to vector<8x16xf32>
    %112 = arith.addf %111, %110 : vector<8x16xf32>
    %113 = arith.divf %111, %112 : vector<8x16xf32>
    %114 = vector.extract_strided_slice %107 {offsets = [0, 16], sizes = [8, 16], strides = [1, 1]} : vector<8x64xf32> to vector<8x16xf32>
    %115 = arith.negf %114 : vector<8x16xf32>
    %116 = math.exp %115 : vector<8x16xf32>
    %cst_33 = arith.constant 1.000000e+00 : f32
    %117 = vector.broadcast %cst_33 : f32 to vector<8x16xf32>
    %118 = arith.addf %117, %116 : vector<8x16xf32>
    %119 = arith.divf %117, %118 : vector<8x16xf32>
    %120 = vector.extract_strided_slice %107 {offsets = [0, 32], sizes = [8, 16], strides = [1, 1]} : vector<8x64xf32> to vector<8x16xf32>
    %121 = math.tanh %120 : vector<8x16xf32>
    %122 = vector.extract_strided_slice %107 {offsets = [0, 48], sizes = [8, 16], strides = [1, 1]} : vector<8x64xf32> to vector<8x16xf32>
    %123 = arith.negf %122 : vector<8x16xf32>
    %124 = math.exp %123 : vector<8x16xf32>
    %cst_34 = arith.constant 1.000000e+00 : f32
    %125 = vector.broadcast %cst_34 : f32 to vector<8x16xf32>
    %126 = arith.addf %125, %124 : vector<8x16xf32>
    %127 = arith.divf %125, %126 : vector<8x16xf32>
    %128 = arith.mulf %119, %98 : vector<8x16xf32>
    %129 = arith.mulf %113, %121 : vector<8x16xf32>
    %130 = arith.addf %128, %129 : vector<8x16xf32>
    %131 = math.tanh %130 : vector<8x16xf32>
    %132 = arith.mulf %127, %131 : vector<8x16xf32>
    %c0_35 = arith.constant 0 : index
    %c0_36 = arith.constant 0 : index
    %133 = vector.load %arg4[%c0_35, %c0_36] : memref<8x16xf32, #tpu.memory_space<vmem>>, vector<8x16xf32>
    tpu.vector_store %arg4[%c0_35, %c0_36], %132 {strides = array<i32>} : memref<8x16xf32, #tpu.memory_space<vmem>>, vector<8x16xf32>,
    return
  }
}

module attributes {stable_mosaic.version = 11 : i64} {
  func.func @_lstm_encoder_kernel(%arg0: memref<2x4x16xf32, #tpu.memory_space<vmem>>, %arg1: memref<16x128xf32, #tpu.memory_space<vmem>>, %arg2: memref<32x128xf32, #tpu.memory_space<vmem>>, %arg3: memref<1x128xf32, #tpu.memory_space<vmem>>, %arg4: memref<4x32xf32, #tpu.memory_space<vmem>>) attributes {dimension_semantics = [], scalar_prefetch = 0 : i64, scratch_operands = 0 : i64, tpu.core_type = #tpu.core_type<tc>} {
    %c0 = arith.constant 0 : index
    %c0_0 = arith.constant 0 : index
    %0 = vector.load %arg1[%c0, %c0_0] : memref<16x128xf32, #tpu.memory_space<vmem>>, vector<16x128xf32>
    %c0_1 = arith.constant 0 : index
    %c0_2 = arith.constant 0 : index
    %1 = vector.load %arg2[%c0_1, %c0_2] : memref<32x128xf32, #tpu.memory_space<vmem>>, vector<32x128xf32>
    %c0_3 = arith.constant 0 : index
    %c0_4 = arith.constant 0 : index
    %2 = vector.load %arg3[%c0_3, %c0_4] : memref<1x128xf32, #tpu.memory_space<vmem>>, vector<1x128xf32>
    %cst = arith.constant 0.000000e+00 : f32
    %3 = vector.broadcast %cst : f32 to vector<4x32xf32>
    %cst_5 = arith.constant 0.000000e+00 : f32
    %4 = vector.broadcast %cst_5 : f32 to vector<4x32xf32>
    %c0_6 = arith.constant 0 : index
    %c0_7 = arith.constant 0 : index
    %c0_8 = arith.constant 0 : index
    %5 = vector.load %arg0[%c0_6, %c0_7, %c0_8] : memref<2x4x16xf32, #tpu.memory_space<vmem>>, vector<1x4x16xf32>
    %6 = vector.shape_cast %5 : vector<1x4x16xf32> to vector<4x16xf32>
    %cst_9 = arith.constant dense<0.000000e+00> : vector<4x128xf32>
    %7 = tpu.matmul %6, %0, %cst_9 {dimension_numbers = #tpu.dot_dimension_numbers<[1], [0], [0], [1], [0, 0, 1, 1], [], []>} : vector<4x16xf32>, vector<16x128xf32>, vector<4x128xf32> -> vector<4x128xf32>
    %cst_10 = arith.constant dense<0.000000e+00> : vector<4x128xf32>
    %8 = tpu.matmul %3, %1, %cst_10 {dimension_numbers = #tpu.dot_dimension_numbers<[1], [0], [0], [1], [0, 0, 1, 1], [], []>} : vector<4x32xf32>, vector<32x128xf32>, vector<4x128xf32> -> vector<4x128xf32>
    %9 = arith.addf %7, %8 : vector<4x128xf32>
    %10 = vector.broadcast %2 : vector<1x128xf32> to vector<4x128xf32>
    %11 = arith.addf %9, %10 : vector<4x128xf32>
    %12 = vector.extract_strided_slice %11 {offsets = [0, 0], sizes = [4, 32], strides = [1, 1]} : vector<4x128xf32> to vector<4x32xf32>
    %13 = arith.negf %12 : vector<4x32xf32>
    %14 = math.exp %13 : vector<4x32xf32>
    %cst_11 = arith.constant 1.000000e+00 : f32
    %15 = vector.broadcast %cst_11 : f32 to vector<4x32xf32>
    %16 = arith.addf %15, %14 : vector<4x32xf32>
    %17 = arith.divf %15, %16 : vector<4x32xf32>
    %18 = vector.extract_strided_slice %11 {offsets = [0, 32], sizes = [4, 32], strides = [1, 1]} : vector<4x128xf32> to vector<4x32xf32>
    %19 = arith.negf %18 : vector<4x32xf32>
    %20 = math.exp %19 : vector<4x32xf32>
    %cst_12 = arith.constant 1.000000e+00 : f32
    %21 = vector.broadcast %cst_12 : f32 to vector<4x32xf32>
    %22 = arith.addf %21, %20 : vector<4x32xf32>
    %23 = arith.divf %21, %22 : vector<4x32xf32>
    %24 = vector.extract_strided_slice %11 {offsets = [0, 64], sizes = [4, 32], strides = [1, 1]} : vector<4x128xf32> to vector<4x32xf32>
    %25 = math.tanh %24 : vector<4x32xf32>
    %26 = vector.extract_strided_slice %11 {offsets = [0, 96], sizes = [4, 32], strides = [1, 1]} : vector<4x128xf32> to vector<4x32xf32>
    %27 = arith.negf %26 : vector<4x32xf32>
    %28 = math.exp %27 : vector<4x32xf32>
    %cst_13 = arith.constant 1.000000e+00 : f32
    %29 = vector.broadcast %cst_13 : f32 to vector<4x32xf32>
    %30 = arith.addf %29, %28 : vector<4x32xf32>
    %31 = arith.divf %29, %30 : vector<4x32xf32>
    %32 = arith.mulf %23, %4 : vector<4x32xf32>
    %33 = arith.mulf %17, %25 : vector<4x32xf32>
    %34 = arith.addf %32, %33 : vector<4x32xf32>
    %35 = math.tanh %34 : vector<4x32xf32>
    %36 = arith.mulf %31, %35 : vector<4x32xf32>
    %c1 = arith.constant 1 : index
    %c0_14 = arith.constant 0 : index
    %c0_15 = arith.constant 0 : index
    %37 = vector.load %arg0[%c1, %c0_14, %c0_15] : memref<2x4x16xf32, #tpu.memory_space<vmem>>, vector<1x4x16xf32>
    %38 = vector.shape_cast %37 : vector<1x4x16xf32> to vector<4x16xf32>
    %cst_16 = arith.constant dense<0.000000e+00> : vector<4x128xf32>
    %39 = tpu.matmul %38, %0, %cst_16 {dimension_numbers = #tpu.dot_dimension_numbers<[1], [0], [0], [1], [0, 0, 1, 1], [], []>} : vector<4x16xf32>, vector<16x128xf32>, vector<4x128xf32> -> vector<4x128xf32>
    %cst_17 = arith.constant dense<0.000000e+00> : vector<4x128xf32>
    %40 = tpu.matmul %36, %1, %cst_17 {dimension_numbers = #tpu.dot_dimension_numbers<[1], [0], [0], [1], [0, 0, 1, 1], [], []>} : vector<4x32xf32>, vector<32x128xf32>, vector<4x128xf32> -> vector<4x128xf32>
    %41 = arith.addf %39, %40 : vector<4x128xf32>
    %42 = vector.broadcast %2 : vector<1x128xf32> to vector<4x128xf32>
    %43 = arith.addf %41, %42 : vector<4x128xf32>
    %44 = vector.extract_strided_slice %43 {offsets = [0, 0], sizes = [4, 32], strides = [1, 1]} : vector<4x128xf32> to vector<4x32xf32>
    %45 = arith.negf %44 : vector<4x32xf32>
    %46 = math.exp %45 : vector<4x32xf32>
    %cst_18 = arith.constant 1.000000e+00 : f32
    %47 = vector.broadcast %cst_18 : f32 to vector<4x32xf32>
    %48 = arith.addf %47, %46 : vector<4x32xf32>
    %49 = arith.divf %47, %48 : vector<4x32xf32>
    %50 = vector.extract_strided_slice %43 {offsets = [0, 32], sizes = [4, 32], strides = [1, 1]} : vector<4x128xf32> to vector<4x32xf32>
    %51 = arith.negf %50 : vector<4x32xf32>
    %52 = math.exp %51 : vector<4x32xf32>
    %cst_19 = arith.constant 1.000000e+00 : f32
    %53 = vector.broadcast %cst_19 : f32 to vector<4x32xf32>
    %54 = arith.addf %53, %52 : vector<4x32xf32>
    %55 = arith.divf %53, %54 : vector<4x32xf32>
    %56 = vector.extract_strided_slice %43 {offsets = [0, 64], sizes = [4, 32], strides = [1, 1]} : vector<4x128xf32> to vector<4x32xf32>
    %57 = math.tanh %56 : vector<4x32xf32>
    %58 = vector.extract_strided_slice %43 {offsets = [0, 96], sizes = [4, 32], strides = [1, 1]} : vector<4x128xf32> to vector<4x32xf32>
    %59 = arith.negf %58 : vector<4x32xf32>
    %60 = math.exp %59 : vector<4x32xf32>
    %cst_20 = arith.constant 1.000000e+00 : f32
    %61 = vector.broadcast %cst_20 : f32 to vector<4x32xf32>
    %62 = arith.addf %61, %60 : vector<4x32xf32>
    %63 = arith.divf %61, %62 : vector<4x32xf32>
    %64 = arith.mulf %55, %34 : vector<4x32xf32>
    %65 = arith.mulf %49, %57 : vector<4x32xf32>
    %66 = arith.addf %64, %65 : vector<4x32xf32>
    %67 = math.tanh %66 : vector<4x32xf32>
    %68 = arith.mulf %63, %67 : vector<4x32xf32>
    %c0_21 = arith.constant 0 : index
    %c0_22 = arith.constant 0 : index
    %69 = vector.load %arg4[%c0_21, %c0_22] : memref<4x32xf32, #tpu.memory_space<vmem>>, vector<4x32xf32>
    tpu.vector_store %arg4[%c0_21, %c0_22], %68 {strides = array<i32>} : memref<4x32xf32, #tpu.memory_space<vmem>>, vector<4x32xf32>,
    return
  }
}

module attributes {stable_mosaic.version = 11 : i64} {
  func.func @_lstm_decoder_tf_kernel(%arg0: memref<2x4x16xf32, #tpu.memory_space<vmem>>, %arg1: memref<4x32xf32, #tpu.memory_space<vmem>>, %arg2: memref<16x128xf32, #tpu.memory_space<vmem>>, %arg3: memref<32x128xf32, #tpu.memory_space<vmem>>, %arg4: memref<1x128xf32, #tpu.memory_space<vmem>>, %arg5: memref<32x16xf32, #tpu.memory_space<vmem>>, %arg6: memref<1x16xf32, #tpu.memory_space<vmem>>, %arg7: memref<2x4x16xf32, #tpu.memory_space<vmem>>) attributes {dimension_semantics = [], scalar_prefetch = 0 : i64, scratch_operands = 0 : i64, tpu.core_type = #tpu.core_type<tc>} {
    %c0 = arith.constant 0 : index
    %c0_0 = arith.constant 0 : index
    %0 = vector.load %arg2[%c0, %c0_0] : memref<16x128xf32, #tpu.memory_space<vmem>>, vector<16x128xf32>
    %c0_1 = arith.constant 0 : index
    %c0_2 = arith.constant 0 : index
    %1 = vector.load %arg3[%c0_1, %c0_2] : memref<32x128xf32, #tpu.memory_space<vmem>>, vector<32x128xf32>
    %c0_3 = arith.constant 0 : index
    %c0_4 = arith.constant 0 : index
    %2 = vector.load %arg4[%c0_3, %c0_4] : memref<1x128xf32, #tpu.memory_space<vmem>>, vector<1x128xf32>
    %c0_5 = arith.constant 0 : index
    %c0_6 = arith.constant 0 : index
    %3 = vector.load %arg5[%c0_5, %c0_6] : memref<32x16xf32, #tpu.memory_space<vmem>>, vector<32x16xf32>
    %c0_7 = arith.constant 0 : index
    %c0_8 = arith.constant 0 : index
    %4 = vector.load %arg6[%c0_7, %c0_8] : memref<1x16xf32, #tpu.memory_space<vmem>>, vector<1x16xf32>
    %c0_9 = arith.constant 0 : index
    %c0_10 = arith.constant 0 : index
    %5 = vector.load %arg1[%c0_9, %c0_10] : memref<4x32xf32, #tpu.memory_space<vmem>>, vector<4x32xf32>
    %cst = arith.constant 0.000000e+00 : f32
    %6 = vector.broadcast %cst : f32 to vector<4x32xf32>
    %c0_11 = arith.constant 0 : index
    %c0_12 = arith.constant 0 : index
    %c0_13 = arith.constant 0 : index
    %7 = vector.load %arg0[%c0_11, %c0_12, %c0_13] : memref<2x4x16xf32, #tpu.memory_space<vmem>>, vector<1x4x16xf32>
    %8 = vector.shape_cast %7 : vector<1x4x16xf32> to vector<4x16xf32>
    %cst_14 = arith.constant dense<0.000000e+00> : vector<4x128xf32>
    %9 = tpu.matmul %8, %0, %cst_14 {dimension_numbers = #tpu.dot_dimension_numbers<[1], [0], [0], [1], [0, 0, 1, 1], [], []>} : vector<4x16xf32>, vector<16x128xf32>, vector<4x128xf32> -> vector<4x128xf32>
    %cst_15 = arith.constant dense<0.000000e+00> : vector<4x128xf32>
    %10 = tpu.matmul %5, %1, %cst_15 {dimension_numbers = #tpu.dot_dimension_numbers<[1], [0], [0], [1], [0, 0, 1, 1], [], []>} : vector<4x32xf32>, vector<32x128xf32>, vector<4x128xf32> -> vector<4x128xf32>
    %11 = arith.addf %9, %10 : vector<4x128xf32>
    %12 = vector.broadcast %2 : vector<1x128xf32> to vector<4x128xf32>
    %13 = arith.addf %11, %12 : vector<4x128xf32>
    %14 = vector.extract_strided_slice %13 {offsets = [0, 0], sizes = [4, 32], strides = [1, 1]} : vector<4x128xf32> to vector<4x32xf32>
    %15 = arith.negf %14 : vector<4x32xf32>
    %16 = math.exp %15 : vector<4x32xf32>
    %cst_16 = arith.constant 1.000000e+00 : f32
    %17 = vector.broadcast %cst_16 : f32 to vector<4x32xf32>
    %18 = arith.addf %17, %16 : vector<4x32xf32>
    %19 = arith.divf %17, %18 : vector<4x32xf32>
    %20 = vector.extract_strided_slice %13 {offsets = [0, 32], sizes = [4, 32], strides = [1, 1]} : vector<4x128xf32> to vector<4x32xf32>
    %21 = arith.negf %20 : vector<4x32xf32>
    %22 = math.exp %21 : vector<4x32xf32>
    %cst_17 = arith.constant 1.000000e+00 : f32
    %23 = vector.broadcast %cst_17 : f32 to vector<4x32xf32>
    %24 = arith.addf %23, %22 : vector<4x32xf32>
    %25 = arith.divf %23, %24 : vector<4x32xf32>
    %26 = vector.extract_strided_slice %13 {offsets = [0, 64], sizes = [4, 32], strides = [1, 1]} : vector<4x128xf32> to vector<4x32xf32>
    %27 = math.tanh %26 : vector<4x32xf32>
    %28 = vector.extract_strided_slice %13 {offsets = [0, 96], sizes = [4, 32], strides = [1, 1]} : vector<4x128xf32> to vector<4x32xf32>
    %29 = arith.negf %28 : vector<4x32xf32>
    %30 = math.exp %29 : vector<4x32xf32>
    %cst_18 = arith.constant 1.000000e+00 : f32
    %31 = vector.broadcast %cst_18 : f32 to vector<4x32xf32>
    %32 = arith.addf %31, %30 : vector<4x32xf32>
    %33 = arith.divf %31, %32 : vector<4x32xf32>
    %34 = arith.mulf %25, %6 : vector<4x32xf32>
    %35 = arith.mulf %19, %27 : vector<4x32xf32>
    %36 = arith.addf %34, %35 : vector<4x32xf32>
    %37 = math.tanh %36 : vector<4x32xf32>
    %38 = arith.mulf %33, %37 : vector<4x32xf32>
    %cst_19 = arith.constant dense<0.000000e+00> : vector<4x16xf32>
    %39 = tpu.matmul %38, %3, %cst_19 {dimension_numbers = #tpu.dot_dimension_numbers<[1], [0], [0], [1], [0, 0, 1, 1], [], []>} : vector<4x32xf32>, vector<32x16xf32>, vector<4x16xf32> -> vector<4x16xf32>
    %40 = vector.broadcast %4 : vector<1x16xf32> to vector<4x16xf32>
    %41 = arith.addf %39, %40 : vector<4x16xf32>
    %c0_20 = arith.constant 0 : index
    %c0_21 = arith.constant 0 : index
    %c0_22 = arith.constant 0 : index
    %42 = vector.load %arg7[%c0_20, %c0_21, %c0_22] : memref<2x4x16xf32, #tpu.memory_space<vmem>>, vector<1x4x16xf32>
    %43 = vector.shape_cast %42 : vector<1x4x16xf32> to vector<4x16xf32>
    %44 = vector.shape_cast %41 : vector<4x16xf32> to vector<1x4x16xf32>
    tpu.vector_store %arg7[%c0_20, %c0_21, %c0_22], %44 {strides = array<i32>} : memref<2x4x16xf32, #tpu.memory_space<vmem>>, vector<1x4x16xf32>,
    %c1 = arith.constant 1 : index
    %c0_23 = arith.constant 0 : index
    %c0_24 = arith.constant 0 : index
    %45 = vector.load %arg0[%c1, %c0_23, %c0_24] : memref<2x4x16xf32, #tpu.memory_space<vmem>>, vector<1x4x16xf32>
    %46 = vector.shape_cast %45 : vector<1x4x16xf32> to vector<4x16xf32>
    %cst_25 = arith.constant dense<0.000000e+00> : vector<4x128xf32>
    %47 = tpu.matmul %46, %0, %cst_25 {dimension_numbers = #tpu.dot_dimension_numbers<[1], [0], [0], [1], [0, 0, 1, 1], [], []>} : vector<4x16xf32>, vector<16x128xf32>, vector<4x128xf32> -> vector<4x128xf32>
    %cst_26 = arith.constant dense<0.000000e+00> : vector<4x128xf32>
    %48 = tpu.matmul %38, %1, %cst_26 {dimension_numbers = #tpu.dot_dimension_numbers<[1], [0], [0], [1], [0, 0, 1, 1], [], []>} : vector<4x32xf32>, vector<32x128xf32>, vector<4x128xf32> -> vector<4x128xf32>
    %49 = arith.addf %47, %48 : vector<4x128xf32>
    %50 = vector.broadcast %2 : vector<1x128xf32> to vector<4x128xf32>
    %51 = arith.addf %49, %50 : vector<4x128xf32>
    %52 = vector.extract_strided_slice %51 {offsets = [0, 0], sizes = [4, 32], strides = [1, 1]} : vector<4x128xf32> to vector<4x32xf32>
    %53 = arith.negf %52 : vector<4x32xf32>
    %54 = math.exp %53 : vector<4x32xf32>
    %cst_27 = arith.constant 1.000000e+00 : f32
    %55 = vector.broadcast %cst_27 : f32 to vector<4x32xf32>
    %56 = arith.addf %55, %54 : vector<4x32xf32>
    %57 = arith.divf %55, %56 : vector<4x32xf32>
    %58 = vector.extract_strided_slice %51 {offsets = [0, 32], sizes = [4, 32], strides = [1, 1]} : vector<4x128xf32> to vector<4x32xf32>
    %59 = arith.negf %58 : vector<4x32xf32>
    %60 = math.exp %59 : vector<4x32xf32>
    %cst_28 = arith.constant 1.000000e+00 : f32
    %61 = vector.broadcast %cst_28 : f32 to vector<4x32xf32>
    %62 = arith.addf %61, %60 : vector<4x32xf32>
    %63 = arith.divf %61, %62 : vector<4x32xf32>
    %64 = vector.extract_strided_slice %51 {offsets = [0, 64], sizes = [4, 32], strides = [1, 1]} : vector<4x128xf32> to vector<4x32xf32>
    %65 = math.tanh %64 : vector<4x32xf32>
    %66 = vector.extract_strided_slice %51 {offsets = [0, 96], sizes = [4, 32], strides = [1, 1]} : vector<4x128xf32> to vector<4x32xf32>
    %67 = arith.negf %66 : vector<4x32xf32>
    %68 = math.exp %67 : vector<4x32xf32>
    %cst_29 = arith.constant 1.000000e+00 : f32
    %69 = vector.broadcast %cst_29 : f32 to vector<4x32xf32>
    %70 = arith.addf %69, %68 : vector<4x32xf32>
    %71 = arith.divf %69, %70 : vector<4x32xf32>
    %72 = arith.mulf %63, %36 : vector<4x32xf32>
    %73 = arith.mulf %57, %65 : vector<4x32xf32>
    %74 = arith.addf %72, %73 : vector<4x32xf32>
    %75 = math.tanh %74 : vector<4x32xf32>
    %76 = arith.mulf %71, %75 : vector<4x32xf32>
    %cst_30 = arith.constant dense<0.000000e+00> : vector<4x16xf32>
    %77 = tpu.matmul %76, %3, %cst_30 {dimension_numbers = #tpu.dot_dimension_numbers<[1], [0], [0], [1], [0, 0, 1, 1], [], []>} : vector<4x32xf32>, vector<32x16xf32>, vector<4x16xf32> -> vector<4x16xf32>
    %78 = vector.broadcast %4 : vector<1x16xf32> to vector<4x16xf32>
    %79 = arith.addf %77, %78 : vector<4x16xf32>
    %c1_31 = arith.constant 1 : index
    %c0_32 = arith.constant 0 : index
    %c0_33 = arith.constant 0 : index
    %80 = vector.load %arg7[%c1_31, %c0_32, %c0_33] : memref<2x4x16xf32, #tpu.memory_space<vmem>>, vector<1x4x16xf32>
    %81 = vector.shape_cast %80 : vector<1x4x16xf32> to vector<4x16xf32>
    %82 = vector.shape_cast %79 : vector<4x16xf32> to vector<1x4x16xf32>
    tpu.vector_store %arg7[%c1_31, %c0_32, %c0_33], %82 {strides = array<i32>} : memref<2x4x16xf32, #tpu.memory_space<vmem>>, vector<1x4x16xf32>,
    return
  }
}

module attributes {stable_mosaic.version = 11 : i64} {
  func.func @_lstm_decoder_tf_kernel(%arg0: memref<4x8x8xf32, #tpu.memory_space<vmem>>, %arg1: memref<8x16xf32, #tpu.memory_space<vmem>>, %arg2: memref<8x64xf32, #tpu.memory_space<vmem>>, %arg3: memref<16x64xf32, #tpu.memory_space<vmem>>, %arg4: memref<1x64xf32, #tpu.memory_space<vmem>>, %arg5: memref<16x8xf32, #tpu.memory_space<vmem>>, %arg6: memref<1x8xf32, #tpu.memory_space<vmem>>, %arg7: memref<4x8x8xf32, #tpu.memory_space<vmem>>) attributes {dimension_semantics = [], scalar_prefetch = 0 : i64, scratch_operands = 0 : i64, tpu.core_type = #tpu.core_type<tc>} {
    %c0 = arith.constant 0 : index
    %c0_0 = arith.constant 0 : index
    %0 = vector.load %arg2[%c0, %c0_0] : memref<8x64xf32, #tpu.memory_space<vmem>>, vector<8x64xf32>
    %c0_1 = arith.constant 0 : index
    %c0_2 = arith.constant 0 : index
    %1 = vector.load %arg3[%c0_1, %c0_2] : memref<16x64xf32, #tpu.memory_space<vmem>>, vector<16x64xf32>
    %c0_3 = arith.constant 0 : index
    %c0_4 = arith.constant 0 : index
    %2 = vector.load %arg4[%c0_3, %c0_4] : memref<1x64xf32, #tpu.memory_space<vmem>>, vector<1x64xf32>
    %c0_5 = arith.constant 0 : index
    %c0_6 = arith.constant 0 : index
    %3 = vector.load %arg5[%c0_5, %c0_6] : memref<16x8xf32, #tpu.memory_space<vmem>>, vector<16x8xf32>
    %c0_7 = arith.constant 0 : index
    %c0_8 = arith.constant 0 : index
    %4 = vector.load %arg6[%c0_7, %c0_8] : memref<1x8xf32, #tpu.memory_space<vmem>>, vector<1x8xf32>
    %c0_9 = arith.constant 0 : index
    %c0_10 = arith.constant 0 : index
    %5 = vector.load %arg1[%c0_9, %c0_10] : memref<8x16xf32, #tpu.memory_space<vmem>>, vector<8x16xf32>
    %cst = arith.constant 0.000000e+00 : f32
    %6 = vector.broadcast %cst : f32 to vector<8x16xf32>
    %c0_11 = arith.constant 0 : index
    %c0_12 = arith.constant 0 : index
    %c0_13 = arith.constant 0 : index
    %7 = vector.load %arg0[%c0_11, %c0_12, %c0_13] : memref<4x8x8xf32, #tpu.memory_space<vmem>>, vector<1x8x8xf32>
    %8 = vector.shape_cast %7 : vector<1x8x8xf32> to vector<8x8xf32>
    %cst_14 = arith.constant dense<0.000000e+00> : vector<8x64xf32>
    %9 = tpu.matmul %8, %0, %cst_14 {dimension_numbers = #tpu.dot_dimension_numbers<[1], [0], [0], [1], [0, 0, 1, 1], [], []>} : vector<8x8xf32>, vector<8x64xf32>, vector<8x64xf32> -> vector<8x64xf32>
    %cst_15 = arith.constant dense<0.000000e+00> : vector<8x64xf32>
    %10 = tpu.matmul %5, %1, %cst_15 {dimension_numbers = #tpu.dot_dimension_numbers<[1], [0], [0], [1], [0, 0, 1, 1], [], []>} : vector<8x16xf32>, vector<16x64xf32>, vector<8x64xf32> -> vector<8x64xf32>
    %11 = arith.addf %9, %10 : vector<8x64xf32>
    %12 = vector.broadcast %2 : vector<1x64xf32> to vector<8x64xf32>
    %13 = arith.addf %11, %12 : vector<8x64xf32>
    %14 = vector.extract_strided_slice %13 {offsets = [0, 0], sizes = [8, 16], strides = [1, 1]} : vector<8x64xf32> to vector<8x16xf32>
    %15 = arith.negf %14 : vector<8x16xf32>
    %16 = math.exp %15 : vector<8x16xf32>
    %cst_16 = arith.constant 1.000000e+00 : f32
    %17 = vector.broadcast %cst_16 : f32 to vector<8x16xf32>
    %18 = arith.addf %17, %16 : vector<8x16xf32>
    %19 = arith.divf %17, %18 : vector<8x16xf32>
    %20 = vector.extract_strided_slice %13 {offsets = [0, 16], sizes = [8, 16], strides = [1, 1]} : vector<8x64xf32> to vector<8x16xf32>
    %21 = arith.negf %20 : vector<8x16xf32>
    %22 = math.exp %21 : vector<8x16xf32>
    %cst_17 = arith.constant 1.000000e+00 : f32
    %23 = vector.broadcast %cst_17 : f32 to vector<8x16xf32>
    %24 = arith.addf %23, %22 : vector<8x16xf32>
    %25 = arith.divf %23, %24 : vector<8x16xf32>
    %26 = vector.extract_strided_slice %13 {offsets = [0, 32], sizes = [8, 16], strides = [1, 1]} : vector<8x64xf32> to vector<8x16xf32>
    %27 = math.tanh %26 : vector<8x16xf32>
    %28 = vector.extract_strided_slice %13 {offsets = [0, 48], sizes = [8, 16], strides = [1, 1]} : vector<8x64xf32> to vector<8x16xf32>
    %29 = arith.negf %28 : vector<8x16xf32>
    %30 = math.exp %29 : vector<8x16xf32>
    %cst_18 = arith.constant 1.000000e+00 : f32
    %31 = vector.broadcast %cst_18 : f32 to vector<8x16xf32>
    %32 = arith.addf %31, %30 : vector<8x16xf32>
    %33 = arith.divf %31, %32 : vector<8x16xf32>
    %34 = arith.mulf %25, %6 : vector<8x16xf32>
    %35 = arith.mulf %19, %27 : vector<8x16xf32>
    %36 = arith.addf %34, %35 : vector<8x16xf32>
    %37 = math.tanh %36 : vector<8x16xf32>
    %38 = arith.mulf %33, %37 : vector<8x16xf32>
    %cst_19 = arith.constant dense<0.000000e+00> : vector<8x8xf32>
    %39 = tpu.matmul %38, %3, %cst_19 {dimension_numbers = #tpu.dot_dimension_numbers<[1], [0], [0], [1], [0, 0, 1, 1], [], []>} : vector<8x16xf32>, vector<16x8xf32>, vector<8x8xf32> -> vector<8x8xf32>
    %40 = vector.broadcast %4 : vector<1x8xf32> to vector<8x8xf32>
    %41 = arith.addf %39, %40 : vector<8x8xf32>
    %c0_20 = arith.constant 0 : index
    %c0_21 = arith.constant 0 : index
    %c0_22 = arith.constant 0 : index
    %42 = vector.load %arg7[%c0_20, %c0_21, %c0_22] : memref<4x8x8xf32, #tpu.memory_space<vmem>>, vector<1x8x8xf32>
    %43 = vector.shape_cast %42 : vector<1x8x8xf32> to vector<8x8xf32>
    %44 = vector.shape_cast %41 : vector<8x8xf32> to vector<1x8x8xf32>
    tpu.vector_store %arg7[%c0_20, %c0_21, %c0_22], %44 {strides = array<i32>} : memref<4x8x8xf32, #tpu.memory_space<vmem>>, vector<1x8x8xf32>,
    %c1 = arith.constant 1 : index
    %c0_23 = arith.constant 0 : index
    %c0_24 = arith.constant 0 : index
    %45 = vector.load %arg0[%c1, %c0_23, %c0_24] : memref<4x8x8xf32, #tpu.memory_space<vmem>>, vector<1x8x8xf32>
    %46 = vector.shape_cast %45 : vector<1x8x8xf32> to vector<8x8xf32>
    %cst_25 = arith.constant dense<0.000000e+00> : vector<8x64xf32>
    %47 = tpu.matmul %46, %0, %cst_25 {dimension_numbers = #tpu.dot_dimension_numbers<[1], [0], [0], [1], [0, 0, 1, 1], [], []>} : vector<8x8xf32>, vector<8x64xf32>, vector<8x64xf32> -> vector<8x64xf32>
    %cst_26 = arith.constant dense<0.000000e+00> : vector<8x64xf32>
    %48 = tpu.matmul %38, %1, %cst_26 {dimension_numbers = #tpu.dot_dimension_numbers<[1], [0], [0], [1], [0, 0, 1, 1], [], []>} : vector<8x16xf32>, vector<16x64xf32>, vector<8x64xf32> -> vector<8x64xf32>
    %49 = arith.addf %47, %48 : vector<8x64xf32>
    %50 = vector.broadcast %2 : vector<1x64xf32> to vector<8x64xf32>
    %51 = arith.addf %49, %50 : vector<8x64xf32>
    %52 = vector.extract_strided_slice %51 {offsets = [0, 0], sizes = [8, 16], strides = [1, 1]} : vector<8x64xf32> to vector<8x16xf32>
    %53 = arith.negf %52 : vector<8x16xf32>
    %54 = math.exp %53 : vector<8x16xf32>
    %cst_27 = arith.constant 1.000000e+00 : f32
    %55 = vector.broadcast %cst_27 : f32 to vector<8x16xf32>
    %56 = arith.addf %55, %54 : vector<8x16xf32>
    %57 = arith.divf %55, %56 : vector<8x16xf32>
    %58 = vector.extract_strided_slice %51 {offsets = [0, 16], sizes = [8, 16], strides = [1, 1]} : vector<8x64xf32> to vector<8x16xf32>
    %59 = arith.negf %58 : vector<8x16xf32>
    %60 = math.exp %59 : vector<8x16xf32>
    %cst_28 = arith.constant 1.000000e+00 : f32
    %61 = vector.broadcast %cst_28 : f32 to vector<8x16xf32>
    %62 = arith.addf %61, %60 : vector<8x16xf32>
    %63 = arith.divf %61, %62 : vector<8x16xf32>
    %64 = vector.extract_strided_slice %51 {offsets = [0, 32], sizes = [8, 16], strides = [1, 1]} : vector<8x64xf32> to vector<8x16xf32>
    %65 = math.tanh %64 : vector<8x16xf32>
    %66 = vector.extract_strided_slice %51 {offsets = [0, 48], sizes = [8, 16], strides = [1, 1]} : vector<8x64xf32> to vector<8x16xf32>
    %67 = arith.negf %66 : vector<8x16xf32>
    %68 = math.exp %67 : vector<8x16xf32>
    %cst_29 = arith.constant 1.000000e+00 : f32
    %69 = vector.broadcast %cst_29 : f32 to vector<8x16xf32>
    %70 = arith.addf %69, %68 : vector<8x16xf32>
    %71 = arith.divf %69, %70 : vector<8x16xf32>
    %72 = arith.mulf %63, %36 : vector<8x16xf32>
    %73 = arith.mulf %57, %65 : vector<8x16xf32>
    %74 = arith.addf %72, %73 : vector<8x16xf32>
    %75 = math.tanh %74 : vector<8x16xf32>
    %76 = arith.mulf %71, %75 : vector<8x16xf32>
    %cst_30 = arith.constant dense<0.000000e+00> : vector<8x8xf32>
    %77 = tpu.matmul %76, %3, %cst_30 {dimension_numbers = #tpu.dot_dimension_numbers<[1], [0], [0], [1], [0, 0, 1, 1], [], []>} : vector<8x16xf32>, vector<16x8xf32>, vector<8x8xf32> -> vector<8x8xf32>
    %78 = vector.broadcast %4 : vector<1x8xf32> to vector<8x8xf32>
    %79 = arith.addf %77, %78 : vector<8x8xf32>
    %c1_31 = arith.constant 1 : index
    %c0_32 = arith.constant 0 : index
    %c0_33 = arith.constant 0 : index
    %80 = vector.load %arg7[%c1_31, %c0_32, %c0_33] : memref<4x8x8xf32, #tpu.memory_space<vmem>>, vector<1x8x8xf32>
    %81 = vector.shape_cast %80 : vector<1x8x8xf32> to vector<8x8xf32>
    %82 = vector.shape_cast %79 : vector<8x8xf32> to vector<1x8x8xf32>
    tpu.vector_store %arg7[%c1_31, %c0_32, %c0_33], %82 {strides = array<i32>} : memref<4x8x8xf32, #tpu.memory_space<vmem>>, vector<1x8x8xf32>,
    %c2 = arith.constant 2 : index
    %c0_34 = arith.constant 0 : index
    %c0_35 = arith.constant 0 : index
    %83 = vector.load %arg0[%c2, %c0_34, %c0_35] : memref<4x8x8xf32, #tpu.memory_space<vmem>>, vector<1x8x8xf32>
    %84 = vector.shape_cast %83 : vector<1x8x8xf32> to vector<8x8xf32>
    %cst_36 = arith.constant dense<0.000000e+00> : vector<8x64xf32>
    %85 = tpu.matmul %84, %0, %cst_36 {dimension_numbers = #tpu.dot_dimension_numbers<[1], [0], [0], [1], [0, 0, 1, 1], [], []>} : vector<8x8xf32>, vector<8x64xf32>, vector<8x64xf32> -> vector<8x64xf32>
    %cst_37 = arith.constant dense<0.000000e+00> : vector<8x64xf32>
    %86 = tpu.matmul %76, %1, %cst_37 {dimension_numbers = #tpu.dot_dimension_numbers<[1], [0], [0], [1], [0, 0, 1, 1], [], []>} : vector<8x16xf32>, vector<16x64xf32>, vector<8x64xf32> -> vector<8x64xf32>
    %87 = arith.addf %85, %86 : vector<8x64xf32>
    %88 = vector.broadcast %2 : vector<1x64xf32> to vector<8x64xf32>
    %89 = arith.addf %87, %88 : vector<8x64xf32>
    %90 = vector.extract_strided_slice %89 {offsets = [0, 0], sizes = [8, 16], strides = [1, 1]} : vector<8x64xf32> to vector<8x16xf32>
    %91 = arith.negf %90 : vector<8x16xf32>
    %92 = math.exp %91 : vector<8x16xf32>
    %cst_38 = arith.constant 1.000000e+00 : f32
    %93 = vector.broadcast %cst_38 : f32 to vector<8x16xf32>
    %94 = arith.addf %93, %92 : vector<8x16xf32>
    %95 = arith.divf %93, %94 : vector<8x16xf32>
    %96 = vector.extract_strided_slice %89 {offsets = [0, 16], sizes = [8, 16], strides = [1, 1]} : vector<8x64xf32> to vector<8x16xf32>
    %97 = arith.negf %96 : vector<8x16xf32>
    %98 = math.exp %97 : vector<8x16xf32>
    %cst_39 = arith.constant 1.000000e+00 : f32
    %99 = vector.broadcast %cst_39 : f32 to vector<8x16xf32>
    %100 = arith.addf %99, %98 : vector<8x16xf32>
    %101 = arith.divf %99, %100 : vector<8x16xf32>
    %102 = vector.extract_strided_slice %89 {offsets = [0, 32], sizes = [8, 16], strides = [1, 1]} : vector<8x64xf32> to vector<8x16xf32>
    %103 = math.tanh %102 : vector<8x16xf32>
    %104 = vector.extract_strided_slice %89 {offsets = [0, 48], sizes = [8, 16], strides = [1, 1]} : vector<8x64xf32> to vector<8x16xf32>
    %105 = arith.negf %104 : vector<8x16xf32>
    %106 = math.exp %105 : vector<8x16xf32>
    %cst_40 = arith.constant 1.000000e+00 : f32
    %107 = vector.broadcast %cst_40 : f32 to vector<8x16xf32>
    %108 = arith.addf %107, %106 : vector<8x16xf32>
    %109 = arith.divf %107, %108 : vector<8x16xf32>
    %110 = arith.mulf %101, %74 : vector<8x16xf32>
    %111 = arith.mulf %95, %103 : vector<8x16xf32>
    %112 = arith.addf %110, %111 : vector<8x16xf32>
    %113 = math.tanh %112 : vector<8x16xf32>
    %114 = arith.mulf %109, %113 : vector<8x16xf32>
    %cst_41 = arith.constant dense<0.000000e+00> : vector<8x8xf32>
    %115 = tpu.matmul %114, %3, %cst_41 {dimension_numbers = #tpu.dot_dimension_numbers<[1], [0], [0], [1], [0, 0, 1, 1], [], []>} : vector<8x16xf32>, vector<16x8xf32>, vector<8x8xf32> -> vector<8x8xf32>
    %116 = vector.broadcast %4 : vector<1x8xf32> to vector<8x8xf32>
    %117 = arith.addf %115, %116 : vector<8x8xf32>
    %c2_42 = arith.constant 2 : index
    %c0_43 = arith.constant 0 : index
    %c0_44 = arith.constant 0 : index
    %118 = vector.load %arg7[%c2_42, %c0_43, %c0_44] : memref<4x8x8xf32, #tpu.memory_space<vmem>>, vector<1x8x8xf32>
    %119 = vector.shape_cast %118 : vector<1x8x8xf32> to vector<8x8xf32>
    %120 = vector.shape_cast %117 : vector<8x8xf32> to vector<1x8x8xf32>
    tpu.vector_store %arg7[%c2_42, %c0_43, %c0_44], %120 {strides = array<i32>} : memref<4x8x8xf32, #tpu.memory_space<vmem>>, vector<1x8x8xf32>,
    %c3 = arith.constant 3 : index
    %c0_45 = arith.constant 0 : index
    %c0_46 = arith.constant 0 : index
    %121 = vector.load %arg0[%c3, %c0_45, %c0_46] : memref<4x8x8xf32, #tpu.memory_space<vmem>>, vector<1x8x8xf32>
    %122 = vector.shape_cast %121 : vector<1x8x8xf32> to vector<8x8xf32>
    %cst_47 = arith.constant dense<0.000000e+00> : vector<8x64xf32>
    %123 = tpu.matmul %122, %0, %cst_47 {dimension_numbers = #tpu.dot_dimension_numbers<[1], [0], [0], [1], [0, 0, 1, 1], [], []>} : vector<8x8xf32>, vector<8x64xf32>, vector<8x64xf32> -> vector<8x64xf32>
    %cst_48 = arith.constant dense<0.000000e+00> : vector<8x64xf32>
    %124 = tpu.matmul %114, %1, %cst_48 {dimension_numbers = #tpu.dot_dimension_numbers<[1], [0], [0], [1], [0, 0, 1, 1], [], []>} : vector<8x16xf32>, vector<16x64xf32>, vector<8x64xf32> -> vector<8x64xf32>
    %125 = arith.addf %123, %124 : vector<8x64xf32>
    %126 = vector.broadcast %2 : vector<1x64xf32> to vector<8x64xf32>
    %127 = arith.addf %125, %126 : vector<8x64xf32>
    %128 = vector.extract_strided_slice %127 {offsets = [0, 0], sizes = [8, 16], strides = [1, 1]} : vector<8x64xf32> to vector<8x16xf32>
    %129 = arith.negf %128 : vector<8x16xf32>
    %130 = math.exp %129 : vector<8x16xf32>
    %cst_49 = arith.constant 1.000000e+00 : f32
    %131 = vector.broadcast %cst_49 : f32 to vector<8x16xf32>
    %132 = arith.addf %131, %130 : vector<8x16xf32>
    %133 = arith.divf %131, %132 : vector<8x16xf32>
    %134 = vector.extract_strided_slice %127 {offsets = [0, 16], sizes = [8, 16], strides = [1, 1]} : vector<8x64xf32> to vector<8x16xf32>
    %135 = arith.negf %134 : vector<8x16xf32>
    %136 = math.exp %135 : vector<8x16xf32>
    %cst_50 = arith.constant 1.000000e+00 : f32
    %137 = vector.broadcast %cst_50 : f32 to vector<8x16xf32>
    %138 = arith.addf %137, %136 : vector<8x16xf32>
    %139 = arith.divf %137, %138 : vector<8x16xf32>
    %140 = vector.extract_strided_slice %127 {offsets = [0, 32], sizes = [8, 16], strides = [1, 1]} : vector<8x64xf32> to vector<8x16xf32>
    %141 = math.tanh %140 : vector<8x16xf32>
    %142 = vector.extract_strided_slice %127 {offsets = [0, 48], sizes = [8, 16], strides = [1, 1]} : vector<8x64xf32> to vector<8x16xf32>
    %143 = arith.negf %142 : vector<8x16xf32>
    %144 = math.exp %143 : vector<8x16xf32>
    %cst_51 = arith.constant 1.000000e+00 : f32
    %145 = vector.broadcast %cst_51 : f32 to vector<8x16xf32>
    %146 = arith.addf %145, %144 : vector<8x16xf32>
    %147 = arith.divf %145, %146 : vector<8x16xf32>
    %148 = arith.mulf %139, %112 : vector<8x16xf32>
    %149 = arith.mulf %133, %141 : vector<8x16xf32>
    %150 = arith.addf %148, %149 : vector<8x16xf32>
    %151 = math.tanh %150 : vector<8x16xf32>
    %152 = arith.mulf %147, %151 : vector<8x16xf32>
    %cst_52 = arith.constant dense<0.000000e+00> : vector<8x8xf32>
    %153 = tpu.matmul %152, %3, %cst_52 {dimension_numbers = #tpu.dot_dimension_numbers<[1], [0], [0], [1], [0, 0, 1, 1], [], []>} : vector<8x16xf32>, vector<16x8xf32>, vector<8x8xf32> -> vector<8x8xf32>
    %154 = vector.broadcast %4 : vector<1x8xf32> to vector<8x8xf32>
    %155 = arith.addf %153, %154 : vector<8x8xf32>
    %c3_53 = arith.constant 3 : index
    %c0_54 = arith.constant 0 : index
    %c0_55 = arith.constant 0 : index
    %156 = vector.load %arg7[%c3_53, %c0_54, %c0_55] : memref<4x8x8xf32, #tpu.memory_space<vmem>>, vector<1x8x8xf32>
    %157 = vector.shape_cast %156 : vector<1x8x8xf32> to vector<8x8xf32>
    %158 = vector.shape_cast %155 : vector<8x8xf32> to vector<1x8x8xf32>
    tpu.vector_store %arg7[%c3_53, %c0_54, %c0_55], %158 {strides = array<i32>} : memref<4x8x8xf32, #tpu.memory_space<vmem>>, vector<1x8x8xf32>,
    return
  }
}

</mosaic_0001>

<llo_original>
// kernel: _lambda_.6
$region0: #{_lambda_.6}
  #allocation0 [shape = 'u32[]', space=smem, size = 0x4, offset = 0x4, fixed_abs, tag = 'smem constant byte address 0x4 - core index']
  #allocation1 [shape = 'u32[144,128]{1,0:T(1,128)}', space=vmem, size = 0x12000, scoped, tag = 'internal scratch']
  %s0 = inlined_call_operand.vmem [shape: f32[2,4,16], index: 0, kind: input, shape index: {}]
  %s1 = inlined_call_operand.vmem [shape: f32[16,128], index: 1, kind: input, shape index: {}]
  %s2 = inlined_call_operand.vmem [shape: f32[32,128], index: 2, kind: input, shape index: {}]
  %s3 = inlined_call_operand.vmem [shape: f32[1,128], index: 3, kind: input, shape index: {}]
  %s4 = inlined_call_operand.vmem [shape: f32[4,32], index: 4, kind: output, shape index: {}]
  %s5 = sld [smem:[#allocation0]]
  $region26: #{_lambda_.6} parent=0
    _
  %s7 = ssub.s32 1, %s5
  %s8 = scalar_select 0, %s7, %s5
  // Predicated region
  $region2: #{_lambda_.6} parent=0 // pred_check
    _
  $region3: #{_lambda_.6} parent=0 // pred_check_branch
    %10 = sbr.rel (0) target = $region5
  $region4: #{_lambda_.6} parent=0 // pred_region
    _
  $region5: #{_lambda_.6} parent=0 // pred_fallthru
    _
  // Predicated region
  $region6: #{_lambda_.6} parent=0 // pred_check
    _
  $region7: #{_lambda_.6} parent=0 // pred_check_branch
    %12 = sbr.rel (0) target = $region9
  $region8: #{_lambda_.6} parent=0 // pred_region
    _
  $region9: #{_lambda_.6} parent=0 // pred_fallthru
    _
  // Predicated region
  $region10: #{_lambda_.6} parent=0 // pred_check
    _
  $region11: #{_lambda_.6} parent=0 // pred_check_branch
    %14 = sbr.rel (0) target = $region13
  $region12: #{_lambda_.6} parent=0 // pred_region
    _
  $region13: #{_lambda_.6} parent=0 // pred_fallthru
    _
  // Predicated region
  $region14: #{_lambda_.6} parent=0 // pred_check
    _
  $region15: #{_lambda_.6} parent=0 // pred_check_branch
    %16 = sbr.rel (0) target = $region17
  $region16: #{_lambda_.6} parent=0 // pred_region
    _
  $region17: #{_lambda_.6} parent=0 // pred_fallthru
    _
  %v17 = vld [vmem:[%s1] sm:$0xff]
  %v18 = vld [vmem:[%s1 + $0x8] sm:$0xff]
  %v19 = vld [vmem:[%s2] sm:$0xff]
  %v20 = vld [vmem:[%s2 + $0x8] sm:$0xff]
  %v21 = vld [vmem:[%s2 + $0x10] sm:$0xff]
  %v22 = vld [vmem:[%s2 + $0x18] sm:$0xff]
  %v23 = vld [vmem:[%s3] sm:$0x1]
  %v24 = vld [vmem:[%s0] sm:$0xf]
  %vm25 = vcmask 261120
  %v27 = vsel %vm25, 0.0, 0
  %29 = vmatprep.subr.mxu0 0.0
  %30 = vmatpush1.msra.mxu0 %v19
  %31 = vmatprep.subr.mxu0 0.0
  %32 = vmatpush1.msra.mxu0 %v20
  %33 = vmatprep.subr.mxu0 0.0
  %34 = vmatpush1.msra.mxu0 %v21
  %35 = vmatprep.subr.mxu0 0.0
  %36 = vmatpush1.msra.mxu0 %v22
  %37 = vmatprep.subr.mxu0 0.0
  %38 = vmatpush1.msra.mxu0 0.0
  %39 = vmatprep.subr.mxu0 0.0
  %40 = vmatpush1.msra.mxu0 0.0
  %41 = vmatprep.subr.mxu0 0.0
  %42 = vmatpush1.msra.mxu0 0.0
  %43 = vmatprep.subr.mxu0 0.0
  %44 = vmatpush1.msra.mxu0 0.0
  %45 = vmatprep.subr.mxu0 0.0
  %46 = vmatpush1.msra.mxu0 0.0
  %47 = vmatprep.subr.mxu0 0.0
  %48 = vmatpush1.msra.mxu0 0.0
  %49 = vmatprep.subr.mxu0 0.0
  %50 = vmatpush1.msra.mxu0 0.0
  %51 = vmatprep.subr.mxu0 0.0
  %52 = vmatpush1.msra.mxu0 0.0
  %53 = vmatprep.subr.mxu0 0.0
  %54 = vmatpush1.msra.mxu0 0.0
  %55 = vmatprep.subr.mxu0 0.0
  %56 = vmatpush1.msra.mxu0 0.0
  %57 = vmatprep.subr.mxu0 0.0
  %58 = vmatpush1.msra.mxu0 0.0
  %59 = vmatprep.subr.mxu0 0.0
  %60 = vmatpush1.msra.mxu0 0.0
  %61 = vmatprep.subr.mxu0 0.0
  %62 = vmatpush1.msra.mxu0 0.0
  %63 = vmatprep.subr.mxu0 0.0
  %64 = vmatpush1.msra.mxu0 0.0
  %65 = vmatprep.subr.mxu0 0.0
  %66 = vmatpush1.msra.mxu0 0.0
  %67 = vmatprep.subr.mxu0 0.0
  %68 = vmatpush1.msra.mxu0 0.0
  %69 = vmatprep.subr.mxu0 0.0
  %70 = vmatpush1.msra.mxu0 0.0
  %71 = vmatprep.subr.mxu0 0.0
  %72 = vmatpush1.msra.mxu0 0.0
  %73 = vmatprep.subr.mxu0 0.0
  %74 = vmatpush1.msra.mxu0 0.0
  %75 = vmatprep.subr.mxu0 0.0
  %76 = vmatpush1.msra.mxu0 0.0
  %77 = vmatprep.subr.mxu0 0.0
  %78 = vmatpush1.msra.mxu0 0.0
  %79 = vmatprep.subr.mxu0 0.0
  %80 = vmatpush1.msra.mxu0 0.0
  %81 = vmatprep.subr.mxu0 0.0
  %82 = vmatpush1.msra.mxu0 0.0
  %83 = vmatprep.subr.mxu0 0.0
  %84 = vmatpush1.msra.mxu0 0.0
  %85 = vmatprep.subr.mxu0 0.0
  %86 = vmatpush1.msra.mxu0 0.0
  %87 = vmatprep.subr.mxu0 0.0
  %88 = vmatpush1.msra.mxu0 0.0
  %89 = vmatprep.subr.mxu0 0.0
  %90 = vmatpush1.msra.mxu0 0.0
  %91 = vmatprep.subr.mxu0 0.0
  %92 = vmatpush1.msra.mxu0 0.0
  %93 = vmatprep.mubr.f32.mxu0 0.0
  %94 = vmatmul.mubr.f32.gmra.mrb[0].mxu0 %v27
  %v95 = vpop.f32.mrb[0].mxu0
  %v96 = vadd.f32 0.0, %v95
  %v97 = vpop.f32.mrb[0].mxu0
  %98 = vdwg.mxu0
  %vm99 = vcmask 130048
  %v101 = vsel %vm99, %v24, 0
  %103 = vmatprep.subr.mxu0 0.0
  %104 = vmatpush1.msra.mxu0 %v17
  %105 = vmatprep.subr.mxu0 0.0
  %106 = vmatpush1.msra.mxu0 %v18
  %107 = vmatprep.subr.mxu0 0.0
  %108 = vmatpush1.msra.mxu0 0.0
  %109 = vmatprep.subr.mxu0 0.0
  %110 = vmatpush1.msra.mxu0 0.0
  %111 = vmatprep.subr.mxu0 0.0
  %112 = vmatpush1.msra.mxu0 0.0
  %113 = vmatprep.subr.mxu0 0.0
  %114 = vmatpush1.msra.mxu0 0.0
  %115 = vmatprep.subr.mxu0 0.0
  %116 = vmatpush1.msra.mxu0 0.0
  %117 = vmatprep.subr.mxu0 0.0
  %118 = vmatpush1.msra.mxu0 0.0
  %119 = vmatprep.subr.mxu0 0.0
  %120 = vmatpush1.msra.mxu0 0.0
  %121 = vmatprep.subr.mxu0 0.0
  %122 = vmatpush1.msra.mxu0 0.0
  %123 = vmatprep.subr.mxu0 0.0
  %124 = vmatpush1.msra.mxu0 0.0
  %125 = vmatprep.subr.mxu0 0.0
  %126 = vmatpush1.msra.mxu0 0.0
  %127 = vmatprep.subr.mxu0 0.0
  %128 = vmatpush1.msra.mxu0 0.0
  %129 = vmatprep.subr.mxu0 0.0
  %130 = vmatpush1.msra.mxu0 0.0
  %131 = vmatprep.subr.mxu0 0.0
  %132 = vmatpush1.msra.mxu0 0.0
  %133 = vmatprep.subr.mxu0 0.0
  %134 = vmatpush1.msra.mxu0 0.0
  %135 = vmatprep.subr.mxu0 0.0
  %136 = vmatpush1.msra.mxu0 0.0
  %137 = vmatprep.subr.mxu0 0.0
  %138 = vmatpush1.msra.mxu0 0.0
  %139 = vmatprep.subr.mxu0 0.0
  %140 = vmatpush1.msra.mxu0 0.0
  %141 = vmatprep.subr.mxu0 0.0
  %142 = vmatpush1.msra.mxu0 0.0
  %143 = vmatprep.subr.mxu0 0.0
  %144 = vmatpush1.msra.mxu0 0.0
  %145 = vmatprep.subr.mxu0 0.0
  %146 = vmatpush1.msra.mxu0 0.0
  %147 = vmatprep.subr.mxu0 0.0
  %148 = vmatpush1.msra.mxu0 0.0
  %149 = vmatprep.subr.mxu0 0.0
  %150 = vmatpush1.msra.mxu0 0.0
  %151 = vmatprep.subr.mxu0 0.0
  %152 = vmatpush1.msra.mxu0 0.0
  %153 = vmatprep.subr.mxu0 0.0
  %154 = vmatpush1.msra.mxu0 0.0
  %155 = vmatprep.subr.mxu0 0.0
  %156 = vmatpush1.msra.mxu0 0.0
  %157 = vmatprep.subr.mxu0 0.0
  %158 = vmatpush1.msra.mxu0 0.0
  %159 = vmatprep.subr.mxu0 0.0
  %160 = vmatpush1.msra.mxu0 0.0
  %161 = vmatprep.subr.mxu0 0.0
  %162 = vmatpush1.msra.mxu0 0.0
  %163 = vmatprep.subr.mxu0 0.0
  %164 = vmatpush1.msra.mxu0 0.0
  %165 = vmatprep.subr.mxu0 0.0
  %166 = vmatpush1.msra.mxu0 0.0
  %167 = vmatprep.mubr.f32.mxu0 0.0
  %168 = vmatmul.mubr.f32.gmra.mrb[0].mxu0 %v101
  %v169 = vpop.f32.mrb[0].mxu0
  %v170 = vadd.f32 %v96, %v169
  %v171 = vpop.f32.mrb[0].mxu0
  %172 = vdwg.mxu0
  %v174 = vlaneseq
  %v175 = vshrl.u32 %v174, 7
  %v176 = vsub.s32 0, %v175
  %v177 = vrot.slane %v23, %v176
  %v179 = vadd.f32 %v170, %v177
  %v180 = vxor.u32 %v179, 2147483648
  %v181 = vmul.f32 %v180, 1.442695
  %v182 = vpow.pop %v181
  %v183 = vadd.f32 %v182, 1.0
  %v184 = vrcp.pop %v183
  %v185 = vmul.f32 1.0, %v184
  %v186 = vtanh.pop %v179
  %v187 = vmul.f32 %v185, 0.0
  %189 = vrot.lane.b32.xlu0 %v186, 64
  %v190 = vpop.permute.xlu0 %189
  %v192 = vmul.f32 %v185, %v190
  %194 = vrot.lane.b32.xlu0 %v192, 32
  %v195 = vpop.permute.xlu0 %194
  %v197 = vadd.f32 %v187, %v195
  %v198 = vtanh.pop %v197
  %200 = vrot.lane.b32.xlu0 %v198, 64
  %v201 = vpop.permute.xlu0 %200
  %v203 = vmul.f32 %v185, %v201
  %s204 = scalar_lea.vmem %s0, 4
  %v205 = vld [vmem:[%s204] sm:$0xf]
  %207 = vrot.lane.b32.xlu0 %v203, 32
  %v208 = vpop.permute.xlu0 %207
  %v209 = vsel %vm25, %v208, 0
  %211 = vmatprep.subr.mxu0 0.0
  %212 = vmatpush1.msra.mxu0 %v19
  %213 = vmatprep.subr.mxu0 0.0
  %214 = vmatpush1.msra.mxu0 %v20
  %215 = vmatprep.subr.mxu0 0.0
  %216 = vmatpush1.msra.mxu0 %v21
  %217 = vmatprep.subr.mxu0 0.0
  %218 = vmatpush1.msra.mxu0 %v22
  %219 = vmatprep.subr.mxu0 0.0
  %220 = vmatpush1.msra.mxu0 0.0
  %221 = vmatprep.subr.mxu0 0.0
  %222 = vmatpush1.msra.mxu0 0.0
  %223 = vmatprep.subr.mxu0 0.0
  %224 = vmatpush1.msra.mxu0 0.0
  %225 = vmatprep.subr.mxu0 0.0
  %226 = vmatpush1.msra.mxu0 0.0
  %227 = vmatprep.subr.mxu0 0.0
  %228 = vmatpush1.msra.mxu0 0.0
  %229 = vmatprep.subr.mxu0 0.0
  %230 = vmatpush1.msra.mxu0 0.0
  %231 = vmatprep.subr.mxu0 0.0
  %232 = vmatpush1.msra.mxu0 0.0
  %233 = vmatprep.subr.mxu0 0.0
  %234 = vmatpush1.msra.mxu0 0.0
  %235 = vmatprep.subr.mxu0 0.0
  %236 = vmatpush1.msra.mxu0 0.0
  %237 = vmatprep.subr.mxu0 0.0
  %238 = vmatpush1.msra.mxu0 0.0
  %239 = vmatprep.subr.mxu0 0.0
  %240 = vmatpush1.msra.mxu0 0.0
  %241 = vmatprep.subr.mxu0 0.0
  %242 = vmatpush1.msra.mxu0 0.0
  %243 = vmatprep.subr.mxu0 0.0
  %244 = vmatpush1.msra.mxu0 0.0
  %245 = vmatprep.subr.mxu0 0.0
  %246 = vmatpush1.msra.mxu0 0.0
  %247 = vmatprep.subr.mxu0 0.0
  %248 = vmatpush1.msra.mxu0 0.0
  %249 = vmatprep.subr.mxu0 0.0
  %250 = vmatpush1.msra.mxu0 0.0
  %251 = vmatprep.subr.mxu0 0.0
  %252 = vmatpush1.msra.mxu0 0.0
  %253 = vmatprep.subr.mxu0 0.0
  %254 = vmatpush1.msra.mxu0 0.0
  %255 = vmatprep.subr.mxu0 0.0
  %256 = vmatpush1.msra.mxu0 0.0
  %257 = vmatprep.subr.mxu0 0.0
  %258 = vmatpush1.msra.mxu0 0.0
  %259 = vmatprep.subr.mxu0 0.0
  %260 = vmatpush1.msra.mxu0 0.0
  %261 = vmatprep.subr.mxu0 0.0
  %262 = vmatpush1.msra.mxu0 0.0
  %263 = vmatprep.subr.mxu0 0.0
  %264 = vmatpush1.msra.mxu0 0.0
  %265 = vmatprep.subr.mxu0 0.0
  %266 = vmatpush1.msra.mxu0 0.0
  %267 = vmatprep.subr.mxu0 0.0
  %268 = vmatpush1.msra.mxu0 0.0
  %269 = vmatprep.subr.mxu0 0.0
  %270 = vmatpush1.msra.mxu0 0.0
  %271 = vmatprep.subr.mxu0 0.0
  %272 = vmatpush1.msra.mxu0 0.0
  %273 = vmatprep.subr.mxu0 0.0
  %274 = vmatpush1.msra.mxu0 0.0
  %275 = vmatprep.mubr.f32.mxu0 0.0
  %276 = vmatmul.mubr.f32.gmra.mrb[0].mxu0 %v209
  %v277 = vpop.f32.mrb[0].mxu0
  %v278 = vadd.f32 0.0, %v277
  %v279 = vpop.f32.mrb[0].mxu0
  %280 = vdwg.mxu0
  %v282 = vsel %vm99, %v205, 0
  %284 = vmatprep.subr.mxu0 0.0
  %285 = vmatpush1.msra.mxu0 %v17
  %286 = vmatprep.subr.mxu0 0.0
  %287 = vmatpush1.msra.mxu0 %v18
  %288 = vmatprep.subr.mxu0 0.0
  %289 = vmatpush1.msra.mxu0 0.0
  %290 = vmatprep.subr.mxu0 0.0
  %291 = vmatpush1.msra.mxu0 0.0
  %292 = vmatprep.subr.mxu0 0.0
  %293 = vmatpush1.msra.mxu0 0.0
  %294 = vmatprep.subr.mxu0 0.0
  %295 = vmatpush1.msra.mxu0 0.0
  %296 = vmatprep.subr.mxu0 0.0
  %297 = vmatpush1.msra.mxu0 0.0
  %298 = vmatprep.subr.mxu0 0.0
  %299 = vmatpush1.msra.mxu0 0.0
  %300 = vmatprep.subr.mxu0 0.0
  %301 = vmatpush1.msra.mxu0 0.0
  %302 = vmatprep.subr.mxu0 0.0
  %303 = vmatpush1.msra.mxu0 0.0
  %304 = vmatprep.subr.mxu0 0.0
  %305 = vmatpush1.msra.mxu0 0.0
  %306 = vmatprep.subr.mxu0 0.0
  %307 = vmatpush1.msra.mxu0 0.0
  %308 = vmatprep.subr.mxu0 0.0
  %309 = vmatpush1.msra.mxu0 0.0
  %310 = vmatprep.subr.mxu0 0.0
  %311 = vmatpush1.msra.mxu0 0.0
  %312 = vmatprep.subr.mxu0 0.0
  %313 = vmatpush1.msra.mxu0 0.0
  %314 = vmatprep.subr.mxu0 0.0
  %315 = vmatpush1.msra.mxu0 0.0
  %316 = vmatprep.subr.mxu0 0.0
  %317 = vmatpush1.msra.mxu0 0.0
  %318 = vmatprep.subr.mxu0 0.0
  %319 = vmatpush1.msra.mxu0 0.0
  %320 = vmatprep.subr.mxu0 0.0
  %321 = vmatpush1.msra.mxu0 0.0
  %322 = vmatprep.subr.mxu0 0.0
  %323 = vmatpush1.msra.mxu0 0.0
  %324 = vmatprep.subr.mxu0 0.0
  %325 = vmatpush1.msra.mxu0 0.0
  %326 = vmatprep.subr.mxu0 0.0
  %327 = vmatpush1.msra.mxu0 0.0
  %328 = vmatprep.subr.mxu0 0.0
  %329 = vmatpush1.msra.mxu0 0.0
  %330 = vmatprep.subr.mxu0 0.0
  %331 = vmatpush1.msra.mxu0 0.0
  %332 = vmatprep.subr.mxu0 0.0
  %333 = vmatpush1.msra.mxu0 0.0
  %334 = vmatprep.subr.mxu0 0.0
  %335 = vmatpush1.msra.mxu0 0.0
  %336 = vmatprep.subr.mxu0 0.0
  %337 = vmatpush1.msra.mxu0 0.0
  %338 = vmatprep.subr.mxu0 0.0
  %339 = vmatpush1.msra.mxu0 0.0
  %340 = vmatprep.subr.mxu0 0.0
  %341 = vmatpush1.msra.mxu0 0.0
  %342 = vmatprep.subr.mxu0 0.0
  %343 = vmatpush1.msra.mxu0 0.0
  %344 = vmatprep.subr.mxu0 0.0
  %345 = vmatpush1.msra.mxu0 0.0
  %346 = vmatprep.subr.mxu0 0.0
  %347 = vmatpush1.msra.mxu0 0.0
  %348 = vmatprep.mubr.f32.mxu0 0.0
  %349 = vmatmul.mubr.f32.gmra.mrb[0].mxu0 %v282
  %v350 = vpop.f32.mrb[0].mxu0
  %v351 = vadd.f32 %v278, %v350
  %v352 = vpop.f32.mrb[0].mxu0
  %353 = vdwg.mxu0
  %v354 = vadd.f32 %v351, %v177
  %v355 = vxor.u32 %v354, 2147483648
  %v356 = vmul.f32 %v355, 1.442695
  %v357 = vpow.pop %v356
  %v358 = vadd.f32 %v357, 1.0
  %v359 = vrcp.pop %v358
  %v360 = vmul.f32 1.0, %v359
  %v361 = vtanh.pop %v354
  %v362 = vmul.f32 %v360, %v197
  %364 = vrot.lane.b32.xlu0 %v361, 64
  %v365 = vpop.permute.xlu0 %364
  %v367 = vmul.f32 %v360, %v365
  %369 = vrot.lane.b32.xlu0 %v367, 32
  %v370 = vpop.permute.xlu0 %369
  %v372 = vadd.f32 %v362, %v370
  %v373 = vtanh.pop %v372
  %375 = vrot.lane.b32.xlu0 %v373, 64
  %v376 = vpop.permute.xlu0 %375
  %v378 = vmul.f32 %v360, %v376
  %380 = vrot.lane.b32.xlu0 %v378, 32
  %v381 = vpop.permute.xlu0 %380
  %vm383 = vcmask 257024
  %384 = vst.msk [vmem:[%s4] sm:$0xf] %vm383, %v381
  // Predicated region
  $region18: #{_lambda_.6} parent=0 // pred_check
    _
  $region19: #{_lambda_.6} parent=0 // pred_check_branch
    %386 = sbr.rel (0) target = $region21
  $region20: #{_lambda_.6} parent=0 // pred_region
    _
  $region21: #{_lambda_.6} parent=0 // pred_fallthru
    _
  // Predicated region
  $region22: #{_lambda_.6} parent=0 // pred_check
    _
  $region23: #{_lambda_.6} parent=0 // pred_check_branch
    %388 = sbr.rel (0) target = $region25
  $region24: #{_lambda_.6} parent=0 // pred_region
    _
  $region25: #{_lambda_.6} parent=0 // pred_fallthru
    _

// kernel: _lambda_.5
$region0: #{_lambda_.5}
  #allocation0 [shape = 'u32[]', space=smem, size = 0x4, offset = 0x4, fixed_abs, tag = 'smem constant byte address 0x4 - core index']
  #allocation1 [shape = 'u32[144,128]{1,0:T(1,128)}', space=vmem, size = 0x12000, scoped, tag = 'internal scratch']
  %s0 = inlined_call_operand.vmem [shape: f32[4,8,8], index: 0, kind: input, shape index: {}]
  %s1 = inlined_call_operand.vmem [shape: f32[8,64], index: 1, kind: input, shape index: {}]
  %s2 = inlined_call_operand.vmem [shape: f32[16,64], index: 2, kind: input, shape index: {}]
  %s3 = inlined_call_operand.vmem [shape: f32[1,64], index: 3, kind: input, shape index: {}]
  %s4 = inlined_call_operand.vmem [shape: f32[8,16], index: 4, kind: output, shape index: {}]
  %s5 = sld [smem:[#allocation0]]
  $region26: #{_lambda_.5} parent=0
    _
  %s7 = ssub.s32 1, %s5
  %s8 = scalar_select 0, %s7, %s5
  // Predicated region
  $region2: #{_lambda_.5} parent=0 // pred_check
    _
  $region3: #{_lambda_.5} parent=0 // pred_check_branch
    %10 = sbr.rel (0) target = $region5
  $region4: #{_lambda_.5} parent=0 // pred_region
    _
  $region5: #{_lambda_.5} parent=0 // pred_fallthru
    _
  // Predicated region
  $region6: #{_lambda_.5} parent=0 // pred_check
    _
  $region7: #{_lambda_.5} parent=0 // pred_check_branch
    %12 = sbr.rel (0) target = $region9
  $region8: #{_lambda_.5} parent=0 // pred_region
    _
  $region9: #{_lambda_.5} parent=0 // pred_fallthru
    _
  // Predicated region
  $region10: #{_lambda_.5} parent=0 // pred_check
    _
  $region11: #{_lambda_.5} parent=0 // pred_check_branch
    %14 = sbr.rel (0) target = $region13
  $region12: #{_lambda_.5} parent=0 // pred_region
    _
  $region13: #{_lambda_.5} parent=0 // pred_fallthru
    _
  // Predicated region
  $region14: #{_lambda_.5} parent=0 // pred_check
    _
  $region15: #{_lambda_.5} parent=0 // pred_check_branch
    %16 = sbr.rel (0) target = $region17
  $region16: #{_lambda_.5} parent=0 // pred_region
    _
  $region17: #{_lambda_.5} parent=0 // pred_fallthru
    _
  %v17 = vld [vmem:[%s1] sm:$0xff]
  %v18 = vld [vmem:[%s2] sm:$0xff]
  %v19 = vld [vmem:[%s2 + $0x8] sm:$0xff]
  %v20 = vld [vmem:[%s3] sm:$0x1]
  %v21 = vld [vmem:[%s0] sm:$0xff]
  %vm22 = vcmask 130048
  %v24 = vsel %vm22, 0.0, 0
  %26 = vmatprep.subr.mxu0 0.0
  %27 = vmatpush1.msra.mxu0 %v18
  %28 = vmatprep.subr.mxu0 0.0
  %29 = vmatpush1.msra.mxu0 %v19
  %30 = vmatprep.subr.mxu0 0.0
  %31 = vmatpush1.msra.mxu0 0.0
  %32 = vmatprep.subr.mxu0 0.0
  %33 = vmatpush1.msra.mxu0 0.0
  %34 = vmatprep.subr.mxu0 0.0
  %35 = vmatpush1.msra.mxu0 0.0
  %36 = vmatprep.subr.mxu0 0.0
  %37 = vmatpush1.msra.mxu0 0.0
  %38 = vmatprep.subr.mxu0 0.0
  %39 = vmatpush1.msra.mxu0 0.0
  %40 = vmatprep.subr.mxu0 0.0
  %41 = vmatpush1.msra.mxu0 0.0
  %42 = vmatprep.subr.mxu0 0.0
  %43 = vmatpush1.msra.mxu0 0.0
  %44 = vmatprep.subr.mxu0 0.0
  %45 = vmatpush1.msra.mxu0 0.0
  %46 = vmatprep.subr.mxu0 0.0
  %47 = vmatpush1.msra.mxu0 0.0
  %48 = vmatprep.subr.mxu0 0.0
  %49 = vmatpush1.msra.mxu0 0.0
  %50 = vmatprep.subr.mxu0 0.0
  %51 = vmatpush1.msra.mxu0 0.0
  %52 = vmatprep.subr.mxu0 0.0
  %53 = vmatpush1.msra.mxu0 0.0
  %54 = vmatprep.subr.mxu0 0.0
  %55 = vmatpush1.msra.mxu0 0.0
  %56 = vmatprep.subr.mxu0 0.0
  %57 = vmatpush1.msra.mxu0 0.0
  %58 = vmatprep.subr.mxu0 0.0
  %59 = vmatpush1.msra.mxu0 0.0
  %60 = vmatprep.subr.mxu0 0.0
  %61 = vmatpush1.msra.mxu0 0.0
  %62 = vmatprep.subr.mxu0 0.0
  %63 = vmatpush1.msra.mxu0 0.0
  %64 = vmatprep.subr.mxu0 0.0
  %65 = vmatpush1.msra.mxu0 0.0
  %66 = vmatprep.subr.mxu0 0.0
  %67 = vmatpush1.msra.mxu0 0.0
  %68 = vmatprep.subr.mxu0 0.0
  %69 = vmatpush1.msra.mxu0 0.0
  %70 = vmatprep.subr.mxu0 0.0
  %71 = vmatpush1.msra.mxu0 0.0
  %72 = vmatprep.subr.mxu0 0.0
  %73 = vmatpush1.msra.mxu0 0.0
  %74 = vmatprep.subr.mxu0 0.0
  %75 = vmatpush1.msra.mxu0 0.0
  %76 = vmatprep.subr.mxu0 0.0
  %77 = vmatpush1.msra.mxu0 0.0
  %78 = vmatprep.subr.mxu0 0.0
  %79 = vmatpush1.msra.mxu0 0.0
  %80 = vmatprep.subr.mxu0 0.0
  %81 = vmatpush1.msra.mxu0 0.0
  %82 = vmatprep.subr.mxu0 0.0
  %83 = vmatpush1.msra.mxu0 0.0
  %84 = vmatprep.subr.mxu0 0.0
  %85 = vmatpush1.msra.mxu0 0.0
  %86 = vmatprep.subr.mxu0 0.0
  %87 = vmatpush1.msra.mxu0 0.0
  %88 = vmatprep.subr.mxu0 0.0
  %89 = vmatpush1.msra.mxu0 0.0
  %90 = vmatprep.mubr.f32.mxu0 0.0
  %91 = vmatmul.mubr.f32.gmra.mrb[0].mxu0 %v24
  %v92 = vpop.f32.mrb[0].mxu0
  %v93 = vadd.f32 0.0, %v92
  %v94 = vpop.f32.mrb[0].mxu0
  %95 = vdwg.mxu0
  %vm96 = vcmask 64512
  %v98 = vsel %vm96, %v21, 0
  %100 = vmatprep.subr.mxu0 0.0
  %101 = vmatpush1.msra.mxu0 %v17
  %102 = vmatprep.subr.mxu0 0.0
  %103 = vmatpush1.msra.mxu0 0.0
  %104 = vmatprep.subr.mxu0 0.0
  %105 = vmatpush1.msra.mxu0 0.0
  %106 = vmatprep.subr.mxu0 0.0
  %107 = vmatpush1.msra.mxu0 0.0
  %108 = vmatprep.subr.mxu0 0.0
  %109 = vmatpush1.msra.mxu0 0.0
  %110 = vmatprep.subr.mxu0 0.0
  %111 = vmatpush1.msra.mxu0 0.0
  %112 = vmatprep.subr.mxu0 0.0
  %113 = vmatpush1.msra.mxu0 0.0
  %114 = vmatprep.subr.mxu0 0.0
  %115 = vmatpush1.msra.mxu0 0.0
  %116 = vmatprep.subr.mxu0 0.0
  %117 = vmatpush1.msra.mxu0 0.0
  %118 = vmatprep.subr.mxu0 0.0
  %119 = vmatpush1.msra.mxu0 0.0
  %120 = vmatprep.subr.mxu0 0.0
  %121 = vmatpush1.msra.mxu0 0.0
  %122 = vmatprep.subr.mxu0 0.0
  %123 = vmatpush1.msra.mxu0 0.0
  %124 = vmatprep.subr.mxu0 0.0
  %125 = vmatpush1.msra.mxu0 0.0
  %126 = vmatprep.subr.mxu0 0.0
  %127 = vmatpush1.msra.mxu0 0.0
  %128 = vmatprep.subr.mxu0 0.0
  %129 = vmatpush1.msra.mxu0 0.0
  %130 = vmatprep.subr.mxu0 0.0
  %131 = vmatpush1.msra.mxu0 0.0
  %132 = vmatprep.subr.mxu0 0.0
  %133 = vmatpush1.msra.mxu0 0.0
  %134 = vmatprep.subr.mxu0 0.0
  %135 = vmatpush1.msra.mxu0 0.0
  %136 = vmatprep.subr.mxu0 0.0
  %137 = vmatpush1.msra.mxu0 0.0
  %138 = vmatprep.subr.mxu0 0.0
  %139 = vmatpush1.msra.mxu0 0.0
  %140 = vmatprep.subr.mxu0 0.0
  %141 = vmatpush1.msra.mxu0 0.0
  %142 = vmatprep.subr.mxu0 0.0
  %143 = vmatpush1.msra.mxu0 0.0
  %144 = vmatprep.subr.mxu0 0.0
  %145 = vmatpush1.msra.mxu0 0.0
  %146 = vmatprep.subr.mxu0 0.0
  %147 = vmatpush1.msra.mxu0 0.0
  %148 = vmatprep.subr.mxu0 0.0
  %149 = vmatpush1.msra.mxu0 0.0
  %150 = vmatprep.subr.mxu0 0.0
  %151 = vmatpush1.msra.mxu0 0.0
  %152 = vmatprep.subr.mxu0 0.0
  %153 = vmatpush1.msra.mxu0 0.0
  %154 = vmatprep.subr.mxu0 0.0
  %155 = vmatpush1.msra.mxu0 0.0
  %156 = vmatprep.subr.mxu0 0.0
  %157 = vmatpush1.msra.mxu0 0.0
  %158 = vmatprep.subr.mxu0 0.0
  %159 = vmatpush1.msra.mxu0 0.0
  %160 = vmatprep.subr.mxu0 0.0
  %161 = vmatpush1.msra.mxu0 0.0
  %162 = vmatprep.subr.mxu0 0.0
  %163 = vmatpush1.msra.mxu0 0.0
  %164 = vmatprep.mubr.f32.mxu0 0.0
  %165 = vmatmul.mubr.f32.gmra.mrb[0].mxu0 %v98
  %v166 = vpop.f32.mrb[0].mxu0
  %v167 = vadd.f32 %v93, %v166
  %v168 = vpop.f32.mrb[0].mxu0
  %169 = vdwg.mxu0
  %v171 = vlaneseq
  %v172 = vshrl.u32 %v171, 7
  %v173 = vsub.s32 0, %v172
  %v174 = vrot.slane %v20, %v173
  %v176 = vadd.f32 %v167, %v174
  %v177 = vxor.u32 %v176, 2147483648
  %v178 = vmul.f32 %v177, 1.442695
  %v179 = vpow.pop %v178
  %v180 = vadd.f32 %v179, 1.0
  %v181 = vrcp.pop %v180
  %v182 = vmul.f32 1.0, %v181
  %v183 = vtanh.pop %v176
  %v184 = vmul.f32 %v182, 0.0
  %186 = vrot.lane.b32.xlu0 %v183, 96
  %v187 = vpop.permute.xlu0 %186
  %v189 = vmul.f32 %v182, %v187
  %191 = vrot.lane.b32.xlu0 %v189, 16
  %v192 = vpop.permute.xlu0 %191
  %v194 = vadd.f32 %v184, %v192
  %v195 = vtanh.pop %v194
  %197 = vrot.lane.b32.xlu0 %v195, 32
  %v198 = vpop.permute.xlu0 %197
  %v200 = vmul.f32 %v182, %v198
  %s201 = scalar_lea.vmem %s0, 8
  %v202 = vld [vmem:[%s201] sm:$0xff]
  %204 = vrot.lane.b32.xlu0 %v200, 80
  %v205 = vpop.permute.xlu0 %204
  %v206 = vsel %vm22, %v205, 0
  %208 = vmatprep.subr.mxu0 0.0
  %209 = vmatpush1.msra.mxu0 %v18
  %210 = vmatprep.subr.mxu0 0.0
  %211 = vmatpush1.msra.mxu0 %v19
  %212 = vmatprep.subr.mxu0 0.0
  %213 = vmatpush1.msra.mxu0 0.0
  %214 = vmatprep.subr.mxu0 0.0
  %215 = vmatpush1.msra.mxu0 0.0
  %216 = vmatprep.subr.mxu0 0.0
  %217 = vmatpush1.msra.mxu0 0.0
  %218 = vmatprep.subr.mxu0 0.0
  %219 = vmatpush1.msra.mxu0 0.0
  %220 = vmatprep.subr.mxu0 0.0
  %221 = vmatpush1.msra.mxu0 0.0
  %222 = vmatprep.subr.mxu0 0.0
  %223 = vmatpush1.msra.mxu0 0.0
  %224 = vmatprep.subr.mxu0 0.0
  %225 = vmatpush1.msra.mxu0 0.0
  %226 = vmatprep.subr.mxu0 0.0
  %227 = vmatpush1.msra.mxu0 0.0
  %228 = vmatprep.subr.mxu0 0.0
  %229 = vmatpush1.msra.mxu0 0.0
  %230 = vmatprep.subr.mxu0 0.0
  %231 = vmatpush1.msra.mxu0 0.0
  %232 = vmatprep.subr.mxu0 0.0
  %233 = vmatpush1.msra.mxu0 0.0
  %234 = vmatprep.subr.mxu0 0.0
  %235 = vmatpush1.msra.mxu0 0.0
  %236 = vmatprep.subr.mxu0 0.0
  %237 = vmatpush1.msra.mxu0 0.0
  %238 = vmatprep.subr.mxu0 0.0
  %239 = vmatpush1.msra.mxu0 0.0
  %240 = vmatprep.subr.mxu0 0.0
  %241 = vmatpush1.msra.mxu0 0.0
  %242 = vmatprep.subr.mxu0 0.0
  %243 = vmatpush1.msra.mxu0 0.0
  %244 = vmatprep.subr.mxu0 0.0
  %245 = vmatpush1.msra.mxu0 0.0
  %246 = vmatprep.subr.mxu0 0.0
  %247 = vmatpush1.msra.mxu0 0.0
  %248 = vmatprep.subr.mxu0 0.0
  %249 = vmatpush1.msra.mxu0 0.0
  %250 = vmatprep.subr.mxu0 0.0
  %251 = vmatpush1.msra.mxu0 0.0
  %252 = vmatprep.subr.mxu0 0.0
  %253 = vmatpush1.msra.mxu0 0.0
  %254 = vmatprep.subr.mxu0 0.0
  %255 = vmatpush1.msra.mxu0 0.0
  %256 = vmatprep.subr.mxu0 0.0
  %257 = vmatpush1.msra.mxu0 0.0
  %258 = vmatprep.subr.mxu0 0.0
  %259 = vmatpush1.msra.mxu0 0.0
  %260 = vmatprep.subr.mxu0 0.0
  %261 = vmatpush1.msra.mxu0 0.0
  %262 = vmatprep.subr.mxu0 0.0
  %263 = vmatpush1.msra.mxu0 0.0
  %264 = vmatprep.subr.mxu0 0.0
  %265 = vmatpush1.msra.mxu0 0.0
  %266 = vmatprep.subr.mxu0 0.0
  %267 = vmatpush1.msra.mxu0 0.0
  %268 = vmatprep.subr.mxu0 0.0
  %269 = vmatpush1.msra.mxu0 0.0
  %270 = vmatprep.subr.mxu0 0.0
  %271 = vmatpush1.msra.mxu0 0.0
  %272 = vmatprep.mubr.f32.mxu0 0.0
  %273 = vmatmul.mubr.f32.gmra.mrb[0].mxu0 %v206
  %v274 = vpop.f32.mrb[0].mxu0
  %v275 = vadd.f32 0.0, %v274
  %v276 = vpop.f32.mrb[0].mxu0
  %277 = vdwg.mxu0
  %v279 = vsel %vm96, %v202, 0
  %281 = vmatprep.subr.mxu0 0.0
  %282 = vmatpush1.msra.mxu0 %v17
  %283 = vmatprep.subr.mxu0 0.0
  %284 = vmatpush1.msra.mxu0 0.0
  %285 = vmatprep.subr.mxu0 0.0
  %286 = vmatpush1.msra.mxu0 0.0
  %287 = vmatprep.subr.mxu0 0.0
  %288 = vmatpush1.msra.mxu0 0.0
  %289 = vmatprep.subr.mxu0 0.0
  %290 = vmatpush1.msra.mxu0 0.0
  %291 = vmatprep.subr.mxu0 0.0
  %292 = vmatpush1.msra.mxu0 0.0
  %293 = vmatprep.subr.mxu0 0.0
  %294 = vmatpush1.msra.mxu0 0.0
  %295 = vmatprep.subr.mxu0 0.0
  %296 = vmatpush1.msra.mxu0 0.0
  %297 = vmatprep.subr.mxu0 0.0
  %298 = vmatpush1.msra.mxu0 0.0
  %299 = vmatprep.subr.mxu0 0.0
  %300 = vmatpush1.msra.mxu0 0.0
  %301 = vmatprep.subr.mxu0 0.0
  %302 = vmatpush1.msra.mxu0 0.0
  %303 = vmatprep.subr.mxu0 0.0
  %304 = vmatpush1.msra.mxu0 0.0
  %305 = vmatprep.subr.mxu0 0.0
  %306 = vmatpush1.msra.mxu0 0.0
  %307 = vmatprep.subr.mxu0 0.0
  %308 = vmatpush1.msra.mxu0 0.0
  %309 = vmatprep.subr.mxu0 0.0
  %310 = vmatpush1.msra.mxu0 0.0
  %311 = vmatprep.subr.mxu0 0.0
  %312 = vmatpush1.msra.mxu0 0.0
  %313 = vmatprep.subr.mxu0 0.0
  %314 = vmatpush1.msra.mxu0 0.0
  %315 = vmatprep.subr.mxu0 0.0
  %316 = vmatpush1.msra.mxu0 0.0
  %317 = vmatprep.subr.mxu0 0.0
  %318 = vmatpush1.msra.mxu0 0.0
  %319 = vmatprep.subr.mxu0 0.0
  %320 = vmatpush1.msra.mxu0 0.0
  %321 = vmatprep.subr.mxu0 0.0
  %322 = vmatpush1.msra.mxu0 0.0
  %323 = vmatprep.subr.mxu0 0.0
  %324 = vmatpush1.msra.mxu0 0.0
  %325 = vmatprep.subr.mxu0 0.0
  %326 = vmatpush1.msra.mxu0 0.0
  %327 = vmatprep.subr.mxu0 0.0
  %328 = vmatpush1.msra.mxu0 0.0
  %329 = vmatprep.subr.mxu0 0.0
  %330 = vmatpush1.msra.mxu0 0.0
  %331 = vmatprep.subr.mxu0 0.0
  %332 = vmatpush1.msra.mxu0 0.0
  %333 = vmatprep.subr.mxu0 0.0
  %334 = vmatpush1.msra.mxu0 0.0
  %335 = vmatprep.subr.mxu0 0.0
  %336 = vmatpush1.msra.mxu0 0.0
  %337 = vmatprep.subr.mxu0 0.0
  %338 = vmatpush1.msra.mxu0 0.0
  %339 = vmatprep.subr.mxu0 0.0
  %340 = vmatpush1.msra.mxu0 0.0
  %341 = vmatprep.subr.mxu0 0.0
  %342 = vmatpush1.msra.mxu0 0.0
  %343 = vmatprep.subr.mxu0 0.0
  %344 = vmatpush1.msra.mxu0 0.0
  %345 = vmatprep.mubr.f32.mxu0 0.0
  %346 = vmatmul.mubr.f32.gmra.mrb[0].mxu0 %v279
  %v347 = vpop.f32.mrb[0].mxu0
  %v348 = vadd.f32 %v275, %v347
  %v349 = vpop.f32.mrb[0].mxu0
  %350 = vdwg.mxu0
  %v351 = vadd.f32 %v348, %v174
  %v352 = vxor.u32 %v351, 2147483648
  %v353 = vmul.f32 %v352, 1.442695
  %v354 = vpow.pop %v353
  %v355 = vadd.f32 %v354, 1.0
  %v356 = vrcp.pop %v355
  %v357 = vmul.f32 1.0, %v356
  %v358 = vtanh.pop %v351
  %v359 = vmul.f32 %v357, %v194
  %361 = vrot.lane.b32.xlu0 %v358, 96
  %v362 = vpop.permute.xlu0 %361
  %v364 = vmul.f32 %v357, %v362
  %366 = vrot.lane.b32.xlu0 %v364, 16
  %v367 = vpop.permute.xlu0 %366
  %v369 = vadd.f32 %v359, %v367
  %v370 = vtanh.pop %v369
  %372 = vrot.lane.b32.xlu0 %v370, 32
  %v373 = vpop.permute.xlu0 %372
  %v375 = vmul.f32 %v357, %v373
  %s376 = scalar_lea.vmem %s0, 16
  %v377 = vld [vmem:[%s376] sm:$0xff]
  %379 = vrot.lane.b32.xlu0 %v375, 80
  %v380 = vpop.permute.xlu0 %379
  %v381 = vsel %vm22, %v380, 0
  %383 = vmatprep.subr.mxu0 0.0
  %384 = vmatpush1.msra.mxu0 %v18
  %385 = vmatprep.subr.mxu0 0.0
  %386 = vmatpush1.msra.mxu0 %v19
  %387 = vmatprep.subr.mxu0 0.0
  %388 = vmatpush1.msra.mxu0 0.0
  %389 = vmatprep.subr.mxu0 0.0
  %390 = vmatpush1.msra.mxu0 0.0
  %391 = vmatprep.subr.mxu0 0.0
  %392 = vmatpush1.msra.mxu0 0.0
  %393 = vmatprep.subr.mxu0 0.0
  %394 = vmatpush1.msra.mxu0 0.0
  %395 = vmatprep.subr.mxu0 0.0
  %396 = vmatpush1.msra.mxu0 0.0
  %397 = vmatprep.subr.mxu0 0.0
  %398 = vmatpush1.msra.mxu0 0.0
  %399 = vmatprep.subr.mxu0 0.0
  %400 = vmatpush1.msra.mxu0 0.0
  %401 = vmatprep.subr.mxu0 0.0
  %402 = vmatpush1.msra.mxu0 0.0
  %403 = vmatprep.subr.mxu0 0.0
  %404 = vmatpush1.msra.mxu0 0.0
  %405 = vmatprep.subr.mxu0 0.0
  %406 = vmatpush1.msra.mxu0 0.0
  %407 = vmatprep.subr.mxu0 0.0
  %408 = vmatpush1.msra.mxu0 0.0
  %409 = vmatprep.subr.mxu0 0.0
  %410 = vmatpush1.msra.mxu0 0.0
  %411 = vmatprep.subr.mxu0 0.0
  %412 = vmatpush1.msra.mxu0 0.0
  %413 = vmatprep.subr.mxu0 0.0
  %414 = vmatpush1.msra.mxu0 0.0
  %415 = vmatprep.subr.mxu0 0.0
  %416 = vmatpush1.msra.mxu0 0.0
  %417 = vmatprep.subr.mxu0 0.0
  %418 = vmatpush1.msra.mxu0 0.0
  %419 = vmatprep.subr.mxu0 0.0
  %420 = vmatpush1.msra.mxu0 0.0
  %421 = vmatprep.subr.mxu0 0.0
  %422 = vmatpush1.msra.mxu0 0.0
  %423 = vmatprep.subr.mxu0 0.0
  %424 = vmatpush1.msra.mxu0 0.0
  %425 = vmatprep.subr.mxu0 0.0
  %426 = vmatpush1.msra.mxu0 0.0
  %427 = vmatprep.subr.mxu0 0.0
  %428 = vmatpush1.msra.mxu0 0.0
  %429 = vmatprep.subr.mxu0 0.0
  %430 = vmatpush1.msra.mxu0 0.0
  %431 = vmatprep.subr.mxu0 0.0
  %432 = vmatpush1.msra.mxu0 0.0
  %433 = vmatprep.subr.mxu0 0.0
  %434 = vmatpush1.msra.mxu0 0.0
  %435 = vmatprep.subr.mxu0 0.0
  %436 = vmatpush1.msra.mxu0 0.0
  %437 = vmatprep.subr.mxu0 0.0
  %438 = vmatpush1.msra.mxu0 0.0
  %439 = vmatprep.subr.mxu0 0.0
  %440 = vmatpush1.msra.mxu0 0.0
  %441 = vmatprep.subr.mxu0 0.0
  %442 = vmatpush1.msra.mxu0 0.0
  %443 = vmatprep.subr.mxu0 0.0
  %444 = vmatpush1.msra.mxu0 0.0
  %445 = vmatprep.subr.mxu0 0.0
  %446 = vmatpush1.msra.mxu0 0.0
  %447 = vmatprep.mubr.f32.mxu0 0.0
  %448 = vmatmul.mubr.f32.gmra.mrb[0].mxu0 %v381
  %v449 = vpop.f32.mrb[0].mxu0
  %v450 = vadd.f32 0.0, %v449
  %v451 = vpop.f32.mrb[0].mxu0
  %452 = vdwg.mxu0
  %v454 = vsel %vm96, %v377, 0
  %456 = vmatprep.subr.mxu0 0.0
  %457 = vmatpush1.msra.mxu0 %v17
  %458 = vmatprep.subr.mxu0 0.0
  %459 = vmatpush1.msra.mxu0 0.0
  %460 = vmatprep.subr.mxu0 0.0
  %461 = vmatpush1.msra.mxu0 0.0
  %462 = vmatprep.subr.mxu0 0.0
  %463 = vmatpush1.msra.mxu0 0.0
  %464 = vmatprep.subr.mxu0 0.0
  %465 = vmatpush1.msra.mxu0 0.0
  %466 = vmatprep.subr.mxu0 0.0
  %467 = vmatpush1.msra.mxu0 0.0
  %468 = vmatprep.subr.mxu0 0.0
  %469 = vmatpush1.msra.mxu0 0.0
  %470 = vmatprep.subr.mxu0 0.0
  %471 = vmatpush1.msra.mxu0 0.0
  %472 = vmatprep.subr.mxu0 0.0
  %473 = vmatpush1.msra.mxu0 0.0
  %474 = vmatprep.subr.mxu0 0.0
  %475 = vmatpush1.msra.mxu0 0.0
  %476 = vmatprep.subr.mxu0 0.0
  %477 = vmatpush1.msra.mxu0 0.0
  %478 = vmatprep.subr.mxu0 0.0
  %479 = vmatpush1.msra.mxu0 0.0
  %480 = vmatprep.subr.mxu0 0.0
  %481 = vmatpush1.msra.mxu0 0.0
  %482 = vmatprep.subr.mxu0 0.0
  %483 = vmatpush1.msra.mxu0 0.0
  %484 = vmatprep.subr.mxu0 0.0
  %485 = vmatpush1.msra.mxu0 0.0
  %486 = vmatprep.subr.mxu0 0.0
  %487 = vmatpush1.msra.mxu0 0.0
  %488 = vmatprep.subr.mxu0 0.0
  %489 = vmatpush1.msra.mxu0 0.0
  %490 = vmatprep.subr.mxu0 0.0
  %491 = vmatpush1.msra.mxu0 0.0
  %492 = vmatprep.subr.mxu0 0.0
  %493 = vmatpush1.msra.mxu0 0.0
  %494 = vmatprep.subr.mxu0 0.0
  %495 = vmatpush1.msra.mxu0 0.0
  %496 = vmatprep.subr.mxu0 0.0
  %497 = vmatpush1.msra.mxu0 0.0
  %498 = vmatprep.subr.mxu0 0.0
  %499 = vmatpush1.msra.mxu0 0.0
  %500 = vmatprep.subr.mxu0 0.0
  %501 = vmatpush1.msra.mxu0 0.0
  %502 = vmatprep.subr.mxu0 0.0
  %503 = vmatpush1.msra.mxu0 0.0
  %504 = vmatprep.subr.mxu0 0.0
  %505 = vmatpush1.msra.mxu0 0.0
  %506 = vmatprep.subr.mxu0 0.0
  %507 = vmatpush1.msra.mxu0 0.0
  %508 = vmatprep.subr.mxu0 0.0
  %509 = vmatpush1.msra.mxu0 0.0
  %510 = vmatprep.subr.mxu0 0.0
  %511 = vmatpush1.msra.mxu0 0.0
  %512 = vmatprep.subr.mxu0 0.0
  %513 = vmatpush1.msra.mxu0 0.0
  %514 = vmatprep.subr.mxu0 0.0
  %515 = vmatpush1.msra.mxu0 0.0
  %516 = vmatprep.subr.mxu0 0.0
  %517 = vmatpush1.msra.mxu0 0.0
  %518 = vmatprep.subr.mxu0 0.0
  %519 = vmatpush1.msra.mxu0 0.0
  %520 = vmatprep.mubr.f32.mxu0 0.0
  %521 = vmatmul.mubr.f32.gmra.mrb[0].mxu0 %v454
  %v522 = vpop.f32.mrb[0].mxu0
  %v523 = vadd.f32 %v450, %v522
  %v524 = vpop.f32.mrb[0].mxu0
  %525 = vdwg.mxu0
  %v526 = vadd.f32 %v523, %v174
  %v527 = vxor.u32 %v526, 2147483648
  %v528 = vmul.f32 %v527, 1.442695
  %v529 = vpow.pop %v528
  %v530 = vadd.f32 %v529, 1.0
  %v531 = vrcp.pop %v530
  %v532 = vmul.f32 1.0, %v531
  %v533 = vtanh.pop %v526
  %v534 = vmul.f32 %v532, %v369
  %536 = vrot.lane.b32.xlu0 %v533, 96
  %v537 = vpop.permute.xlu0 %536
  %v539 = vmul.f32 %v532, %v537
  %541 = vrot.lane.b32.xlu0 %v539, 16
  %v542 = vpop.permute.xlu0 %541
  %v544 = vadd.f32 %v534, %v542
  %v545 = vtanh.pop %v544
  %547 = vrot.lane.b32.xlu0 %v545, 32
  %v548 = vpop.permute.xlu0 %547
  %v550 = vmul.f32 %v532, %v548
  %s551 = scalar_lea.vmem %s0, 24
  %v552 = vld [vmem:[%s551] sm:$0xff]
  %554 = vrot.lane.b32.xlu0 %v550, 80
  %v555 = vpop.permute.xlu0 %554
  %v556 = vsel %vm22, %v555, 0
  %558 = vmatprep.subr.mxu0 0.0
  %559 = vmatpush1.msra.mxu0 %v18
  %560 = vmatprep.subr.mxu0 0.0
  %561 = vmatpush1.msra.mxu0 %v19
  %562 = vmatprep.subr.mxu0 0.0
  %563 = vmatpush1.msra.mxu0 0.0
  %564 = vmatprep.subr.mxu0 0.0
  %565 = vmatpush1.msra.mxu0 0.0
  %566 = vmatprep.subr.mxu0 0.0
  %567 = vmatpush1.msra.mxu0 0.0
  %568 = vmatprep.subr.mxu0 0.0
  %569 = vmatpush1.msra.mxu0 0.0
  %570 = vmatprep.subr.mxu0 0.0
  %571 = vmatpush1.msra.mxu0 0.0
  %572 = vmatprep.subr.mxu0 0.0
  %573 = vmatpush1.msra.mxu0 0.0
  %574 = vmatprep.subr.mxu0 0.0
  %575 = vmatpush1.msra.mxu0 0.0
  %576 = vmatprep.subr.mxu0 0.0
  %577 = vmatpush1.msra.mxu0 0.0
  %578 = vmatprep.subr.mxu0 0.0
  %579 = vmatpush1.msra.mxu0 0.0
  %580 = vmatprep.subr.mxu0 0.0
  %581 = vmatpush1.msra.mxu0 0.0
  %582 = vmatprep.subr.mxu0 0.0
  %583 = vmatpush1.msra.mxu0 0.0
  %584 = vmatprep.subr.mxu0 0.0
  %585 = vmatpush1.msra.mxu0 0.0
  %586 = vmatprep.subr.mxu0 0.0
  %587 = vmatpush1.msra.mxu0 0.0
  %588 = vmatprep.subr.mxu0 0.0
  %589 = vmatpush1.msra.mxu0 0.0
  %590 = vmatprep.subr.mxu0 0.0
  %591 = vmatpush1.msra.mxu0 0.0
  %592 = vmatprep.subr.mxu0 0.0
  %593 = vmatpush1.msra.mxu0 0.0
  %594 = vmatprep.subr.mxu0 0.0
  %595 = vmatpush1.msra.mxu0 0.0
  %596 = vmatprep.subr.mxu0 0.0
  %597 = vmatpush1.msra.mxu0 0.0
  %598 = vmatprep.subr.mxu0 0.0
  %599 = vmatpush1.msra.mxu0 0.0
  %600 = vmatprep.subr.mxu0 0.0
  %601 = vmatpush1.msra.mxu0 0.0
  %602 = vmatprep.subr.mxu0 0.0
  %603 = vmatpush1.msra.mxu0 0.0
  %604 = vmatprep.subr.mxu0 0.0
  %605 = vmatpush1.msra.mxu0 0.0
  %606 = vmatprep.subr.mxu0 0.0
  %607 = vmatpush1.msra.mxu0 0.0
  %608 = vmatprep.subr.mxu0 0.0
  %609 = vmatpush1.msra.mxu0 0.0
  %610 = vmatprep.subr.mxu0 0.0
  %611 = vmatpush1.msra.mxu0 0.0
  %612 = vmatprep.subr.mxu0 0.0
  %613 = vmatpush1.msra.mxu0 0.0
  %614 = vmatprep.subr.mxu0 0.0
  %615 = vmatpush1.msra.mxu0 0.0
  %616 = vmatprep.subr.mxu0 0.0
  %617 = vmatpush1.msra.mxu0 0.0
  %618 = vmatprep.subr.mxu0 0.0
  %619 = vmatpush1.msra.mxu0 0.0
  %620 = vmatprep.subr.mxu0 0.0
  %621 = vmatpush1.msra.mxu0 0.0
  %622 = vmatprep.mubr.f32.mxu0 0.0
  %623 = vmatmul.mubr.f32.gmra.mrb[0].mxu0 %v556
  %v624 = vpop.f32.mrb[0].mxu0
  %v625 = vadd.f32 0.0, %v624
  %v626 = vpop.f32.mrb[0].mxu0
  %627 = vdwg.mxu0
  %v629 = vsel %vm96, %v552, 0
  %631 = vmatprep.subr.mxu0 0.0
  %632 = vmatpush1.msra.mxu0 %v17
  %633 = vmatprep.subr.mxu0 0.0
  %634 = vmatpush1.msra.mxu0 0.0
  %635 = vmatprep.subr.mxu0 0.0
  %636 = vmatpush1.msra.mxu0 0.0
  %637 = vmatprep.subr.mxu0 0.0
  %638 = vmatpush1.msra.mxu0 0.0
  %639 = vmatprep.subr.mxu0 0.0
  %640 = vmatpush1.msra.mxu0 0.0
  %641 = vmatprep.subr.mxu0 0.0
  %642 = vmatpush1.msra.mxu0 0.0
  %643 = vmatprep.subr.mxu0 0.0
  %644 = vmatpush1.msra.mxu0 0.0
  %645 = vmatprep.subr.mxu0 0.0
  %646 = vmatpush1.msra.mxu0 0.0
  %647 = vmatprep.subr.mxu0 0.0
  %648 = vmatpush1.msra.mxu0 0.0
  %649 = vmatprep.subr.mxu0 0.0
  %650 = vmatpush1.msra.mxu0 0.0
  %651 = vmatprep.subr.mxu0 0.0
  %652 = vmatpush1.msra.mxu0 0.0
  %653 = vmatprep.subr.mxu0 0.0
  %654 = vmatpush1.msra.mxu0 0.0
  %655 = vmatprep.subr.mxu0 0.0
  %656 = vmatpush1.msra.mxu0 0.0
  %657 = vmatprep.subr.mxu0 0.0
  %658 = vmatpush1.msra.mxu0 0.0
  %659 = vmatprep.subr.mxu0 0.0
  %660 = vmatpush1.msra.mxu0 0.0
  %661 = vmatprep.subr.mxu0 0.0
  %662 = vmatpush1.msra.mxu0 0.0
  %663 = vmatprep.subr.mxu0 0.0
  %664 = vmatpush1.msra.mxu0 0.0
  %665 = vmatprep.subr.mxu0 0.0
  %666 = vmatpush1.msra.mxu0 0.0
  %667 = vmatprep.subr.mxu0 0.0
  %668 = vmatpush1.msra.mxu0 0.0
  %669 = vmatprep.subr.mxu0 0.0
  %670 = vmatpush1.msra.mxu0 0.0
  %671 = vmatprep.subr.mxu0 0.0
  %672 = vmatpush1.msra.mxu0 0.0
  %673 = vmatprep.subr.mxu0 0.0
  %674 = vmatpush1.msra.mxu0 0.0
  %675 = vmatprep.subr.mxu0 0.0
  %676 = vmatpush1.msra.mxu0 0.0
  %677 = vmatprep.subr.mxu0 0.0
  %678 = vmatpush1.msra.mxu0 0.0
  %679 = vmatprep.subr.mxu0 0.0
  %680 = vmatpush1.msra.mxu0 0.0
  %681 = vmatprep.subr.mxu0 0.0
  %682 = vmatpush1.msra.mxu0 0.0
  %683 = vmatprep.subr.mxu0 0.0
  %684 = vmatpush1.msra.mxu0 0.0
  %685 = vmatprep.subr.mxu0 0.0
  %686 = vmatpush1.msra.mxu0 0.0
  %687 = vmatprep.subr.mxu0 0.0
  %688 = vmatpush1.msra.mxu0 0.0
  %689 = vmatprep.subr.mxu0 0.0
  %690 = vmatpush1.msra.mxu0 0.0
  %691 = vmatprep.subr.mxu0 0.0
  %692 = vmatpush1.msra.mxu0 0.0
  %693 = vmatprep.subr.mxu0 0.0
  %694 = vmatpush1.msra.mxu0 0.0
  %695 = vmatprep.mubr.f32.mxu0 0.0
  %696 = vmatmul.mubr.f32.gmra.mrb[0].mxu0 %v629
  %v697 = vpop.f32.mrb[0].mxu0
  %v698 = vadd.f32 %v625, %v697
  %v699 = vpop.f32.mrb[0].mxu0
  %700 = vdwg.mxu0
  %v701 = vadd.f32 %v698, %v174
  %v702 = vxor.u32 %v701, 2147483648
  %v703 = vmul.f32 %v702, 1.442695
  %v704 = vpow.pop %v703
  %v705 = vadd.f32 %v704, 1.0
  %v706 = vrcp.pop %v705
  %v707 = vmul.f32 1.0, %v706
  %v708 = vtanh.pop %v701
  %v709 = vmul.f32 %v707, %v544
  %711 = vrot.lane.b32.xlu0 %v708, 96
  %v712 = vpop.permute.xlu0 %711
  %v714 = vmul.f32 %v707, %v712
  %716 = vrot.lane.b32.xlu0 %v714, 16
  %v717 = vpop.permute.xlu0 %716
  %v719 = vadd.f32 %v709, %v717
  %v720 = vtanh.pop %v719
  %722 = vrot.lane.b32.xlu0 %v720, 32
  %v723 = vpop.permute.xlu0 %722
  %v725 = vmul.f32 %v707, %v723
  %727 = vrot.lane.b32.xlu0 %v725, 80
  %v728 = vpop.permute.xlu0 %727
  %730 = vst.msk [vmem:[%s4] sm:$0xff] %vm22, %v728
  // Predicated region
  $region18: #{_lambda_.5} parent=0 // pred_check
    _
  $region19: #{_lambda_.5} parent=0 // pred_check_branch
    %732 = sbr.rel (0) target = $region21
  $region20: #{_lambda_.5} parent=0 // pred_region
    _
  $region21: #{_lambda_.5} parent=0 // pred_fallthru
    _
  // Predicated region
  $region22: #{_lambda_.5} parent=0 // pred_check
    _
  $region23: #{_lambda_.5} parent=0 // pred_check_branch
    %734 = sbr.rel (0) target = $region25
  $region24: #{_lambda_.5} parent=0 // pred_region
    _
  $region25: #{_lambda_.5} parent=0 // pred_fallthru
    _

// kernel: _lambda_.7
$region0: #{_lambda_.7}
  #allocation0 [shape = 'u32[]', space=smem, size = 0x4, offset = 0x4, fixed_abs, tag = 'smem constant byte address 0x4 - core index']
  #allocation1 [shape = 'u32[144,128]{1,0:T(1,128)}', space=vmem, size = 0x12000, scoped, tag = 'internal scratch']
  %s0 = inlined_call_operand.vmem [shape: f32[2,4,16], index: 0, kind: input, shape index: {}]
  %s1 = inlined_call_operand.vmem [shape: f32[4,32], index: 1, kind: input, shape index: {}]
  %s2 = inlined_call_operand.vmem [shape: f32[16,128], index: 2, kind: input, shape index: {}]
  %s3 = inlined_call_operand.vmem [shape: f32[32,128], index: 3, kind: input, shape index: {}]
  %s4 = inlined_call_operand.vmem [shape: f32[1,128], index: 4, kind: input, shape index: {}]
  %s5 = inlined_call_operand.vmem [shape: f32[32,16], index: 5, kind: input, shape index: {}]
  %s6 = inlined_call_operand.vmem [shape: f32[1,16], index: 6, kind: input, shape index: {}]
  %s7 = inlined_call_operand.vmem [shape: f32[2,4,16], index: 7, kind: output, shape index: {}]
  %s8 = sld [smem:[#allocation0]]
  $region38: #{_lambda_.7} parent=0
    _
  %s10 = ssub.s32 1, %s8
  %s11 = scalar_select 0, %s10, %s8
  // Predicated region
  $region2: #{_lambda_.7} parent=0 // pred_check
    _
  $region3: #{_lambda_.7} parent=0 // pred_check_branch
    %13 = sbr.rel (0) target = $region5
  $region4: #{_lambda_.7} parent=0 // pred_region
    _
  $region5: #{_lambda_.7} parent=0 // pred_fallthru
    _
  // Predicated region
  $region6: #{_lambda_.7} parent=0 // pred_check
    _
  $region7: #{_lambda_.7} parent=0 // pred_check_branch
    %15 = sbr.rel (0) target = $region9
  $region8: #{_lambda_.7} parent=0 // pred_region
    _
  $region9: #{_lambda_.7} parent=0 // pred_fallthru
    _
  // Predicated region
  $region10: #{_lambda_.7} parent=0 // pred_check
    _
  $region11: #{_lambda_.7} parent=0 // pred_check_branch
    %17 = sbr.rel (0) target = $region13
  $region12: #{_lambda_.7} parent=0 // pred_region
    _
  $region13: #{_lambda_.7} parent=0 // pred_fallthru
    _
  // Predicated region
  $region14: #{_lambda_.7} parent=0 // pred_check
    _
  $region15: #{_lambda_.7} parent=0 // pred_check_branch
    %19 = sbr.rel (0) target = $region17
  $region16: #{_lambda_.7} parent=0 // pred_region
    _
  $region17: #{_lambda_.7} parent=0 // pred_fallthru
    _
  // Predicated region
  $region18: #{_lambda_.7} parent=0 // pred_check
    _
  $region19: #{_lambda_.7} parent=0 // pred_check_branch
    %21 = sbr.rel (0) target = $region21
  $region20: #{_lambda_.7} parent=0 // pred_region
    _
  $region21: #{_lambda_.7} parent=0 // pred_fallthru
    _
  // Predicated region
  $region22: #{_lambda_.7} parent=0 // pred_check
    _
  $region23: #{_lambda_.7} parent=0 // pred_check_branch
    %23 = sbr.rel (0) target = $region25
  $region24: #{_lambda_.7} parent=0 // pred_region
    _
  $region25: #{_lambda_.7} parent=0 // pred_fallthru
    _
  // Predicated region
  $region26: #{_lambda_.7} parent=0 // pred_check
    _
  $region27: #{_lambda_.7} parent=0 // pred_check_branch
    %25 = sbr.rel (0) target = $region29
  $region28: #{_lambda_.7} parent=0 // pred_region
    _
  $region29: #{_lambda_.7} parent=0 // pred_fallthru
    _
  %v26 = vld [vmem:[%s2] sm:$0xff]
  %v27 = vld [vmem:[%s2 + $0x8] sm:$0xff]
  %v28 = vld [vmem:[%s3] sm:$0xff]
  %v29 = vld [vmem:[%s3 + $0x8] sm:$0xff]
  %v30 = vld [vmem:[%s3 + $0x10] sm:$0xff]
  %v31 = vld [vmem:[%s3 + $0x18] sm:$0xff]
  %v32 = vld [vmem:[%s4] sm:$0x1]
  %v33 = vld [vmem:[%s5] sm:$0xff]
  %v34 = vld [vmem:[%s5 + $0x8] sm:$0xff]
  %v35 = vld [vmem:[%s5 + $0x10] sm:$0xff]
  %v36 = vld [vmem:[%s5 + $0x18] sm:$0xff]
  %v37 = vld [vmem:[%s6] sm:$0x1]
  %v38 = vld [vmem:[%s1] sm:$0xf]
  %v39 = vld [vmem:[%s0] sm:$0xf]
  %vm40 = vcmask 261120
  %v42 = vsel %vm40, %v38, 0
  %44 = vmatprep.subr.mxu0 0.0
  %45 = vmatpush1.msra.mxu0 %v28
  %46 = vmatprep.subr.mxu0 0.0
  %47 = vmatpush1.msra.mxu0 %v29
  %48 = vmatprep.subr.mxu0 0.0
  %49 = vmatpush1.msra.mxu0 %v30
  %50 = vmatprep.subr.mxu0 0.0
  %51 = vmatpush1.msra.mxu0 %v31
  %52 = vmatprep.subr.mxu0 0.0
  %53 = vmatpush1.msra.mxu0 0.0
  %54 = vmatprep.subr.mxu0 0.0
  %55 = vmatpush1.msra.mxu0 0.0
  %56 = vmatprep.subr.mxu0 0.0
  %57 = vmatpush1.msra.mxu0 0.0
  %58 = vmatprep.subr.mxu0 0.0
  %59 = vmatpush1.msra.mxu0 0.0
  %60 = vmatprep.subr.mxu0 0.0
  %61 = vmatpush1.msra.mxu0 0.0
  %62 = vmatprep.subr.mxu0 0.0
  %63 = vmatpush1.msra.mxu0 0.0
  %64 = vmatprep.subr.mxu0 0.0
  %65 = vmatpush1.msra.mxu0 0.0
  %66 = vmatprep.subr.mxu0 0.0
  %67 = vmatpush1.msra.mxu0 0.0
  %68 = vmatprep.subr.mxu0 0.0
  %69 = vmatpush1.msra.mxu0 0.0
  %70 = vmatprep.subr.mxu0 0.0
  %71 = vmatpush1.msra.mxu0 0.0
  %72 = vmatprep.subr.mxu0 0.0
  %73 = vmatpush1.msra.mxu0 0.0
  %74 = vmatprep.subr.mxu0 0.0
  %75 = vmatpush1.msra.mxu0 0.0
  %76 = vmatprep.subr.mxu0 0.0
  %77 = vmatpush1.msra.mxu0 0.0
  %78 = vmatprep.subr.mxu0 0.0
  %79 = vmatpush1.msra.mxu0 0.0
  %80 = vmatprep.subr.mxu0 0.0
  %81 = vmatpush1.msra.mxu0 0.0
  %82 = vmatprep.subr.mxu0 0.0
  %83 = vmatpush1.msra.mxu0 0.0
  %84 = vmatprep.subr.mxu0 0.0
  %85 = vmatpush1.msra.mxu0 0.0
  %86 = vmatprep.subr.mxu0 0.0
  %87 = vmatpush1.msra.mxu0 0.0
  %88 = vmatprep.subr.mxu0 0.0
  %89 = vmatpush1.msra.mxu0 0.0
  %90 = vmatprep.subr.mxu0 0.0
  %91 = vmatpush1.msra.mxu0 0.0
  %92 = vmatprep.subr.mxu0 0.0
  %93 = vmatpush1.msra.mxu0 0.0
  %94 = vmatprep.subr.mxu0 0.0
  %95 = vmatpush1.msra.mxu0 0.0
  %96 = vmatprep.subr.mxu0 0.0
  %97 = vmatpush1.msra.mxu0 0.0
  %98 = vmatprep.subr.mxu0 0.0
  %99 = vmatpush1.msra.mxu0 0.0
  %100 = vmatprep.subr.mxu0 0.0
  %101 = vmatpush1.msra.mxu0 0.0
  %102 = vmatprep.subr.mxu0 0.0
  %103 = vmatpush1.msra.mxu0 0.0
  %104 = vmatprep.subr.mxu0 0.0
  %105 = vmatpush1.msra.mxu0 0.0
  %106 = vmatprep.subr.mxu0 0.0
  %107 = vmatpush1.msra.mxu0 0.0
  %108 = vmatprep.mubr.f32.mxu0 0.0
  %109 = vmatmul.mubr.f32.gmra.mrb[0].mxu0 %v42
  %v110 = vpop.f32.mrb[0].mxu0
  %v111 = vadd.f32 0.0, %v110
  %v112 = vpop.f32.mrb[0].mxu0
  %113 = vdwg.mxu0
  %vm114 = vcmask 130048
  %v116 = vsel %vm114, %v39, 0
  %118 = vmatprep.subr.mxu0 0.0
  %119 = vmatpush1.msra.mxu0 %v26
  %120 = vmatprep.subr.mxu0 0.0
  %121 = vmatpush1.msra.mxu0 %v27
  %122 = vmatprep.subr.mxu0 0.0
  %123 = vmatpush1.msra.mxu0 0.0
  %124 = vmatprep.subr.mxu0 0.0
  %125 = vmatpush1.msra.mxu0 0.0
  %126 = vmatprep.subr.mxu0 0.0
  %127 = vmatpush1.msra.mxu0 0.0
  %128 = vmatprep.subr.mxu0 0.0
  %129 = vmatpush1.msra.mxu0 0.0
  %130 = vmatprep.subr.mxu0 0.0
  %131 = vmatpush1.msra.mxu0 0.0
  %132 = vmatprep.subr.mxu0 0.0
  %133 = vmatpush1.msra.mxu0 0.0
  %134 = vmatprep.subr.mxu0 0.0
  %135 = vmatpush1.msra.mxu0 0.0
  %136 = vmatprep.subr.mxu0 0.0
  %137 = vmatpush1.msra.mxu0 0.0
  %138 = vmatprep.subr.mxu0 0.0
  %139 = vmatpush1.msra.mxu0 0.0
  %140 = vmatprep.subr.mxu0 0.0
  %141 = vmatpush1.msra.mxu0 0.0
  %142 = vmatprep.subr.mxu0 0.0
  %143 = vmatpush1.msra.mxu0 0.0
  %144 = vmatprep.subr.mxu0 0.0
  %145 = vmatpush1.msra.mxu0 0.0
  %146 = vmatprep.subr.mxu0 0.0
  %147 = vmatpush1.msra.mxu0 0.0
  %148 = vmatprep.subr.mxu0 0.0
  %149 = vmatpush1.msra.mxu0 0.0
  %150 = vmatprep.subr.mxu0 0.0
  %151 = vmatpush1.msra.mxu0 0.0
  %152 = vmatprep.subr.mxu0 0.0
  %153 = vmatpush1.msra.mxu0 0.0
  %154 = vmatprep.subr.mxu0 0.0
  %155 = vmatpush1.msra.mxu0 0.0
  %156 = vmatprep.subr.mxu0 0.0
  %157 = vmatpush1.msra.mxu0 0.0
  %158 = vmatprep.subr.mxu0 0.0
  %159 = vmatpush1.msra.mxu0 0.0
  %160 = vmatprep.subr.mxu0 0.0
  %161 = vmatpush1.msra.mxu0 0.0
  %162 = vmatprep.subr.mxu0 0.0
  %163 = vmatpush1.msra.mxu0 0.0
  %164 = vmatprep.subr.mxu0 0.0
  %165 = vmatpush1.msra.mxu0 0.0
  %166 = vmatprep.subr.mxu0 0.0
  %167 = vmatpush1.msra.mxu0 0.0
  %168 = vmatprep.subr.mxu0 0.0
  %169 = vmatpush1.msra.mxu0 0.0
  %170 = vmatprep.subr.mxu0 0.0
  %171 = vmatpush1.msra.mxu0 0.0
  %172 = vmatprep.subr.mxu0 0.0
  %173 = vmatpush1.msra.mxu0 0.0
  %174 = vmatprep.subr.mxu0 0.0
  %175 = vmatpush1.msra.mxu0 0.0
  %176 = vmatprep.subr.mxu0 0.0
  %177 = vmatpush1.msra.mxu0 0.0
  %178 = vmatprep.subr.mxu0 0.0
  %179 = vmatpush1.msra.mxu0 0.0
  %180 = vmatprep.subr.mxu0 0.0
  %181 = vmatpush1.msra.mxu0 0.0
  %182 = vmatprep.mubr.f32.mxu0 0.0
  %183 = vmatmul.mubr.f32.gmra.mrb[0].mxu0 %v116
  %v184 = vpop.f32.mrb[0].mxu0
  %v185 = vadd.f32 %v111, %v184
  %v186 = vpop.f32.mrb[0].mxu0
  %187 = vdwg.mxu0
  %v189 = vlaneseq
  %v190 = vshrl.u32 %v189, 7
  %v191 = vsub.s32 0, %v190
  %v192 = vrot.slane %v32, %v191
  %v194 = vadd.f32 %v185, %v192
  %v195 = vxor.u32 %v194, 2147483648
  %v196 = vmul.f32 %v195, 1.442695
  %v197 = vpow.pop %v196
  %v198 = vadd.f32 %v197, 1.0
  %v199 = vrcp.pop %v198
  %v200 = vmul.f32 1.0, %v199
  %v201 = vtanh.pop %v194
  %v202 = vmul.f32 %v200, 0.0
  %204 = vrot.lane.b32.xlu0 %v201, 64
  %v205 = vpop.permute.xlu0 %204
  %v207 = vmul.f32 %v200, %v205
  %209 = vrot.lane.b32.xlu0 %v207, 32
  %v210 = vpop.permute.xlu0 %209
  %v212 = vadd.f32 %v202, %v210
  %v213 = vtanh.pop %v212
  %215 = vrot.lane.b32.xlu0 %v213, 64
  %v216 = vpop.permute.xlu0 %215
  %v218 = vmul.f32 %v200, %v216
  %v220 = vlaneseq
  %v221 = vshrl.u32 %v220, 7
  %v222 = vsub.s32 0, %v221
  %v223 = vrot.slane %v37, %v222
  %226 = vrot.lane.b32.xlu0 %v218, 32
  %v227 = vpop.permute.xlu0 %226
  %v228 = vsel %vm40, %v227, 0
  %230 = vmatprep.subr.mxu0 0.0
  %231 = vmatpush1.msra.mxu0 %v33
  %232 = vmatprep.subr.mxu0 0.0
  %233 = vmatpush1.msra.mxu0 %v34
  %234 = vmatprep.subr.mxu0 0.0
  %235 = vmatpush1.msra.mxu0 %v35
  %236 = vmatprep.subr.mxu0 0.0
  %237 = vmatpush1.msra.mxu0 %v36
  %238 = vmatprep.subr.mxu0 0.0
  %239 = vmatpush1.msra.mxu0 0.0
  %240 = vmatprep.subr.mxu0 0.0
  %241 = vmatpush1.msra.mxu0 0.0
  %242 = vmatprep.subr.mxu0 0.0
  %243 = vmatpush1.msra.mxu0 0.0
  %244 = vmatprep.subr.mxu0 0.0
  %245 = vmatpush1.msra.mxu0 0.0
  %246 = vmatprep.subr.mxu0 0.0
  %247 = vmatpush1.msra.mxu0 0.0
  %248 = vmatprep.subr.mxu0 0.0
  %249 = vmatpush1.msra.mxu0 0.0
  %250 = vmatprep.subr.mxu0 0.0
  %251 = vmatpush1.msra.mxu0 0.0
  %252 = vmatprep.subr.mxu0 0.0
  %253 = vmatpush1.msra.mxu0 0.0
  %254 = vmatprep.subr.mxu0 0.0
  %255 = vmatpush1.msra.mxu0 0.0
  %256 = vmatprep.subr.mxu0 0.0
  %257 = vmatpush1.msra.mxu0 0.0
  %258 = vmatprep.subr.mxu0 0.0
  %259 = vmatpush1.msra.mxu0 0.0
  %260 = vmatprep.subr.mxu0 0.0
  %261 = vmatpush1.msra.mxu0 0.0
  %262 = vmatprep.subr.mxu0 0.0
  %263 = vmatpush1.msra.mxu0 0.0
  %264 = vmatprep.subr.mxu0 0.0
  %265 = vmatpush1.msra.mxu0 0.0
  %266 = vmatprep.subr.mxu0 0.0
  %267 = vmatpush1.msra.mxu0 0.0
  %268 = vmatprep.subr.mxu0 0.0
  %269 = vmatpush1.msra.mxu0 0.0
  %270 = vmatprep.subr.mxu0 0.0
  %271 = vmatpush1.msra.mxu0 0.0
  %272 = vmatprep.subr.mxu0 0.0
  %273 = vmatpush1.msra.mxu0 0.0
  %274 = vmatprep.subr.mxu0 0.0
  %275 = vmatpush1.msra.mxu0 0.0
  %276 = vmatprep.subr.mxu0 0.0
  %277 = vmatpush1.msra.mxu0 0.0
  %278 = vmatprep.subr.mxu0 0.0
  %279 = vmatpush1.msra.mxu0 0.0
  %280 = vmatprep.subr.mxu0 0.0
  %281 = vmatpush1.msra.mxu0 0.0
  %282 = vmatprep.subr.mxu0 0.0
  %283 = vmatpush1.msra.mxu0 0.0
  %284 = vmatprep.subr.mxu0 0.0
  %285 = vmatpush1.msra.mxu0 0.0
  %286 = vmatprep.subr.mxu0 0.0
  %287 = vmatpush1.msra.mxu0 0.0
  %288 = vmatprep.subr.mxu0 0.0
  %289 = vmatpush1.msra.mxu0 0.0
  %290 = vmatprep.subr.mxu0 0.0
  %291 = vmatpush1.msra.mxu0 0.0
  %292 = vmatprep.subr.mxu0 0.0
  %293 = vmatpush1.msra.mxu0 0.0
  %294 = vmatprep.mubr.f32.mxu0 0.0
  %295 = vmatmul.mubr.f32.gmra.mrb[0].mxu0 %v228
  %v296 = vpop.f32.mrb[0].mxu0
  %v297 = vadd.f32 %v223, %v296
  %v298 = vpop.f32.mrb[0].mxu0
  %299 = vdwg.mxu0
  %vm300 = vcmask 125952
  %301 = vst.msk [vmem:[%s7] sm:$0xf] %vm300, %v297
  %s302 = scalar_lea.vmem %s0, 4
  %v303 = vld [vmem:[%s302] sm:$0xf]
  %304 = vmatprep.subr.mxu0 0.0
  %305 = vmatpush1.msra.mxu0 %v28
  %306 = vmatprep.subr.mxu0 0.0
  %307 = vmatpush1.msra.mxu0 %v29
  %308 = vmatprep.subr.mxu0 0.0
  %309 = vmatpush1.msra.mxu0 %v30
  %310 = vmatprep.subr.mxu0 0.0
  %311 = vmatpush1.msra.mxu0 %v31
  %312 = vmatprep.subr.mxu0 0.0
  %313 = vmatpush1.msra.mxu0 0.0
  %314 = vmatprep.subr.mxu0 0.0
  %315 = vmatpush1.msra.mxu0 0.0
  %316 = vmatprep.subr.mxu0 0.0
  %317 = vmatpush1.msra.mxu0 0.0
  %318 = vmatprep.subr.mxu0 0.0
  %319 = vmatpush1.msra.mxu0 0.0
  %320 = vmatprep.subr.mxu0 0.0
  %321 = vmatpush1.msra.mxu0 0.0
  %322 = vmatprep.subr.mxu0 0.0
  %323 = vmatpush1.msra.mxu0 0.0
  %324 = vmatprep.subr.mxu0 0.0
  %325 = vmatpush1.msra.mxu0 0.0
  %326 = vmatprep.subr.mxu0 0.0
  %327 = vmatpush1.msra.mxu0 0.0
  %328 = vmatprep.subr.mxu0 0.0
  %329 = vmatpush1.msra.mxu0 0.0
  %330 = vmatprep.subr.mxu0 0.0
  %331 = vmatpush1.msra.mxu0 0.0
  %332 = vmatprep.subr.mxu0 0.0
  %333 = vmatpush1.msra.mxu0 0.0
  %334 = vmatprep.subr.mxu0 0.0
  %335 = vmatpush1.msra.mxu0 0.0
  %336 = vmatprep.subr.mxu0 0.0
  %337 = vmatpush1.msra.mxu0 0.0
  %338 = vmatprep.subr.mxu0 0.0
  %339 = vmatpush1.msra.mxu0 0.0
  %340 = vmatprep.subr.mxu0 0.0
  %341 = vmatpush1.msra.mxu0 0.0
  %342 = vmatprep.subr.mxu0 0.0
  %343 = vmatpush1.msra.mxu0 0.0
  %344 = vmatprep.subr.mxu0 0.0
  %345 = vmatpush1.msra.mxu0 0.0
  %346 = vmatprep.subr.mxu0 0.0
  %347 = vmatpush1.msra.mxu0 0.0
  %348 = vmatprep.subr.mxu0 0.0
  %349 = vmatpush1.msra.mxu0 0.0
  %350 = vmatprep.subr.mxu0 0.0
  %351 = vmatpush1.msra.mxu0 0.0
  %352 = vmatprep.subr.mxu0 0.0
  %353 = vmatpush1.msra.mxu0 0.0
  %354 = vmatprep.subr.mxu0 0.0
  %355 = vmatpush1.msra.mxu0 0.0
  %356 = vmatprep.subr.mxu0 0.0
  %357 = vmatpush1.msra.mxu0 0.0
  %358 = vmatprep.subr.mxu0 0.0
  %359 = vmatpush1.msra.mxu0 0.0
  %360 = vmatprep.subr.mxu0 0.0
  %361 = vmatpush1.msra.mxu0 0.0
  %362 = vmatprep.subr.mxu0 0.0
  %363 = vmatpush1.msra.mxu0 0.0
  %364 = vmatprep.subr.mxu0 0.0
  %365 = vmatpush1.msra.mxu0 0.0
  %366 = vmatprep.subr.mxu0 0.0
  %367 = vmatpush1.msra.mxu0 0.0
  %368 = vmatprep.mubr.f32.mxu0 0.0
  %369 = vmatmul.mubr.f32.gmra.mrb[0].mxu0 %v228
  %v370 = vpop.f32.mrb[0].mxu0
  %v371 = vadd.f32 0.0, %v370
  %v372 = vpop.f32.mrb[0].mxu0
  %373 = vdwg.mxu0
  %v375 = vsel %vm114, %v303, 0
  %377 = vmatprep.subr.mxu0 0.0
  %378 = vmatpush1.msra.mxu0 %v26
  %379 = vmatprep.subr.mxu0 0.0
  %380 = vmatpush1.msra.mxu0 %v27
  %381 = vmatprep.subr.mxu0 0.0
  %382 = vmatpush1.msra.mxu0 0.0
  %383 = vmatprep.subr.mxu0 0.0
  %384 = vmatpush1.msra.mxu0 0.0
  %385 = vmatprep.subr.mxu0 0.0
  %386 = vmatpush1.msra.mxu0 0.0
  %387 = vmatprep.subr.mxu0 0.0
  %388 = vmatpush1.msra.mxu0 0.0
  %389 = vmatprep.subr.mxu0 0.0
  %390 = vmatpush1.msra.mxu0 0.0
  %391 = vmatprep.subr.mxu0 0.0
  %392 = vmatpush1.msra.mxu0 0.0
  %393 = vmatprep.subr.mxu0 0.0
  %394 = vmatpush1.msra.mxu0 0.0
  %395 = vmatprep.subr.mxu0 0.0
  %396 = vmatpush1.msra.mxu0 0.0
  %397 = vmatprep.subr.mxu0 0.0
  %398 = vmatpush1.msra.mxu0 0.0
  %399 = vmatprep.subr.mxu0 0.0
  %400 = vmatpush1.msra.mxu0 0.0
  %401 = vmatprep.subr.mxu0 0.0
  %402 = vmatpush1.msra.mxu0 0.0
  %403 = vmatprep.subr.mxu0 0.0
  %404 = vmatpush1.msra.mxu0 0.0
  %405 = vmatprep.subr.mxu0 0.0
  %406 = vmatpush1.msra.mxu0 0.0
  %407 = vmatprep.subr.mxu0 0.0
  %408 = vmatpush1.msra.mxu0 0.0
  %409 = vmatprep.subr.mxu0 0.0
  %410 = vmatpush1.msra.mxu0 0.0
  %411 = vmatprep.subr.mxu0 0.0
  %412 = vmatpush1.msra.mxu0 0.0
  %413 = vmatprep.subr.mxu0 0.0
  %414 = vmatpush1.msra.mxu0 0.0
  %415 = vmatprep.subr.mxu0 0.0
  %416 = vmatpush1.msra.mxu0 0.0
  %417 = vmatprep.subr.mxu0 0.0
  %418 = vmatpush1.msra.mxu0 0.0
  %419 = vmatprep.subr.mxu0 0.0
  %420 = vmatpush1.msra.mxu0 0.0
  %421 = vmatprep.subr.mxu0 0.0
  %422 = vmatpush1.msra.mxu0 0.0
  %423 = vmatprep.subr.mxu0 0.0
  %424 = vmatpush1.msra.mxu0 0.0
  %425 = vmatprep.subr.mxu0 0.0
  %426 = vmatpush1.msra.mxu0 0.0
  %427 = vmatprep.subr.mxu0 0.0
  %428 = vmatpush1.msra.mxu0 0.0
  %429 = vmatprep.subr.mxu0 0.0
  %430 = vmatpush1.msra.mxu0 0.0
  %431 = vmatprep.subr.mxu0 0.0
  %432 = vmatpush1.msra.mxu0 0.0
  %433 = vmatprep.subr.mxu0 0.0
  %434 = vmatpush1.msra.mxu0 0.0
  %435 = vmatprep.subr.mxu0 0.0
  %436 = vmatpush1.msra.mxu0 0.0
  %437 = vmatprep.subr.mxu0 0.0
  %438 = vmatpush1.msra.mxu0 0.0
  %439 = vmatprep.subr.mxu0 0.0
  %440 = vmatpush1.msra.mxu0 0.0
  %441 = vmatprep.mubr.f32.mxu0 0.0
  %442 = vmatmul.mubr.f32.gmra.mrb[0].mxu0 %v375
  %v443 = vpop.f32.mrb[0].mxu0
  %v444 = vadd.f32 %v371, %v443
  %v445 = vpop.f32.mrb[0].mxu0
  %446 = vdwg.mxu0
  %v447 = vadd.f32 %v444, %v192
  %v448 = vxor.u32 %v447, 2147483648
  %v449 = vmul.f32 %v448, 1.442695
  %v450 = vpow.pop %v449
  %v451 = vadd.f32 %v450, 1.0
  %v452 = vrcp.pop %v451
  %v453 = vmul.f32 1.0, %v452
  %v454 = vtanh.pop %v447
  %v455 = vmul.f32 %v453, %v212
  %457 = vrot.lane.b32.xlu0 %v454, 64
  %v458 = vpop.permute.xlu0 %457
  %v460 = vmul.f32 %v453, %v458
  %462 = vrot.lane.b32.xlu0 %v460, 32
  %v463 = vpop.permute.xlu0 %462
  %v465 = vadd.f32 %v455, %v463
  %v466 = vtanh.pop %v465
  %468 = vrot.lane.b32.xlu0 %v466, 64
  %v469 = vpop.permute.xlu0 %468
  %v471 = vmul.f32 %v453, %v469
  %473 = vrot.lane.b32.xlu0 %v471, 32
  %v474 = vpop.permute.xlu0 %473
  %v475 = vsel %vm40, %v474, 0
  %477 = vmatprep.subr.mxu0 0.0
  %478 = vmatpush1.msra.mxu0 %v33
  %479 = vmatprep.subr.mxu0 0.0
  %480 = vmatpush1.msra.mxu0 %v34
  %481 = vmatprep.subr.mxu0 0.0
  %482 = vmatpush1.msra.mxu0 %v35
  %483 = vmatprep.subr.mxu0 0.0
  %484 = vmatpush1.msra.mxu0 %v36
  %485 = vmatprep.subr.mxu0 0.0
  %486 = vmatpush1.msra.mxu0 0.0
  %487 = vmatprep.subr.mxu0 0.0
  %488 = vmatpush1.msra.mxu0 0.0
  %489 = vmatprep.subr.mxu0 0.0
  %490 = vmatpush1.msra.mxu0 0.0
  %491 = vmatprep.subr.mxu0 0.0
  %492 = vmatpush1.msra.mxu0 0.0
  %493 = vmatprep.subr.mxu0 0.0
  %494 = vmatpush1.msra.mxu0 0.0
  %495 = vmatprep.subr.mxu0 0.0
  %496 = vmatpush1.msra.mxu0 0.0
  %497 = vmatprep.subr.mxu0 0.0
  %498 = vmatpush1.msra.mxu0 0.0
  %499 = vmatprep.subr.mxu0 0.0
  %500 = vmatpush1.msra.mxu0 0.0
  %501 = vmatprep.subr.mxu0 0.0
  %502 = vmatpush1.msra.mxu0 0.0
  %503 = vmatprep.subr.mxu0 0.0
  %504 = vmatpush1.msra.mxu0 0.0
  %505 = vmatprep.subr.mxu0 0.0
  %506 = vmatpush1.msra.mxu0 0.0
  %507 = vmatprep.subr.mxu0 0.0
  %508 = vmatpush1.msra.mxu0 0.0
  %509 = vmatprep.subr.mxu0 0.0
  %510 = vmatpush1.msra.mxu0 0.0
  %511 = vmatprep.subr.mxu0 0.0
  %512 = vmatpush1.msra.mxu0 0.0
  %513 = vmatprep.subr.mxu0 0.0
  %514 = vmatpush1.msra.mxu0 0.0
  %515 = vmatprep.subr.mxu0 0.0
  %516 = vmatpush1.msra.mxu0 0.0
  %517 = vmatprep.subr.mxu0 0.0
  %518 = vmatpush1.msra.mxu0 0.0
  %519 = vmatprep.subr.mxu0 0.0
  %520 = vmatpush1.msra.mxu0 0.0
  %521 = vmatprep.subr.mxu0 0.0
  %522 = vmatpush1.msra.mxu0 0.0
  %523 = vmatprep.subr.mxu0 0.0
  %524 = vmatpush1.msra.mxu0 0.0
  %525 = vmatprep.subr.mxu0 0.0
  %526 = vmatpush1.msra.mxu0 0.0
  %527 = vmatprep.subr.mxu0 0.0
  %528 = vmatpush1.msra.mxu0 0.0
  %529 = vmatprep.subr.mxu0 0.0
  %530 = vmatpush1.msra.mxu0 0.0
  %531 = vmatprep.subr.mxu0 0.0
  %532 = vmatpush1.msra.mxu0 0.0
  %533 = vmatprep.subr.mxu0 0.0
  %534 = vmatpush1.msra.mxu0 0.0
  %535 = vmatprep.subr.mxu0 0.0
  %536 = vmatpush1.msra.mxu0 0.0
  %537 = vmatprep.subr.mxu0 0.0
  %538 = vmatpush1.msra.mxu0 0.0
  %539 = vmatprep.subr.mxu0 0.0
  %540 = vmatpush1.msra.mxu0 0.0
  %541 = vmatprep.mubr.f32.mxu0 0.0
  %542 = vmatmul.mubr.f32.gmra.mrb[0].mxu0 %v475
  %v543 = vpop.f32.mrb[0].mxu0
  %v544 = vadd.f32 %v223, %v543
  %v545 = vpop.f32.mrb[0].mxu0
  %546 = vdwg.mxu0
  %s547 = scalar_lea.vmem %s7, 4
  %548 = vst.msk [vmem:[%s547] sm:$0xf] %vm300, %v544
  // Predicated region
  $region30: #{_lambda_.7} parent=0 // pred_check
    _
  $region31: #{_lambda_.7} parent=0 // pred_check_branch
    %550 = sbr.rel (0) target = $region33
  $region32: #{_lambda_.7} parent=0 // pred_region
    _
  $region33: #{_lambda_.7} parent=0 // pred_fallthru
    _
  // Predicated region
  $region34: #{_lambda_.7} parent=0 // pred_check
    _
  $region35: #{_lambda_.7} parent=0 // pred_check_branch
    %552 = sbr.rel (0) target = $region37
  $region36: #{_lambda_.7} parent=0 // pred_region
    _
  $region37: #{_lambda_.7} parent=0 // pred_fallthru
    _

// kernel: _lambda_.8
$region0: #{_lambda_.8}
  #allocation0 [shape = 'u32[]', space=smem, size = 0x4, offset = 0x4, fixed_abs, tag = 'smem constant byte address 0x4 - core index']
  #allocation1 [shape = 'u32[144,128]{1,0:T(1,128)}', space=vmem, size = 0x12000, scoped, tag = 'internal scratch']
  %s0 = inlined_call_operand.vmem [shape: f32[4,8,8], index: 0, kind: input, shape index: {}]
  %s1 = inlined_call_operand.vmem [shape: f32[8,16], index: 1, kind: input, shape index: {}]
  %s2 = inlined_call_operand.vmem [shape: f32[8,64], index: 2, kind: input, shape index: {}]
  %s3 = inlined_call_operand.vmem [shape: f32[16,64], index: 3, kind: input, shape index: {}]
  %s4 = inlined_call_operand.vmem [shape: f32[1,64], index: 4, kind: input, shape index: {}]
  %s5 = inlined_call_operand.vmem [shape: f32[16,8], index: 5, kind: input, shape index: {}]
  %s6 = inlined_call_operand.vmem [shape: f32[1,8], index: 6, kind: input, shape index: {}]
  %s7 = inlined_call_operand.vmem [shape: f32[4,8,8], index: 7, kind: output, shape index: {}]
  %s8 = sld [smem:[#allocation0]]
  $region38: #{_lambda_.8} parent=0
    _
  %s10 = ssub.s32 1, %s8
  %s11 = scalar_select 0, %s10, %s8
  // Predicated region
  $region2: #{_lambda_.8} parent=0 // pred_check
    _
  $region3: #{_lambda_.8} parent=0 // pred_check_branch
    %13 = sbr.rel (0) target = $region5
  $region4: #{_lambda_.8} parent=0 // pred_region
    _
  $region5: #{_lambda_.8} parent=0 // pred_fallthru
    _
  // Predicated region
  $region6: #{_lambda_.8} parent=0 // pred_check
    _
  $region7: #{_lambda_.8} parent=0 // pred_check_branch
    %15 = sbr.rel (0) target = $region9
  $region8: #{_lambda_.8} parent=0 // pred_region
    _
  $region9: #{_lambda_.8} parent=0 // pred_fallthru
    _
  // Predicated region
  $region10: #{_lambda_.8} parent=0 // pred_check
    _
  $region11: #{_lambda_.8} parent=0 // pred_check_branch
    %17 = sbr.rel (0) target = $region13
  $region12: #{_lambda_.8} parent=0 // pred_region
    _
  $region13: #{_lambda_.8} parent=0 // pred_fallthru
    _
  // Predicated region
  $region14: #{_lambda_.8} parent=0 // pred_check
    _
  $region15: #{_lambda_.8} parent=0 // pred_check_branch
    %19 = sbr.rel (0) target = $region17
  $region16: #{_lambda_.8} parent=0 // pred_region
    _
  $region17: #{_lambda_.8} parent=0 // pred_fallthru
    _
  // Predicated region
  $region18: #{_lambda_.8} parent=0 // pred_check
    _
  $region19: #{_lambda_.8} parent=0 // pred_check_branch
    %21 = sbr.rel (0) target = $region21
  $region20: #{_lambda_.8} parent=0 // pred_region
    _
  $region21: #{_lambda_.8} parent=0 // pred_fallthru
    _
  // Predicated region
  $region22: #{_lambda_.8} parent=0 // pred_check
    _
  $region23: #{_lambda_.8} parent=0 // pred_check_branch
    %23 = sbr.rel (0) target = $region25
  $region24: #{_lambda_.8} parent=0 // pred_region
    _
  $region25: #{_lambda_.8} parent=0 // pred_fallthru
    _
  // Predicated region
  $region26: #{_lambda_.8} parent=0 // pred_check
    _
  $region27: #{_lambda_.8} parent=0 // pred_check_branch
    %25 = sbr.rel (0) target = $region29
  $region28: #{_lambda_.8} parent=0 // pred_region
    _
  $region29: #{_lambda_.8} parent=0 // pred_fallthru
    _
  %v26 = vld [vmem:[%s2] sm:$0xff]
  %v27 = vld [vmem:[%s3] sm:$0xff]
  %v28 = vld [vmem:[%s3 + $0x8] sm:$0xff]
  %v29 = vld [vmem:[%s4] sm:$0x1]
  %v30 = vld [vmem:[%s5] sm:$0xff]
  %v31 = vld [vmem:[%s5 + $0x8] sm:$0xff]
  %v32 = vld [vmem:[%s6] sm:$0x1]
  %v33 = vld [vmem:[%s1] sm:$0xff]
  %v34 = vld [vmem:[%s0] sm:$0xff]
  %vm35 = vcmask 130048
  %v37 = vsel %vm35, %v33, 0
  %39 = vmatprep.subr.mxu0 0.0
  %40 = vmatpush1.msra.mxu0 %v27
  %41 = vmatprep.subr.mxu0 0.0
  %42 = vmatpush1.msra.mxu0 %v28
  %43 = vmatprep.subr.mxu0 0.0
  %44 = vmatpush1.msra.mxu0 0.0
  %45 = vmatprep.subr.mxu0 0.0
  %46 = vmatpush1.msra.mxu0 0.0
  %47 = vmatprep.subr.mxu0 0.0
  %48 = vmatpush1.msra.mxu0 0.0
  %49 = vmatprep.subr.mxu0 0.0
  %50 = vmatpush1.msra.mxu0 0.0
  %51 = vmatprep.subr.mxu0 0.0
  %52 = vmatpush1.msra.mxu0 0.0
  %53 = vmatprep.subr.mxu0 0.0
  %54 = vmatpush1.msra.mxu0 0.0
  %55 = vmatprep.subr.mxu0 0.0
  %56 = vmatpush1.msra.mxu0 0.0
  %57 = vmatprep.subr.mxu0 0.0
  %58 = vmatpush1.msra.mxu0 0.0
  %59 = vmatprep.subr.mxu0 0.0
  %60 = vmatpush1.msra.mxu0 0.0
  %61 = vmatprep.subr.mxu0 0.0
  %62 = vmatpush1.msra.mxu0 0.0
  %63 = vmatprep.subr.mxu0 0.0
  %64 = vmatpush1.msra.mxu0 0.0
  %65 = vmatprep.subr.mxu0 0.0
  %66 = vmatpush1.msra.mxu0 0.0
  %67 = vmatprep.subr.mxu0 0.0
  %68 = vmatpush1.msra.mxu0 0.0
  %69 = vmatprep.subr.mxu0 0.0
  %70 = vmatpush1.msra.mxu0 0.0
  %71 = vmatprep.subr.mxu0 0.0
  %72 = vmatpush1.msra.mxu0 0.0
  %73 = vmatprep.subr.mxu0 0.0
  %74 = vmatpush1.msra.mxu0 0.0
  %75 = vmatprep.subr.mxu0 0.0
  %76 = vmatpush1.msra.mxu0 0.0
  %77 = vmatprep.subr.mxu0 0.0
  %78 = vmatpush1.msra.mxu0 0.0
  %79 = vmatprep.subr.mxu0 0.0
  %80 = vmatpush1.msra.mxu0 0.0
  %81 = vmatprep.subr.mxu0 0.0
  %82 = vmatpush1.msra.mxu0 0.0
  %83 = vmatprep.subr.mxu0 0.0
  %84 = vmatpush1.msra.mxu0 0.0
  %85 = vmatprep.subr.mxu0 0.0
  %86 = vmatpush1.msra.mxu0 0.0
  %87 = vmatprep.subr.mxu0 0.0
  %88 = vmatpush1.msra.mxu0 0.0
  %89 = vmatprep.subr.mxu0 0.0
  %90 = vmatpush1.msra.mxu0 0.0
  %91 = vmatprep.subr.mxu0 0.0
  %92 = vmatpush1.msra.mxu0 0.0
  %93 = vmatprep.subr.mxu0 0.0
  %94 = vmatpush1.msra.mxu0 0.0
  %95 = vmatprep.subr.mxu0 0.0
  %96 = vmatpush1.msra.mxu0 0.0
  %97 = vmatprep.subr.mxu0 0.0
  %98 = vmatpush1.msra.mxu0 0.0
  %99 = vmatprep.subr.mxu0 0.0
  %100 = vmatpush1.msra.mxu0 0.0
  %101 = vmatprep.subr.mxu0 0.0
  %102 = vmatpush1.msra.mxu0 0.0
  %103 = vmatprep.mubr.f32.mxu0 0.0
  %104 = vmatmul.mubr.f32.gmra.mrb[0].mxu0 %v37
  %v105 = vpop.f32.mrb[0].mxu0
  %v106 = vadd.f32 0.0, %v105
  %v107 = vpop.f32.mrb[0].mxu0
  %108 = vdwg.mxu0
  %vm109 = vcmask 64512
  %v111 = vsel %vm109, %v34, 0
  %113 = vmatprep.subr.mxu0 0.0
  %114 = vmatpush1.msra.mxu0 %v26
  %115 = vmatprep.subr.mxu0 0.0
  %116 = vmatpush1.msra.mxu0 0.0
  %117 = vmatprep.subr.mxu0 0.0
  %118 = vmatpush1.msra.mxu0 0.0
  %119 = vmatprep.subr.mxu0 0.0
  %120 = vmatpush1.msra.mxu0 0.0
  %121 = vmatprep.subr.mxu0 0.0
  %122 = vmatpush1.msra.mxu0 0.0
  %123 = vmatprep.subr.mxu0 0.0
  %124 = vmatpush1.msra.mxu0 0.0
  %125 = vmatprep.subr.mxu0 0.0
  %126 = vmatpush1.msra.mxu0 0.0
  %127 = vmatprep.subr.mxu0 0.0
  %128 = vmatpush1.msra.mxu0 0.0
  %129 = vmatprep.subr.mxu0 0.0
  %130 = vmatpush1.msra.mxu0 0.0
  %131 = vmatprep.subr.mxu0 0.0
  %132 = vmatpush1.msra.mxu0 0.0
  %133 = vmatprep.subr.mxu0 0.0
  %134 = vmatpush1.msra.mxu0 0.0
  %135 = vmatprep.subr.mxu0 0.0
  %136 = vmatpush1.msra.mxu0 0.0
  %137 = vmatprep.subr.mxu0 0.0
  %138 = vmatpush1.msra.mxu0 0.0
  %139 = vmatprep.subr.mxu0 0.0
  %140 = vmatpush1.msra.mxu0 0.0
  %141 = vmatprep.subr.mxu0 0.0
  %142 = vmatpush1.msra.mxu0 0.0
  %143 = vmatprep.subr.mxu0 0.0
  %144 = vmatpush1.msra.mxu0 0.0
  %145 = vmatprep.subr.mxu0 0.0
  %146 = vmatpush1.msra.mxu0 0.0
  %147 = vmatprep.subr.mxu0 0.0
  %148 = vmatpush1.msra.mxu0 0.0
  %149 = vmatprep.subr.mxu0 0.0
  %150 = vmatpush1.msra.mxu0 0.0
  %151 = vmatprep.subr.mxu0 0.0
  %152 = vmatpush1.msra.mxu0 0.0
  %153 = vmatprep.subr.mxu0 0.0
  %154 = vmatpush1.msra.mxu0 0.0
  %155 = vmatprep.subr.mxu0 0.0
  %156 = vmatpush1.msra.mxu0 0.0
  %157 = vmatprep.subr.mxu0 0.0
  %158 = vmatpush1.msra.mxu0 0.0
  %159 = vmatprep.subr.mxu0 0.0
  %160 = vmatpush1.msra.mxu0 0.0
  %161 = vmatprep.subr.mxu0 0.0
  %162 = vmatpush1.msra.mxu0 0.0
  %163 = vmatprep.subr.mxu0 0.0
  %164 = vmatpush1.msra.mxu0 0.0
  %165 = vmatprep.subr.mxu0 0.0
  %166 = vmatpush1.msra.mxu0 0.0
  %167 = vmatprep.subr.mxu0 0.0
  %168 = vmatpush1.msra.mxu0 0.0
  %169 = vmatprep.subr.mxu0 0.0
  %170 = vmatpush1.msra.mxu0 0.0
  %171 = vmatprep.subr.mxu0 0.0
  %172 = vmatpush1.msra.mxu0 0.0
  %173 = vmatprep.subr.mxu0 0.0
  %174 = vmatpush1.msra.mxu0 0.0
  %175 = vmatprep.subr.mxu0 0.0
  %176 = vmatpush1.msra.mxu0 0.0
  %177 = vmatprep.mubr.f32.mxu0 0.0
  %178 = vmatmul.mubr.f32.gmra.mrb[0].mxu0 %v111
  %v179 = vpop.f32.mrb[0].mxu0
  %v180 = vadd.f32 %v106, %v179
  %v181 = vpop.f32.mrb[0].mxu0
  %182 = vdwg.mxu0
  %v184 = vlaneseq
  %v185 = vshrl.u32 %v184, 7
  %v186 = vsub.s32 0, %v185
  %v187 = vrot.slane %v29, %v186
  %v189 = vadd.f32 %v180, %v187
  %v190 = vxor.u32 %v189, 2147483648
  %v191 = vmul.f32 %v190, 1.442695
  %v192 = vpow.pop %v191
  %v193 = vadd.f32 %v192, 1.0
  %v194 = vrcp.pop %v193
  %v195 = vmul.f32 1.0, %v194
  %v196 = vtanh.pop %v189
  %v197 = vmul.f32 %v195, 0.0
  %199 = vrot.lane.b32.xlu0 %v196, 96
  %v200 = vpop.permute.xlu0 %199
  %v202 = vmul.f32 %v195, %v200
  %204 = vrot.lane.b32.xlu0 %v202, 16
  %v205 = vpop.permute.xlu0 %204
  %v207 = vadd.f32 %v197, %v205
  %v208 = vtanh.pop %v207
  %210 = vrot.lane.b32.xlu0 %v208, 32
  %v211 = vpop.permute.xlu0 %210
  %v213 = vmul.f32 %v195, %v211
  %v215 = vlaneseq
  %v216 = vshrl.u32 %v215, 7
  %v217 = vsub.s32 0, %v216
  %v218 = vrot.slane %v32, %v217
  %221 = vrot.lane.b32.xlu0 %v213, 80
  %v222 = vpop.permute.xlu0 %221
  %v223 = vsel %vm35, %v222, 0
  %225 = vmatprep.subr.mxu0 0.0
  %226 = vmatpush1.msra.mxu0 %v30
  %227 = vmatprep.subr.mxu0 0.0
  %228 = vmatpush1.msra.mxu0 %v31
  %229 = vmatprep.subr.mxu0 0.0
  %230 = vmatpush1.msra.mxu0 0.0
  %231 = vmatprep.subr.mxu0 0.0
  %232 = vmatpush1.msra.mxu0 0.0
  %233 = vmatprep.subr.mxu0 0.0
  %234 = vmatpush1.msra.mxu0 0.0
  %235 = vmatprep.subr.mxu0 0.0
  %236 = vmatpush1.msra.mxu0 0.0
  %237 = vmatprep.subr.mxu0 0.0
  %238 = vmatpush1.msra.mxu0 0.0
  %239 = vmatprep.subr.mxu0 0.0
  %240 = vmatpush1.msra.mxu0 0.0
  %241 = vmatprep.subr.mxu0 0.0
  %242 = vmatpush1.msra.mxu0 0.0
  %243 = vmatprep.subr.mxu0 0.0
  %244 = vmatpush1.msra.mxu0 0.0
  %245 = vmatprep.subr.mxu0 0.0
  %246 = vmatpush1.msra.mxu0 0.0
  %247 = vmatprep.subr.mxu0 0.0
  %248 = vmatpush1.msra.mxu0 0.0
  %249 = vmatprep.subr.mxu0 0.0
  %250 = vmatpush1.msra.mxu0 0.0
  %251 = vmatprep.subr.mxu0 0.0
  %252 = vmatpush1.msra.mxu0 0.0
  %253 = vmatprep.subr.mxu0 0.0
  %254 = vmatpush1.msra.mxu0 0.0
  %255 = vmatprep.subr.mxu0 0.0
  %256 = vmatpush1.msra.mxu0 0.0
  %257 = vmatprep.subr.mxu0 0.0
  %258 = vmatpush1.msra.mxu0 0.0
  %259 = vmatprep.subr.mxu0 0.0
  %260 = vmatpush1.msra.mxu0 0.0
  %261 = vmatprep.subr.mxu0 0.0
  %262 = vmatpush1.msra.mxu0 0.0
  %263 = vmatprep.subr.mxu0 0.0
  %264 = vmatpush1.msra.mxu0 0.0
  %265 = vmatprep.subr.mxu0 0.0
  %266 = vmatpush1.msra.mxu0 0.0
  %267 = vmatprep.subr.mxu0 0.0
  %268 = vmatpush1.msra.mxu0 0.0
  %269 = vmatprep.subr.mxu0 0.0
  %270 = vmatpush1.msra.mxu0 0.0
  %271 = vmatprep.subr.mxu0 0.0
  %272 = vmatpush1.msra.mxu0 0.0
  %273 = vmatprep.subr.mxu0 0.0
  %274 = vmatpush1.msra.mxu0 0.0
  %275 = vmatprep.subr.mxu0 0.0
  %276 = vmatpush1.msra.mxu0 0.0
  %277 = vmatprep.subr.mxu0 0.0
  %278 = vmatpush1.msra.mxu0 0.0
  %279 = vmatprep.subr.mxu0 0.0
  %280 = vmatpush1.msra.mxu0 0.0
  %281 = vmatprep.subr.mxu0 0.0
  %282 = vmatpush1.msra.mxu0 0.0
  %283 = vmatprep.subr.mxu0 0.0
  %284 = vmatpush1.msra.mxu0 0.0
  %285 = vmatprep.subr.mxu0 0.0
  %286 = vmatpush1.msra.mxu0 0.0
  %287 = vmatprep.subr.mxu0 0.0
  %288 = vmatpush1.msra.mxu0 0.0
  %289 = vmatprep.mubr.f32.mxu0 0.0
  %290 = vmatmul.mubr.f32.gmra.mrb[0].mxu0 %v223
  %v291 = vpop.f32.mrb[0].mxu0
  %v292 = vadd.f32 %v218, %v291
  %v293 = vpop.f32.mrb[0].mxu0
  %294 = vdwg.mxu0
  %295 = vst.msk [vmem:[%s7] sm:$0xff] %vm109, %v292
  %s296 = scalar_lea.vmem %s0, 8
  %v297 = vld [vmem:[%s296] sm:$0xff]
  %298 = vmatprep.subr.mxu0 0.0
  %299 = vmatpush1.msra.mxu0 %v27
  %300 = vmatprep.subr.mxu0 0.0
  %301 = vmatpush1.msra.mxu0 %v28
  %302 = vmatprep.subr.mxu0 0.0
  %303 = vmatpush1.msra.mxu0 0.0
  %304 = vmatprep.subr.mxu0 0.0
  %305 = vmatpush1.msra.mxu0 0.0
  %306 = vmatprep.subr.mxu0 0.0
  %307 = vmatpush1.msra.mxu0 0.0
  %308 = vmatprep.subr.mxu0 0.0
  %309 = vmatpush1.msra.mxu0 0.0
  %310 = vmatprep.subr.mxu0 0.0
  %311 = vmatpush1.msra.mxu0 0.0
  %312 = vmatprep.subr.mxu0 0.0
  %313 = vmatpush1.msra.mxu0 0.0
  %314 = vmatprep.subr.mxu0 0.0
  %315 = vmatpush1.msra.mxu0 0.0
  %316 = vmatprep.subr.mxu0 0.0
  %317 = vmatpush1.msra.mxu0 0.0
  %318 = vmatprep.subr.mxu0 0.0
  %319 = vmatpush1.msra.mxu0 0.0
  %320 = vmatprep.subr.mxu0 0.0
  %321 = vmatpush1.msra.mxu0 0.0
  %322 = vmatprep.subr.mxu0 0.0
  %323 = vmatpush1.msra.mxu0 0.0
  %324 = vmatprep.subr.mxu0 0.0
  %325 = vmatpush1.msra.mxu0 0.0
  %326 = vmatprep.subr.mxu0 0.0
  %327 = vmatpush1.msra.mxu0 0.0
  %328 = vmatprep.subr.mxu0 0.0
  %329 = vmatpush1.msra.mxu0 0.0
  %330 = vmatprep.subr.mxu0 0.0
  %331 = vmatpush1.msra.mxu0 0.0
  %332 = vmatprep.subr.mxu0 0.0
  %333 = vmatpush1.msra.mxu0 0.0
  %334 = vmatprep.subr.mxu0 0.0
  %335 = vmatpush1.msra.mxu0 0.0
  %336 = vmatprep.subr.mxu0 0.0
  %337 = vmatpush1.msra.mxu0 0.0
  %338 = vmatprep.subr.mxu0 0.0
  %339 = vmatpush1.msra.mxu0 0.0
  %340 = vmatprep.subr.mxu0 0.0
  %341 = vmatpush1.msra.mxu0 0.0
  %342 = vmatprep.subr.mxu0 0.0
  %343 = vmatpush1.msra.mxu0 0.0
  %344 = vmatprep.subr.mxu0 0.0
  %345 = vmatpush1.msra.mxu0 0.0
  %346 = vmatprep.subr.mxu0 0.0
  %347 = vmatpush1.msra.mxu0 0.0
  %348 = vmatprep.subr.mxu0 0.0
  %349 = vmatpush1.msra.mxu0 0.0
  %350 = vmatprep.subr.mxu0 0.0
  %351 = vmatpush1.msra.mxu0 0.0
  %352 = vmatprep.subr.mxu0 0.0
  %353 = vmatpush1.msra.mxu0 0.0
  %354 = vmatprep.subr.mxu0 0.0
  %355 = vmatpush1.msra.mxu0 0.0
  %356 = vmatprep.subr.mxu0 0.0
  %357 = vmatpush1.msra.mxu0 0.0
  %358 = vmatprep.subr.mxu0 0.0
  %359 = vmatpush1.msra.mxu0 0.0
  %360 = vmatprep.subr.mxu0 0.0
  %361 = vmatpush1.msra.mxu0 0.0
  %362 = vmatprep.mubr.f32.mxu0 0.0
  %363 = vmatmul.mubr.f32.gmra.mrb[0].mxu0 %v223
  %v364 = vpop.f32.mrb[0].mxu0
  %v365 = vadd.f32 0.0, %v364
  %v366 = vpop.f32.mrb[0].mxu0
  %367 = vdwg.mxu0
  %v369 = vsel %vm109, %v297, 0
  %371 = vmatprep.subr.mxu0 0.0
  %372 = vmatpush1.msra.mxu0 %v26
  %373 = vmatprep.subr.mxu0 0.0
  %374 = vmatpush1.msra.mxu0 0.0
  %375 = vmatprep.subr.mxu0 0.0
  %376 = vmatpush1.msra.mxu0 0.0
  %377 = vmatprep.subr.mxu0 0.0
  %378 = vmatpush1.msra.mxu0 0.0
  %379 = vmatprep.subr.mxu0 0.0
  %380 = vmatpush1.msra.mxu0 0.0
  %381 = vmatprep.subr.mxu0 0.0
  %382 = vmatpush1.msra.mxu0 0.0
  %383 = vmatprep.subr.mxu0 0.0
  %384 = vmatpush1.msra.mxu0 0.0
  %385 = vmatprep.subr.mxu0 0.0
  %386 = vmatpush1.msra.mxu0 0.0
  %387 = vmatprep.subr.mxu0 0.0
  %388 = vmatpush1.msra.mxu0 0.0
  %389 = vmatprep.subr.mxu0 0.0
  %390 = vmatpush1.msra.mxu0 0.0
  %391 = vmatprep.subr.mxu0 0.0
  %392 = vmatpush1.msra.mxu0 0.0
  %393 = vmatprep.subr.mxu0 0.0
  %394 = vmatpush1.msra.mxu0 0.0
  %395 = vmatprep.subr.mxu0 0.0
  %396 = vmatpush1.msra.mxu0 0.0
  %397 = vmatprep.subr.mxu0 0.0
  %398 = vmatpush1.msra.mxu0 0.0
  %399 = vmatprep.subr.mxu0 0.0
  %400 = vmatpush1.msra.mxu0 0.0
  %401 = vmatprep.subr.mxu0 0.0
  %402 = vmatpush1.msra.mxu0 0.0
  %403 = vmatprep.subr.mxu0 0.0
  %404 = vmatpush1.msra.mxu0 0.0
  %405 = vmatprep.subr.mxu0 0.0
  %406 = vmatpush1.msra.mxu0 0.0
  %407 = vmatprep.subr.mxu0 0.0
  %408 = vmatpush1.msra.mxu0 0.0
  %409 = vmatprep.subr.mxu0 0.0
  %410 = vmatpush1.msra.mxu0 0.0
  %411 = vmatprep.subr.mxu0 0.0
  %412 = vmatpush1.msra.mxu0 0.0
  %413 = vmatprep.subr.mxu0 0.0
  %414 = vmatpush1.msra.mxu0 0.0
  %415 = vmatprep.subr.mxu0 0.0
  %416 = vmatpush1.msra.mxu0 0.0
  %417 = vmatprep.subr.mxu0 0.0
  %418 = vmatpush1.msra.mxu0 0.0
  %419 = vmatprep.subr.mxu0 0.0
  %420 = vmatpush1.msra.mxu0 0.0
  %421 = vmatprep.subr.mxu0 0.0
  %422 = vmatpush1.msra.mxu0 0.0
  %423 = vmatprep.subr.mxu0 0.0
  %424 = vmatpush1.msra.mxu0 0.0
  %425 = vmatprep.subr.mxu0 0.0
  %426 = vmatpush1.msra.mxu0 0.0
  %427 = vmatprep.subr.mxu0 0.0
  %428 = vmatpush1.msra.mxu0 0.0
  %429 = vmatprep.subr.mxu0 0.0
  %430 = vmatpush1.msra.mxu0 0.0
  %431 = vmatprep.subr.mxu0 0.0
  %432 = vmatpush1.msra.mxu0 0.0
  %433 = vmatprep.subr.mxu0 0.0
  %434 = vmatpush1.msra.mxu0 0.0
  %435 = vmatprep.mubr.f32.mxu0 0.0
  %436 = vmatmul.mubr.f32.gmra.mrb[0].mxu0 %v369
  %v437 = vpop.f32.mrb[0].mxu0
  %v438 = vadd.f32 %v365, %v437
  %v439 = vpop.f32.mrb[0].mxu0
  %440 = vdwg.mxu0
  %v441 = vadd.f32 %v438, %v187
  %v442 = vxor.u32 %v441, 2147483648
  %v443 = vmul.f32 %v442, 1.442695
  %v444 = vpow.pop %v443
  %v445 = vadd.f32 %v444, 1.0
  %v446 = vrcp.pop %v445
  %v447 = vmul.f32 1.0, %v446
  %v448 = vtanh.pop %v441
  %v449 = vmul.f32 %v447, %v207
  %451 = vrot.lane.b32.xlu0 %v448, 96
  %v452 = vpop.permute.xlu0 %451
  %v454 = vmul.f32 %v447, %v452
  %456 = vrot.lane.b32.xlu0 %v454, 16
  %v457 = vpop.permute.xlu0 %456
  %v459 = vadd.f32 %v449, %v457
  %v460 = vtanh.pop %v459
  %462 = vrot.lane.b32.xlu0 %v460, 32
  %v463 = vpop.permute.xlu0 %462
  %v465 = vmul.f32 %v447, %v463
  %467 = vrot.lane.b32.xlu0 %v465, 80
  %v468 = vpop.permute.xlu0 %467
  %v469 = vsel %vm35, %v468, 0
  %471 = vmatprep.subr.mxu0 0.0
  %472 = vmatpush1.msra.mxu0 %v30
  %473 = vmatprep.subr.mxu0 0.0
  %474 = vmatpush1.msra.mxu0 %v31
  %475 = vmatprep.subr.mxu0 0.0
  %476 = vmatpush1.msra.mxu0 0.0
  %477 = vmatprep.subr.mxu0 0.0
  %478 = vmatpush1.msra.mxu0 0.0
  %479 = vmatprep.subr.mxu0 0.0
  %480 = vmatpush1.msra.mxu0 0.0
  %481 = vmatprep.subr.mxu0 0.0
  %482 = vmatpush1.msra.mxu0 0.0
  %483 = vmatprep.subr.mxu0 0.0
  %484 = vmatpush1.msra.mxu0 0.0
  %485 = vmatprep.subr.mxu0 0.0
  %486 = vmatpush1.msra.mxu0 0.0
  %487 = vmatprep.subr.mxu0 0.0
  %488 = vmatpush1.msra.mxu0 0.0
  %489 = vmatprep.subr.mxu0 0.0
  %490 = vmatpush1.msra.mxu0 0.0
  %491 = vmatprep.subr.mxu0 0.0
  %492 = vmatpush1.msra.mxu0 0.0
  %493 = vmatprep.subr.mxu0 0.0
  %494 = vmatpush1.msra.mxu0 0.0
  %495 = vmatprep.subr.mxu0 0.0
  %496 = vmatpush1.msra.mxu0 0.0
  %497 = vmatprep.subr.mxu0 0.0
  %498 = vmatpush1.msra.mxu0 0.0
  %499 = vmatprep.subr.mxu0 0.0
  %500 = vmatpush1.msra.mxu0 0.0
  %501 = vmatprep.subr.mxu0 0.0
  %502 = vmatpush1.msra.mxu0 0.0
  %503 = vmatprep.subr.mxu0 0.0
  %504 = vmatpush1.msra.mxu0 0.0
  %505 = vmatprep.subr.mxu0 0.0
  %506 = vmatpush1.msra.mxu0 0.0
  %507 = vmatprep.subr.mxu0 0.0
  %508 = vmatpush1.msra.mxu0 0.0
  %509 = vmatprep.subr.mxu0 0.0
  %510 = vmatpush1.msra.mxu0 0.0
  %511 = vmatprep.subr.mxu0 0.0
  %512 = vmatpush1.msra.mxu0 0.0
  %513 = vmatprep.subr.mxu0 0.0
  %514 = vmatpush1.msra.mxu0 0.0
  %515 = vmatprep.subr.mxu0 0.0
  %516 = vmatpush1.msra.mxu0 0.0
  %517 = vmatprep.subr.mxu0 0.0
  %518 = vmatpush1.msra.mxu0 0.0
  %519 = vmatprep.subr.mxu0 0.0
  %520 = vmatpush1.msra.mxu0 0.0
  %521 = vmatprep.subr.mxu0 0.0
  %522 = vmatpush1.msra.mxu0 0.0
  %523 = vmatprep.subr.mxu0 0.0
  %524 = vmatpush1.msra.mxu0 0.0
  %525 = vmatprep.subr.mxu0 0.0
  %526 = vmatpush1.msra.mxu0 0.0
  %527 = vmatprep.subr.mxu0 0.0
  %528 = vmatpush1.msra.mxu0 0.0
  %529 = vmatprep.subr.mxu0 0.0
  %530 = vmatpush1.msra.mxu0 0.0
  %531 = vmatprep.subr.mxu0 0.0
  %532 = vmatpush1.msra.mxu0 0.0
  %533 = vmatprep.subr.mxu0 0.0
  %534 = vmatpush1.msra.mxu0 0.0
  %535 = vmatprep.mubr.f32.mxu0 0.0
  %536 = vmatmul.mubr.f32.gmra.mrb[0].mxu0 %v469
  %v537 = vpop.f32.mrb[0].mxu0
  %v538 = vadd.f32 %v218, %v537
  %v539 = vpop.f32.mrb[0].mxu0
  %540 = vdwg.mxu0
  %s541 = scalar_lea.vmem %s7, 8
  %542 = vst.msk [vmem:[%s541] sm:$0xff] %vm109, %v538
  %s543 = scalar_lea.vmem %s0, 16
  %v544 = vld [vmem:[%s543] sm:$0xff]
  %545 = vmatprep.subr.mxu0 0.0
  %546 = vmatpush1.msra.mxu0 %v27
  %547 = vmatprep.subr.mxu0 0.0
  %548 = vmatpush1.msra.mxu0 %v28
  %549 = vmatprep.subr.mxu0 0.0
  %550 = vmatpush1.msra.mxu0 0.0
  %551 = vmatprep.subr.mxu0 0.0
  %552 = vmatpush1.msra.mxu0 0.0
  %553 = vmatprep.subr.mxu0 0.0
  %554 = vmatpush1.msra.mxu0 0.0
  %555 = vmatprep.subr.mxu0 0.0
  %556 = vmatpush1.msra.mxu0 0.0
  %557 = vmatprep.subr.mxu0 0.0
  %558 = vmatpush1.msra.mxu0 0.0
  %559 = vmatprep.subr.mxu0 0.0
  %560 = vmatpush1.msra.mxu0 0.0
  %561 = vmatprep.subr.mxu0 0.0
  %562 = vmatpush1.msra.mxu0 0.0
  %563 = vmatprep.subr.mxu0 0.0
  %564 = vmatpush1.msra.mxu0 0.0
  %565 = vmatprep.subr.mxu0 0.0
  %566 = vmatpush1.msra.mxu0 0.0
  %567 = vmatprep.subr.mxu0 0.0
  %568 = vmatpush1.msra.mxu0 0.0
  %569 = vmatprep.subr.mxu0 0.0
  %570 = vmatpush1.msra.mxu0 0.0
  %571 = vmatprep.subr.mxu0 0.0
  %572 = vmatpush1.msra.mxu0 0.0
  %573 = vmatprep.subr.mxu0 0.0
  %574 = vmatpush1.msra.mxu0 0.0
  %575 = vmatprep.subr.mxu0 0.0
  %576 = vmatpush1.msra.mxu0 0.0
  %577 = vmatprep.subr.mxu0 0.0
  %578 = vmatpush1.msra.mxu0 0.0
  %579 = vmatprep.subr.mxu0 0.0
  %580 = vmatpush1.msra.mxu0 0.0
  %581 = vmatprep.subr.mxu0 0.0
  %582 = vmatpush1.msra.mxu0 0.0
  %583 = vmatprep.subr.mxu0 0.0
  %584 = vmatpush1.msra.mxu0 0.0
  %585 = vmatprep.subr.mxu0 0.0
  %586 = vmatpush1.msra.mxu0 0.0
  %587 = vmatprep.subr.mxu0 0.0
  %588 = vmatpush1.msra.mxu0 0.0
  %589 = vmatprep.subr.mxu0 0.0
  %590 = vmatpush1.msra.mxu0 0.0
  %591 = vmatprep.subr.mxu0 0.0
  %592 = vmatpush1.msra.mxu0 0.0
  %593 = vmatprep.subr.mxu0 0.0
  %594 = vmatpush1.msra.mxu0 0.0
  %595 = vmatprep.subr.mxu0 0.0
  %596 = vmatpush1.msra.mxu0 0.0
  %597 = vmatprep.subr.mxu0 0.0
  %598 = vmatpush1.msra.mxu0 0.0
  %599 = vmatprep.subr.mxu0 0.0
  %600 = vmatpush1.msra.mxu0 0.0
  %601 = vmatprep.subr.mxu0 0.0
  %602 = vmatpush1.msra.mxu0 0.0
  %603 = vmatprep.subr.mxu0 0.0
  %604 = vmatpush1.msra.mxu0 0.0
  %605 = vmatprep.subr.mxu0 0.0
  %606 = vmatpush1.msra.mxu0 0.0
  %607 = vmatprep.subr.mxu0 0.0
  %608 = vmatpush1.msra.mxu0 0.0
  %609 = vmatprep.mubr.f32.mxu0 0.0
  %610 = vmatmul.mubr.f32.gmra.mrb[0].mxu0 %v469
  %v611 = vpop.f32.mrb[0].mxu0
  %v612 = vadd.f32 0.0, %v611
  %v613 = vpop.f32.mrb[0].mxu0
  %614 = vdwg.mxu0
  %v616 = vsel %vm109, %v544, 0
  %618 = vmatprep.subr.mxu0 0.0
  %619 = vmatpush1.msra.mxu0 %v26
  %620 = vmatprep.subr.mxu0 0.0
  %621 = vmatpush1.msra.mxu0 0.0
  %622 = vmatprep.subr.mxu0 0.0
  %623 = vmatpush1.msra.mxu0 0.0
  %624 = vmatprep.subr.mxu0 0.0
  %625 = vmatpush1.msra.mxu0 0.0
  %626 = vmatprep.subr.mxu0 0.0
  %627 = vmatpush1.msra.mxu0 0.0
  %628 = vmatprep.subr.mxu0 0.0
  %629 = vmatpush1.msra.mxu0 0.0
  %630 = vmatprep.subr.mxu0 0.0
  %631 = vmatpush1.msra.mxu0 0.0
  %632 = vmatprep.subr.mxu0 0.0
  %633 = vmatpush1.msra.mxu0 0.0
  %634 = vmatprep.subr.mxu0 0.0
  %635 = vmatpush1.msra.mxu0 0.0
  %636 = vmatprep.subr.mxu0 0.0
  %637 = vmatpush1.msra.mxu0 0.0
  %638 = vmatprep.subr.mxu0 0.0
  %639 = vmatpush1.msra.mxu0 0.0
  %640 = vmatprep.subr.mxu0 0.0
  %641 = vmatpush1.msra.mxu0 0.0
  %642 = vmatprep.subr.mxu0 0.0
  %643 = vmatpush1.msra.mxu0 0.0
  %644 = vmatprep.subr.mxu0 0.0
  %645 = vmatpush1.msra.mxu0 0.0
  %646 = vmatprep.subr.mxu0 0.0
  %647 = vmatpush1.msra.mxu0 0.0
  %648 = vmatprep.subr.mxu0 0.0
  %649 = vmatpush1.msra.mxu0 0.0
  %650 = vmatprep.subr.mxu0 0.0
  %651 = vmatpush1.msra.mxu0 0.0
  %652 = vmatprep.subr.mxu0 0.0
  %653 = vmatpush1.msra.mxu0 0.0
  %654 = vmatprep.subr.mxu0 0.0
  %655 = vmatpush1.msra.mxu0 0.0
  %656 = vmatprep.subr.mxu0 0.0
  %657 = vmatpush1.msra.mxu0 0.0
  %658 = vmatprep.subr.mxu0 0.0
  %659 = vmatpush1.msra.mxu0 0.0
  %660 = vmatprep.subr.mxu0 0.0
  %661 = vmatpush1.msra.mxu0 0.0
  %662 = vmatprep.subr.mxu0 0.0
  %663 = vmatpush1.msra.mxu0 0.0
  %664 = vmatprep.subr.mxu0 0.0
  %665 = vmatpush1.msra.mxu0 0.0
  %666 = vmatprep.subr.mxu0 0.0
  %667 = vmatpush1.msra.mxu0 0.0
  %668 = vmatprep.subr.mxu0 0.0
  %669 = vmatpush1.msra.mxu0 0.0
  %670 = vmatprep.subr.mxu0 0.0
  %671 = vmatpush1.msra.mxu0 0.0
  %672 = vmatprep.subr.mxu0 0.0
  %673 = vmatpush1.msra.mxu0 0.0
  %674 = vmatprep.subr.mxu0 0.0
  %675 = vmatpush1.msra.mxu0 0.0
  %676 = vmatprep.subr.mxu0 0.0
  %677 = vmatpush1.msra.mxu0 0.0
  %678 = vmatprep.subr.mxu0 0.0
  %679 = vmatpush1.msra.mxu0 0.0
  %680 = vmatprep.subr.mxu0 0.0
  %681 = vmatpush1.msra.mxu0 0.0
  %682 = vmatprep.mubr.f32.mxu0 0.0
  %683 = vmatmul.mubr.f32.gmra.mrb[0].mxu0 %v616
  %v684 = vpop.f32.mrb[0].mxu0
  %v685 = vadd.f32 %v612, %v684
  %v686 = vpop.f32.mrb[0].mxu0
  %687 = vdwg.mxu0
  %v688 = vadd.f32 %v685, %v187
  %v689 = vxor.u32 %v688, 2147483648
  %v690 = vmul.f32 %v689, 1.442695
  %v691 = vpow.pop %v690
  %v692 = vadd.f32 %v691, 1.0
  %v693 = vrcp.pop %v692
  %v694 = vmul.f32 1.0, %v693
  %v695 = vtanh.pop %v688
  %v696 = vmul.f32 %v694, %v459
  %698 = vrot.lane.b32.xlu0 %v695, 96
  %v699 = vpop.permute.xlu0 %698
  %v701 = vmul.f32 %v694, %v699
  %703 = vrot.lane.b32.xlu0 %v701, 16
  %v704 = vpop.permute.xlu0 %703
  %v706 = vadd.f32 %v696, %v704
  %v707 = vtanh.pop %v706
  %709 = vrot.lane.b32.xlu0 %v707, 32
  %v710 = vpop.permute.xlu0 %709
  %v712 = vmul.f32 %v694, %v710
  %714 = vrot.lane.b32.xlu0 %v712, 80
  %v715 = vpop.permute.xlu0 %714
  %v716 = vsel %vm35, %v715, 0
  %718 = vmatprep.subr.mxu0 0.0
  %719 = vmatpush1.msra.mxu0 %v30
  %720 = vmatprep.subr.mxu0 0.0
  %721 = vmatpush1.msra.mxu0 %v31
  %722 = vmatprep.subr.mxu0 0.0
  %723 = vmatpush1.msra.mxu0 0.0
  %724 = vmatprep.subr.mxu0 0.0
  %725 = vmatpush1.msra.mxu0 0.0
  %726 = vmatprep.subr.mxu0 0.0
  %727 = vmatpush1.msra.mxu0 0.0
  %728 = vmatprep.subr.mxu0 0.0
  %729 = vmatpush1.msra.mxu0 0.0
  %730 = vmatprep.subr.mxu0 0.0
  %731 = vmatpush1.msra.mxu0 0.0
  %732 = vmatprep.subr.mxu0 0.0
  %733 = vmatpush1.msra.mxu0 0.0
  %734 = vmatprep.subr.mxu0 0.0
  %735 = vmatpush1.msra.mxu0 0.0
  %736 = vmatprep.subr.mxu0 0.0
  %737 = vmatpush1.msra.mxu0 0.0
  %738 = vmatprep.subr.mxu0 0.0
  %739 = vmatpush1.msra.mxu0 0.0
  %740 = vmatprep.subr.mxu0 0.0
  %741 = vmatpush1.msra.mxu0 0.0
  %742 = vmatprep.subr.mxu0 0.0
  %743 = vmatpush1.msra.mxu0 0.0
  %744 = vmatprep.subr.mxu0 0.0
  %745 = vmatpush1.msra.mxu0 0.0
  %746 = vmatprep.subr.mxu0 0.0
  %747 = vmatpush1.msra.mxu0 0.0
  %748 = vmatprep.subr.mxu0 0.0
  %749 = vmatpush1.msra.mxu0 0.0
  %750 = vmatprep.subr.mxu0 0.0
  %751 = vmatpush1.msra.mxu0 0.0
  %752 = vmatprep.subr.mxu0 0.0
  %753 = vmatpush1.msra.mxu0 0.0
  %754 = vmatprep.subr.mxu0 0.0
  %755 = vmatpush1.msra.mxu0 0.0
  %756 = vmatprep.subr.mxu0 0.0
  %757 = vmatpush1.msra.mxu0 0.0
  %758 = vmatprep.subr.mxu0 0.0
  %759 = vmatpush1.msra.mxu0 0.0
  %760 = vmatprep.subr.mxu0 0.0
  %761 = vmatpush1.msra.mxu0 0.0
  %762 = vmatprep.subr.mxu0 0.0
  %763 = vmatpush1.msra.mxu0 0.0
  %764 = vmatprep.subr.mxu0 0.0
  %765 = vmatpush1.msra.mxu0 0.0
  %766 = vmatprep.subr.mxu0 0.0
  %767 = vmatpush1.msra.mxu0 0.0
  %768 = vmatprep.subr.mxu0 0.0
  %769 = vmatpush1.msra.mxu0 0.0
  %770 = vmatprep.subr.mxu0 0.0
  %771 = vmatpush1.msra.mxu0 0.0
  %772 = vmatprep.subr.mxu0 0.0
  %773 = vmatpush1.msra.mxu0 0.0
  %774 = vmatprep.subr.mxu0 0.0
  %775 = vmatpush1.msra.mxu0 0.0
  %776 = vmatprep.subr.mxu0 0.0
  %777 = vmatpush1.msra.mxu0 0.0
  %778 = vmatprep.subr.mxu0 0.0
  %779 = vmatpush1.msra.mxu0 0.0
  %780 = vmatprep.subr.mxu0 0.0
  %781 = vmatpush1.msra.mxu0 0.0
  %782 = vmatprep.mubr.f32.mxu0 0.0
  %783 = vmatmul.mubr.f32.gmra.mrb[0].mxu0 %v716
  %v784 = vpop.f32.mrb[0].mxu0
  %v785 = vadd.f32 %v218, %v784
  %v786 = vpop.f32.mrb[0].mxu0
  %787 = vdwg.mxu0
  %s788 = scalar_lea.vmem %s7, 16
  %789 = vst.msk [vmem:[%s788] sm:$0xff] %vm109, %v785
  %s790 = scalar_lea.vmem %s0, 24
  %v791 = vld [vmem:[%s790] sm:$0xff]
  %792 = vmatprep.subr.mxu0 0.0
  %793 = vmatpush1.msra.mxu0 %v27
  %794 = vmatprep.subr.mxu0 0.0
  %795 = vmatpush1.msra.mxu0 %v28
  %796 = vmatprep.subr.mxu0 0.0
  %797 = vmatpush1.msra.mxu0 0.0
  %798 = vmatprep.subr.mxu0 0.0
  %799 = vmatpush1.msra.mxu0 0.0
  %800 = vmatprep.subr.mxu0 0.0
  %801 = vmatpush1.msra.mxu0 0.0
  %802 = vmatprep.subr.mxu0 0.0
  %803 = vmatpush1.msra.mxu0 0.0
  %804 = vmatprep.subr.mxu0 0.0
  %805 = vmatpush1.msra.mxu0 0.0
  %806 = vmatprep.subr.mxu0 0.0
  %807 = vmatpush1.msra.mxu0 0.0
  %808 = vmatprep.subr.mxu0 0.0
  %809 = vmatpush1.msra.mxu0 0.0
  %810 = vmatprep.subr.mxu0 0.0
  %811 = vmatpush1.msra.mxu0 0.0
  %812 = vmatprep.subr.mxu0 0.0
  %813 = vmatpush1.msra.mxu0 0.0
  %814 = vmatprep.subr.mxu0 0.0
  %815 = vmatpush1.msra.mxu0 0.0
  %816 = vmatprep.subr.mxu0 0.0
  %817 = vmatpush1.msra.mxu0 0.0
  %818 = vmatprep.subr.mxu0 0.0
  %819 = vmatpush1.msra.mxu0 0.0
  %820 = vmatprep.subr.mxu0 0.0
  %821 = vmatpush1.msra.mxu0 0.0
  %822 = vmatprep.subr.mxu0 0.0
  %823 = vmatpush1.msra.mxu0 0.0
  %824 = vmatprep.subr.mxu0 0.0
  %825 = vmatpush1.msra.mxu0 0.0
  %826 = vmatprep.subr.mxu0 0.0
  %827 = vmatpush1.msra.mxu0 0.0
  %828 = vmatprep.subr.mxu0 0.0
  %829 = vmatpush1.msra.mxu0 0.0
  %830 = vmatprep.subr.mxu0 0.0
  %831 = vmatpush1.msra.mxu0 0.0
  %832 = vmatprep.subr.mxu0 0.0
  %833 = vmatpush1.msra.mxu0 0.0
  %834 = vmatprep.subr.mxu0 0.0
  %835 = vmatpush1.msra.mxu0 0.0
  %836 = vmatprep.subr.mxu0 0.0
  %837 = vmatpush1.msra.mxu0 0.0
  %838 = vmatprep.subr.mxu0 0.0
  %839 = vmatpush1.msra.mxu0 0.0
  %840 = vmatprep.subr.mxu0 0.0
  %841 = vmatpush1.msra.mxu0 0.0
  %842 = vmatprep.subr.mxu0 0.0
  %843 = vmatpush1.msra.mxu0 0.0
  %844 = vmatprep.subr.mxu0 0.0
  %845 = vmatpush1.msra.mxu0 0.0
  %846 = vmatprep.subr.mxu0 0.0
  %847 = vmatpush1.msra.mxu0 0.0
  %848 = vmatprep.subr.mxu0 0.0
  %849 = vmatpush1.msra.mxu0 0.0
  %850 = vmatprep.subr.mxu0 0.0
  %851 = vmatpush1.msra.mxu0 0.0
  %852 = vmatprep.subr.mxu0 0.0
  %853 = vmatpush1.msra.mxu0 0.0
  %854 = vmatprep.subr.mxu0 0.0
  %855 = vmatpush1.msra.mxu0 0.0
  %856 = vmatprep.mubr.f32.mxu0 0.0
  %857 = vmatmul.mubr.f32.gmra.mrb[0].mxu0 %v716
  %v858 = vpop.f32.mrb[0].mxu0
  %v859 = vadd.f32 0.0, %v858
  %v860 = vpop.f32.mrb[0].mxu0
  %861 = vdwg.mxu0
  %v863 = vsel %vm109, %v791, 0
  %865 = vmatprep.subr.mxu0 0.0
  %866 = vmatpush1.msra.mxu0 %v26
  %867 = vmatprep.subr.mxu0 0.0
  %868 = vmatpush1.msra.mxu0 0.0
  %869 = vmatprep.subr.mxu0 0.0
  %870 = vmatpush1.msra.mxu0 0.0
  %871 = vmatprep.subr.mxu0 0.0
  %872 = vmatpush1.msra.mxu0 0.0
  %873 = vmatprep.subr.mxu0 0.0
  %874 = vmatpush1.msra.mxu0 0.0
  %875 = vmatprep.subr.mxu0 0.0
  %876 = vmatpush1.msra.mxu0 0.0
  %877 = vmatprep.subr.mxu0 0.0
  %878 = vmatpush1.msra.mxu0 0.0
  %879 = vmatprep.subr.mxu0 0.0
  %880 = vmatpush1.msra.mxu0 0.0
  %881 = vmatprep.subr.mxu0 0.0
  %882 = vmatpush1.msra.mxu0 0.0
  %883 = vmatprep.subr.mxu0 0.0
  %884 = vmatpush1.msra.mxu0 0.0
  %885 = vmatprep.subr.mxu0 0.0
  %886 = vmatpush1.msra.mxu0 0.0
  %887 = vmatprep.subr.mxu0 0.0
  %888 = vmatpush1.msra.mxu0 0.0
  %889 = vmatprep.subr.mxu0 0.0
  %890 = vmatpush1.msra.mxu0 0.0
  %891 = vmatprep.subr.mxu0 0.0
  %892 = vmatpush1.msra.mxu0 0.0
  %893 = vmatprep.subr.mxu0 0.0
  %894 = vmatpush1.msra.mxu0 0.0
  %895 = vmatprep.subr.mxu0 0.0
  %896 = vmatpush1.msra.mxu0 0.0
  %897 = vmatprep.subr.mxu0 0.0
  %898 = vmatpush1.msra.mxu0 0.0
  %899 = vmatprep.subr.mxu0 0.0
  %900 = vmatpush1.msra.mxu0 0.0
  %901 = vmatprep.subr.mxu0 0.0
  %902 = vmatpush1.msra.mxu0 0.0
  %903 = vmatprep.subr.mxu0 0.0
  %904 = vmatpush1.msra.mxu0 0.0
  %905 = vmatprep.subr.mxu0 0.0
  %906 = vmatpush1.msra.mxu0 0.0
  %907 = vmatprep.subr.mxu0 0.0
  %908 = vmatpush1.msra.mxu0 0.0
  %909 = vmatprep.subr.mxu0 0.0
  %910 = vmatpush1.msra.mxu0 0.0
  %911 = vmatprep.subr.mxu0 0.0
  %912 = vmatpush1.msra.mxu0 0.0
  %913 = vmatprep.subr.mxu0 0.0
  %914 = vmatpush1.msra.mxu0 0.0
  %915 = vmatprep.subr.mxu0 0.0
  %916 = vmatpush1.msra.mxu0 0.0
  %917 = vmatprep.subr.mxu0 0.0
  %918 = vmatpush1.msra.mxu0 0.0
  %919 = vmatprep.subr.mxu0 0.0
  %920 = vmatpush1.msra.mxu0 0.0
  %921 = vmatprep.subr.mxu0 0.0
  %922 = vmatpush1.msra.mxu0 0.0
  %923 = vmatprep.subr.mxu0 0.0
  %924 = vmatpush1.msra.mxu0 0.0
  %925 = vmatprep.subr.mxu0 0.0
  %926 = vmatpush1.msra.mxu0 0.0
  %927 = vmatprep.subr.mxu0 0.0
  %928 = vmatpush1.msra.mxu0 0.0
  %929 = vmatprep.mubr.f32.mxu0 0.0
  %930 = vmatmul.mubr.f32.gmra.mrb[0].mxu0 %v863
  %v931 = vpop.f32.mrb[0].mxu0
  %v932 = vadd.f32 %v859, %v931
  %v933 = vpop.f32.mrb[0].mxu0
  %934 = vdwg.mxu0
  %v935 = vadd.f32 %v932, %v187
  %v936 = vxor.u32 %v935, 2147483648
  %v937 = vmul.f32 %v936, 1.442695
  %v938 = vpow.pop %v937
  %v939 = vadd.f32 %v938, 1.0
  %v940 = vrcp.pop %v939
  %v941 = vmul.f32 1.0, %v940
  %v942 = vtanh.pop %v935
  %v943 = vmul.f32 %v941, %v706
  %945 = vrot.lane.b32.xlu0 %v942, 96
  %v946 = vpop.permute.xlu0 %945
  %v948 = vmul.f32 %v941, %v946
  %950 = vrot.lane.b32.xlu0 %v948, 16
  %v951 = vpop.permute.xlu0 %950
  %v953 = vadd.f32 %v943, %v951
  %v954 = vtanh.pop %v953
  %956 = vrot.lane.b32.xlu0 %v954, 32
  %v957 = vpop.permute.xlu0 %956
  %v959 = vmul.f32 %v941, %v957
  %961 = vrot.lane.b32.xlu0 %v959, 80
  %v962 = vpop.permute.xlu0 %961
  %v963 = vsel %vm35, %v962, 0
  %965 = vmatprep.subr.mxu0 0.0
  %966 = vmatpush1.msra.mxu0 %v30
  %967 = vmatprep.subr.mxu0 0.0
  %968 = vmatpush1.msra.mxu0 %v31
  %969 = vmatprep.subr.mxu0 0.0
  %970 = vmatpush1.msra.mxu0 0.0
  %971 = vmatprep.subr.mxu0 0.0
  %972 = vmatpush1.msra.mxu0 0.0
  %973 = vmatprep.subr.mxu0 0.0
  %974 = vmatpush1.msra.mxu0 0.0
  %975 = vmatprep.subr.mxu0 0.0
  %976 = vmatpush1.msra.mxu0 0.0
  %977 = vmatprep.subr.mxu0 0.0
  %978 = vmatpush1.msra.mxu0 0.0
  %979 = vmatprep.subr.mxu0 0.0
  %980 = vmatpush1.msra.mxu0 0.0
  %981 = vmatprep.subr.mxu0 0.0
  %982 = vmatpush1.msra.mxu0 0.0
  %983 = vmatprep.subr.mxu0 0.0
  %984 = vmatpush1.msra.mxu0 0.0
  %985 = vmatprep.subr.mxu0 0.0
  %986 = vmatpush1.msra.mxu0 0.0
  %987 = vmatprep.subr.mxu0 0.0
  %988 = vmatpush1.msra.mxu0 0.0
  %989 = vmatprep.subr.mxu0 0.0
  %990 = vmatpush1.msra.mxu0 0.0
  %991 = vmatprep.subr.mxu0 0.0
  %992 = vmatpush1.msra.mxu0 0.0
  %993 = vmatprep.subr.mxu0 0.0
  %994 = vmatpush1.msra.mxu0 0.0
  %995 = vmatprep.subr.mxu0 0.0
  %996 = vmatpush1.msra.mxu0 0.0
  %997 = vmatprep.subr.mxu0 0.0
  %998 = vmatpush1.msra.mxu0 0.0
  %999 = vmatprep.subr.mxu0 0.0
  %1000 = vmatpush1.msra.mxu0 0.0
  %1001 = vmatprep.subr.mxu0 0.0
  %1002 = vmatpush1.msra.mxu0 0.0
  %1003 = vmatprep.subr.mxu0 0.0
  %1004 = vmatpush1.msra.mxu0 0.0
  %1005 = vmatprep.subr.mxu0 0.0
  %1006 = vmatpush1.msra.mxu0 0.0
  %1007 = vmatprep.subr.mxu0 0.0
  %1008 = vmatpush1.msra.mxu0 0.0
  %1009 = vmatprep.subr.mxu0 0.0
  %1010 = vmatpush1.msra.mxu0 0.0
  %1011 = vmatprep.subr.mxu0 0.0
  %1012 = vmatpush1.msra.mxu0 0.0
  %1013 = vmatprep.subr.mxu0 0.0
  %1014 = vmatpush1.msra.mxu0 0.0
  %1015 = vmatprep.subr.mxu0 0.0
  %1016 = vmatpush1.msra.mxu0 0.0
  %1017 = vmatprep.subr.mxu0 0.0
  %1018 = vmatpush1.msra.mxu0 0.0
  %1019 = vmatprep.subr.mxu0 0.0
  %1020 = vmatpush1.msra.mxu0 0.0
  %1021 = vmatprep.subr.mxu0 0.0
  %1022 = vmatpush1.msra.mxu0 0.0
  %1023 = vmatprep.subr.mxu0 0.0
  %1024 = vmatpush1.msra.mxu0 0.0
  %1025 = vmatprep.subr.mxu0 0.0
  %1026 = vmatpush1.msra.mxu0 0.0
  %1027 = vmatprep.subr.mxu0 0.0
  %1028 = vmatpush1.msra.mxu0 0.0
  %1029 = vmatprep.mubr.f32.mxu0 0.0
  %1030 = vmatmul.mubr.f32.gmra.mrb[0].mxu0 %v963
  %v1031 = vpop.f32.mrb[0].mxu0
  %v1032 = vadd.f32 %v218, %v1031
  %v1033 = vpop.f32.mrb[0].mxu0
  %1034 = vdwg.mxu0
  %s1035 = scalar_lea.vmem %s7, 24
  %1036 = vst.msk [vmem:[%s1035] sm:$0xff] %vm109, %v1032
  // Predicated region
  $region30: #{_lambda_.8} parent=0 // pred_check
    _
  $region31: #{_lambda_.8} parent=0 // pred_check_branch
    %1038 = sbr.rel (0) target = $region33
  $region32: #{_lambda_.8} parent=0 // pred_region
    _
  $region33: #{_lambda_.8} parent=0 // pred_fallthru
    _
  // Predicated region
  $region34: #{_lambda_.8} parent=0 // pred_check
    _
  $region35: #{_lambda_.8} parent=0 // pred_check_branch
    %1040 = sbr.rel (0) target = $region37
  $region36: #{_lambda_.8} parent=0 // pred_region
    _
  $region37: #{_lambda_.8} parent=0 // pred_fallthru
    _

</llo_original>
